<compile_context>
chip_gen: v6e
topology: v6e:2x2x1
jax: 0.10.0
libtpu: 0.0.40
codegen_flags: <defaults>
</compile_context>

<pallas_src>
import functools

import jax
import jax.numpy as jnp
import numpy as np
from jax.experimental import pallas as pl
from jax.experimental.pallas import tpu as pltpu

KH = KW = 5
CIN, C1, C2 = 3, 6, 16
FC1, FC2, NCLS = 120, 84, 2
FCPAD = 128          # lane-padded width used for every fc matmul / output store


def _round_up(x, m):
    return (x + m - 1) // m * m


def net_dims(imsize):
    assert imsize % 2 == 0, "this implementation handles even image sizes"
    H = W = imsize
    H1o, W1o = H - KH + 1, W - KW + 1        # conv1 output
    H1p, W1p = H1o // 2, W1o // 2            # after pool1 (floor mode)
    H2o, W2o = H1p - KH + 1, W1p - KW + 1    # conv2 output
    H2p, W2p = H2o // 2, W2o // 2            # after pool2 (== finalsize)
    LW1 = _round_up(CIN * W, 128)            # lane-padded input row width
    CH1 = _round_up(C1 * W1p, 128)           # lane-padded half width, stage 1
    CH2 = _round_up(C2 * W2p, 128)           # lane-padded half width, stage 2
    return dict(H=H, W=W, H1o=H1o, W1o=W1o, H1p=H1p, W1p=W1p,
                H2o=H2o, W2o=W2o, H2p=H2p, W2p=W2p,
                LW1=LW1, CH1=CH1, CH2=CH2)


# ---------------------------------------------------------------------------
# One-time weight / selector repacking (tiny XLA + numpy, outside the kernel).
# ---------------------------------------------------------------------------
def _conv_toeplitz(w_hwio, w_in, ch_half):
    """Pack a (KH, KW, Cin, Cout) conv weight into KH block-Toeplitz matrices.

    Input activation columns are channel-major: col = ci * w_in + x.
    Output columns: p * ch_half + co * w_half + q  for output x = 2*q + p
    (q < w_half), i.e. even/odd output columns land in separate 128-padded
    halves (so 2x2 max-pool over columns is max(left_half, right_half); the
    last column of an odd-width conv output is dropped, matching floor-mode
    MaxPool2d).  Unused (padded) columns are zero.
    """
    kh, kw, cin, cout = w_hwio.shape
    w_out = w_in - kw + 1
    w_half = w_out // 2
    xin = np.arange(w_in)[None, None, :, None]
    q = np.arange(w_half)[None, None, None, :]
    j = np.arange(kw)[:, None, None, None]
    p = np.arange(2)[None, :, None, None]
    sel = jnp.asarray((xin == 2 * q + p + j).astype(np.float32))  # (KW,2,Win,Wh)
    t = jnp.einsum('ijcd,jpwq->icwpdq', w_hwio.astype(jnp.float32), sel)
    t = t.reshape(kh, cin * w_in, 2, cout * w_half)
    t = jnp.pad(t, ((0, 0), (0, 0), (0, 0), (0, ch_half - cout * w_half)))
    return t.reshape(kh, cin * w_in, 2 * ch_half)


def _packed_bias(b, w_half, ch_half):
    row = jnp.pad(jnp.repeat(b, w_half), (0, ch_half - b.shape[0] * w_half))
    return jnp.tile(row, 2).reshape(1, 2 * ch_half).astype(jnp.float32)


def _pool_row_selectors(bb, h_out, h_in):
    """Block-diag even/odd row selectors: sel[b*h_out+r, b*h_in+2r(+1)] = 1."""
    se = np.zeros((bb * h_out, bb * h_in), np.float32)
    so = np.zeros((bb * h_out, bb * h_in), np.float32)
    for b in range(bb):
        for r in range(h_out):
            se[b * h_out + r, b * h_in + 2 * r] = 1.0
            so[b * h_out + r, b * h_in + 2 * r + 1] = 1.0
    return jnp.asarray(se, jnp.bfloat16), jnp.asarray(so, jnp.bfloat16)


def _shift_selectors(bb, h_out, h_in, kh):
    """rsh[i, b*h_out+y, b*h_in+y+i] = 1 -- per-kernel-row batched row shift."""
    m = np.zeros((kh, bb * h_out, bb * h_in), np.float32)
    for i in range(kh):
        for b in range(bb):
            for y in range(h_out):
                m[i, b * h_out + y, b * h_in + y + i] = 1.0
    return jnp.asarray(m, jnp.bfloat16)


def _pool_gather_selectors(bb, h_out, h_in):
    """sp[2y+par, b, b*h_in+2y+par] = 1 -- fused 2x2 row pool + per-sample
    row gather (produces one (B, CH) slab per pooled row y for the fc head)."""
    m = np.zeros((2 * h_out, bb, bb * h_in), np.float32)
    for y in range(h_out):
        for par in range(2):
            for b in range(bb):
                m[2 * y + par, b, b * h_in + 2 * y + par] = 1.0
    return jnp.asarray(m, jnp.bfloat16)


def prepare_params(params, imsize, block_b):
    d = net_dims(imsize)
    B = block_b
    bf16 = jnp.bfloat16

    # conv1: Toeplitz blocks stacked along K to match the wrapper's row slab.
    t1 = _conv_toeplitz(params['conv1_w'], d['W'], d['CH1'])
    t1 = jnp.pad(t1, ((0, 0), (0, d['LW1'] - CIN * d['W']), (0, 0)))
    t1 = t1.reshape(KH * d['LW1'], 2 * d['CH1']).astype(bf16)
    b1 = _packed_bias(params['conv1_b'], d['W1p'], d['CH1'])

    # conv2: per-kernel-row Toeplitz, contraction rows padded to CH1.
    t2 = _conv_toeplitz(params['conv2_w'], d['W1p'], d['CH2'])
    t2 = jnp.pad(t2, ((0, 0), (0, d['CH1'] - C1 * d['W1p']), (0, 0))).astype(bf16)
    b2 = _packed_bias(params['conv2_b'], d['W2p'], d['CH2'])

    se1, so1 = _pool_row_selectors(B, d['H1p'], d['H1o'])
    rsh = _shift_selectors(B, d['H2o'], d['H1p'], KH)
    sp2 = _pool_gather_selectors(B, d['H2p'], d['H2o'])

    # fc1 weight: permute rows from PyTorch flatten order (c, y, x) to the
    # kernel's flattened pooled layout (y-major, then lane-padded c*W2p + x),
    # pad output lanes to 128, and flatten to a single (H2p*CH2, 128) matrix.
    f = d['H2p']
    wf1 = params['fc1_w'].reshape(C2, f, f, FC1).transpose(1, 0, 2, 3)
    wf1 = wf1.reshape(f, C2 * f, FC1)
    wf1 = jnp.pad(wf1, ((0, 0), (0, d['CH2'] - C2 * f), (0, FCPAD - FC1)))
    wf1 = wf1.reshape(f * d['CH2'], FCPAD).astype(bf16)
    bf1 = jnp.pad(params['fc1_b'], (0, FCPAD - FC1)).reshape(1, FCPAD).astype(jnp.float32)

    wf2 = jnp.pad(params['fc2_w'], ((0, FCPAD - FC1), (0, FCPAD - FC2))).astype(bf16)
    bf2 = jnp.pad(params['fc2_b'], (0, FCPAD - FC2)).reshape(1, FCPAD).astype(jnp.float32)
    wf3 = jnp.pad(params['fc3_w'], ((0, FCPAD - FC2), (0, FCPAD - NCLS))).astype(bf16)
    bf3 = jnp.pad(params['fc3_b'], (0, FCPAD - NCLS)).reshape(1, FCPAD).astype(jnp.float32)

    return dict(t1=t1, b1=b1, t2=t2, b2=b2, se1=se1, so1=so1, rsh=rsh, sp2=sp2,
                wf1=wf1, bf1=bf1, wf2=wf2, bf2=bf2, wf3=wf3, bf3=bf3)


# ---------------------------------------------------------------------------
# The single fused kernel (one grid step == B samples).
# ---------------------------------------------------------------------------
def _lenet_kernel(x_ref, t1_ref, b1_ref, se1_ref, so1_ref, rsh_ref, t2_ref,
                  b2_ref, sp2_ref, wf1_ref, bf1_ref, wf2_ref, bf2_ref,
                  wf3_ref, bf3_ref, o_ref, *, dims):
    B, CH1, H2o, H2p, CH2 = dims
    f32, bf16 = jnp.float32, jnp.bfloat16

    # conv1 + bias + ReLU: ONE MXU matmul, M = B*H1o, K = KH*LW1, N = 2*CH1.
    a1 = jnp.dot(x_ref[0], t1_ref[...], preferred_element_type=f32)
    a1 = jnp.maximum(a1 + b1_ref[...], 0.0)
    a1b = a1.astype(bf16)

    # 2x2 max-pool #1: rows via block-diag 0/1 selector matmuls (exact),
    # columns via the even/odd lane-half packing of the Toeplitz weights.
    r1 = jnp.maximum(jnp.dot(se1_ref[...], a1b, preferred_element_type=f32),
                     jnp.dot(so1_ref[...], a1b, preferred_element_type=f32))
    p1b = jnp.maximum(r1[:, :CH1], r1[:, CH1:]).astype(bf16)     # (B*H1p, CH1)

    # conv2: per-kernel-row Toeplitz matmuls with M = B*H2o; the per-sample
    # row shifts come from exact selector matmuls (no misaligned slices).
    acc2 = jnp.zeros((B * H2o, 2 * CH2), f32)
    for i in range(KH):
        slab = jnp.dot(rsh_ref[i], p1b, preferred_element_type=f32).astype(bf16)
        acc2 = acc2 + jnp.dot(slab, t2_ref[i], preferred_element_type=f32)
    a2b = jnp.maximum(acc2 + b2_ref[...], 0.0).astype(bf16)      # (B*H2o, 2*CH2)

    # 2x2 max-pool #2 fused with the per-sample flatten for the fc head.
    pieces = []
    for y in range(H2p):
        re = jnp.dot(sp2_ref[2 * y], a2b, preferred_element_type=f32)
        ro = jnp.dot(sp2_ref[2 * y + 1], a2b, preferred_element_type=f32)
        r = jnp.maximum(re, ro)
        pieces.append(jnp.maximum(r[:, :CH2], r[:, CH2:]))       # (B, CH2)
    flat = jnp.concatenate(pieces, axis=-1)                      # (B, H2p*CH2)

    # fc head: M = B, every dim lane-padded to 128 (lane-dense output store).
    h = jnp.dot(flat.astype(bf16), wf1_ref[...], preferred_element_type=f32)
    h = jnp.maximum(h + bf1_ref[...], 0.0)
    h = jnp.dot(h.astype(bf16), wf2_ref[...], preferred_element_type=f32)
    h = jnp.maximum(h + bf2_ref[...], 0.0)
    out = jnp.dot(h.astype(bf16), wf3_ref[...], preferred_element_type=f32)
    o_ref[0] = out + bf3_ref[...]


def net_forward(x_nchw, prep, *, imsize, block_b):
    d = net_dims(imsize)
    B = block_b
    n = x_nchw.shape[0]
    n_pad = _round_up(n, B)
    g = n_pad // B
    x = x_nchw
    if n_pad != n:
        x = jnp.pad(x, ((0, n_pad - n), (0, 0), (0, 0), (0, 0)))

    # NCHW -> rows = image rows, cols = channel-major (c*W + x), lane-padded.
    x2d = jnp.transpose(x, (0, 2, 1, 3)).reshape(n_pad, d['H'], CIN * d['W'])
    x2d = jnp.pad(x2d, ((0, 0), (0, 0), (0, d['LW1'] - CIN * d['W'])))
    x2d = x2d.astype(jnp.bfloat16)
    # conv1 row slab: the KH vertically shifted windows, concatenated on lanes
    # (128-aligned pieces) -> conv1 becomes one aligned K = KH*LW1 matmul.
    slab = jnp.concatenate([x2d[:, i:i + d['H1o'], :] for i in range(KH)],
                           axis=-1)
    slab = slab.reshape(g, B * d['H1o'], KH * d['LW1'])

    dims = (B, d['CH1'], d['H2o'], d['H2p'], d['CH2'])
    kern = functools.partial(_lenet_kernel, dims=dims)

    def full(arr):
        shp = arr.shape
        return pl.BlockSpec(shp, lambda i, _nd=len(shp): (0,) * _nd)

    weights = (prep['t1'], prep['b1'], prep['se1'], prep['so1'], prep['rsh'],
               prep['t2'], prep['b2'], prep['sp2'], prep['wf1'], prep['bf1'],
               prep['wf2'], prep['bf2'], prep['wf3'], prep['bf3'])

    out = pl.pallas_call(
        kern,
        out_shape=jax.ShapeDtypeStruct((g, B, FCPAD), jnp.float32),
        grid=(g,),
        in_specs=[pl.BlockSpec((1, B * d['H1o'], KH * d['LW1']),
                               lambda i: (i, 0, 0))] + [full(w) for w in weights],
        out_specs=pl.BlockSpec((1, B, FCPAD), lambda i: (i, 0, 0)),
        compiler_params=pltpu.CompilerParams(
            dimension_semantics=("parallel",)),
    )(slab, *weights)
    return out.reshape(n_pad, FCPAD)[:n, :NCLS]


# ---------------------------------------------------------------------------
# Deterministic synthetic params + a pure-JAX reference for validation.
# ---------------------------------------------------------------------------
def net_init(imsize, key):
    downsample = (imsize - 4) / 2
    if downsample % 2 == 0:
        finalsize = int((downsample - 4) / 2)
    else:
        finalsize = int((downsample - 5) / 2)
    ks = jax.random.split(key, 10)

    def norm(k, shape, scale):
        return scale * jax.random.normal(k, shape, dtype=jnp.float32)

    params = {
        "conv1_w": norm(ks[0], (KH, KW, CIN, C1), 0.10),
        "conv1_b": norm(ks[1], (C1,), 0.10),
        "conv2_w": norm(ks[2], (KH, KW, C1, C2), 0.10),
        "conv2_b": norm(ks[3], (C2,), 0.10),
        "fc1_w": norm(ks[4], (C2 * finalsize * finalsize, FC1), 0.05),
        "fc1_b": norm(ks[5], (FC1,), 0.05),
        "fc2_w": norm(ks[6], (FC1, FC2), 0.05),
        "fc2_b": norm(ks[7], (FC2,), 0.05),
        "fc3_w": norm(ks[8], (FC2, NCLS), 0.05),
        "fc3_b": norm(ks[9], (NCLS,), 0.05),
    }
    return params, finalsize


def reference_forward(x_nchw, params):
    x = jnp.transpose(x_nchw, (0, 2, 3, 1))

    def conv_relu(x, w, b):
        kh, kw, cin, cout = w.shape
        ho, wo = x.shape[1] - kh + 1, x.shape[2] - kw + 1
        cols = [x[:, i:i + ho, j:j + wo, :] for i in range(kh) for j in range(kw)]
        patches = jnp.concatenate(cols, axis=-1)
        out = jnp.einsum('nhwk,kc->nhwc', patches,
                         w.reshape(kh * kw * cin, cout)) + b
        return jnp.maximum(out, 0.0)

    def pool(x):
        n, h, w, c = x.shape
        h2, w2 = h // 2, w // 2
        x = x[:, :2 * h2, :2 * w2, :].reshape(n, h2, 2, w2, 2, c)
        return x.max(axis=(2, 4))

    x = pool(conv_relu(x, params['conv1_w'], params['conv1_b']))
    x = pool(conv_relu(x, params['conv2_w'], params['conv2_b']))
    x = jnp.transpose(x, (0, 3, 1, 2)).reshape(x.shape[0], -1)  # (C, H, W) order
    x = jnp.maximum(x @ params['fc1_w'] + params['fc1_b'], 0.0)
    x = jnp.maximum(x @ params['fc2_w'] + params['fc2_b'], 0.0)
    return x @ params['fc3_w'] + params['fc3_b']


if __name__ == "__main__":
    imsize = 32                       # classic LeNet sizing: finalsize = 5
    batch = 8
    block_b = 4                       # samples per grid step -> grid = 2
    key = jax.random.PRNGKey(0)
    pkey, xkey = jax.random.split(key)
    params, finalsize = net_init(imsize, pkey)
    d = net_dims(imsize)
    assert d['H2p'] == finalsize and d['W2p'] == finalsize

    x = jax.random.normal(xkey, (batch, CIN, imsize, imsize), dtype=jnp.float32)

    prep = prepare_params(params, imsize, block_b)
    fwd = jax.jit(functools.partial(net_forward, imsize=imsize, block_b=block_b))
    out = jax.block_until_ready(fwd(x, prep))

    assert out.shape == (batch, NCLS) and out.dtype == jnp.float32
    ref = jax.block_until_ready(jax.jit(reference_forward)(x, params))
    np.testing.assert_allclose(np.asarray(out), np.asarray(ref),
                               rtol=0.06, atol=0.06)   # bf16-matmul tolerance
    print("KERNEL_OK")
</pallas_src>

<mosaic_0001>
module attributes {stable_mosaic.version = 11 : i64} {
  func.func @_lenet_kernel(%arg0: i32, %arg1: memref<1x112x640xbf16, #tpu.memory_space<vmem>>, %arg2: memref<640x256xbf16, #tpu.memory_space<vmem>>, %arg3: memref<1x256xf32, #tpu.memory_space<vmem>>, %arg4: memref<56x112xbf16, #tpu.memory_space<vmem>>, %arg5: memref<56x112xbf16, #tpu.memory_space<vmem>>, %arg6: memref<5x40x56xbf16, #tpu.memory_space<vmem>>, %arg7: memref<5x128x256xbf16, #tpu.memory_space<vmem>>, %arg8: memref<1x256xf32, #tpu.memory_space<vmem>>, %arg9: memref<10x4x40xbf16, #tpu.memory_space<vmem>>, %arg10: memref<640x128xbf16, #tpu.memory_space<vmem>>, %arg11: memref<1x128xf32, #tpu.memory_space<vmem>>, %arg12: memref<128x128xbf16, #tpu.memory_space<vmem>>, %arg13: memref<1x128xf32, #tpu.memory_space<vmem>>, %arg14: memref<128x128xbf16, #tpu.memory_space<vmem>>, %arg15: memref<1x128xf32, #tpu.memory_space<vmem>>, %arg16: memref<1x4x128xf32, #tpu.memory_space<vmem>>) attributes {dimension_semantics = [#tpu.dimension_semantics<parallel>], iteration_bounds = array<i64: 2>, scalar_prefetch = 0 : i64, scratch_operands = 0 : i64, tpu.core_type = #tpu.core_type<tc>, window_params = [{transform_indices = @transform_0, window_bounds = array<i64: 1, 112, 640>}, {pipeline_mode = #tpu.pipeline_mode<synchronous>, transform_indices = @transform_1, window_bounds = array<i64: 640, 256>}, {pipeline_mode = #tpu.pipeline_mode<synchronous>, transform_indices = @transform_2, window_bounds = array<i64: 1, 256>}, {pipeline_mode = #tpu.pipeline_mode<synchronous>, transform_indices = @transform_3, window_bounds = array<i64: 56, 112>}, {pipeline_mode = #tpu.pipeline_mode<synchronous>, transform_indices = @transform_4, window_bounds = array<i64: 56, 112>}, {pipeline_mode = #tpu.pipeline_mode<synchronous>, transform_indices = @transform_5, window_bounds = array<i64: 5, 40, 56>}, {pipeline_mode = #tpu.pipeline_mode<synchronous>, transform_indices = @transform_6, window_bounds = array<i64: 5, 128, 256>}, {pipeline_mode = #tpu.pipeline_mode<synchronous>, transform_indices = @transform_7, window_bounds = array<i64: 1, 256>}, {pipeline_mode = #tpu.pipeline_mode<synchronous>, transform_indices = @transform_8, window_bounds = array<i64: 10, 4, 40>}, {pipeline_mode = #tpu.pipeline_mode<synchronous>, transform_indices = @transform_9, window_bounds = array<i64: 640, 128>}, {pipeline_mode = #tpu.pipeline_mode<synchronous>, transform_indices = @transform_10, window_bounds = array<i64: 1, 128>}, {pipeline_mode = #tpu.pipeline_mode<synchronous>, transform_indices = @transform_11, window_bounds = array<i64: 128, 128>}, {pipeline_mode = #tpu.pipeline_mode<synchronous>, transform_indices = @transform_12, window_bounds = array<i64: 1, 128>}, {pipeline_mode = #tpu.pipeline_mode<synchronous>, transform_indices = @transform_13, window_bounds = array<i64: 128, 128>}, {pipeline_mode = #tpu.pipeline_mode<synchronous>, transform_indices = @transform_14, window_bounds = array<i64: 1, 128>}, {transform_indices = @transform_15, window_bounds = array<i64: 1, 4, 128>}]} {
    %c0 = arith.constant 0 : index
    %c0_0 = arith.constant 0 : index
    %c0_1 = arith.constant 0 : index
    %0 = vector.load %arg1[%c0, %c0_0, %c0_1] : memref<1x112x640xbf16, #tpu.memory_space<vmem>>, vector<1x112x640xbf16>
    %1 = vector.shape_cast %0 : vector<1x112x640xbf16> to vector<112x640xbf16>
    %c0_2 = arith.constant 0 : index
    %c0_3 = arith.constant 0 : index
    %2 = vector.load %arg2[%c0_2, %c0_3] : memref<640x256xbf16, #tpu.memory_space<vmem>>, vector<640x256xbf16>
    %cst = arith.constant dense<0.000000e+00> : vector<112x256xf32>
    %3 = tpu.matmul %1, %2, %cst {dimension_numbers = #tpu.dot_dimension_numbers<[1], [0], [0], [1], [0, 0, 1, 1], [], []>} : vector<112x640xbf16>, vector<640x256xbf16>, vector<112x256xf32> -> vector<112x256xf32>
    %c0_4 = arith.constant 0 : index
    %c0_5 = arith.constant 0 : index
    %4 = vector.load %arg3[%c0_4, %c0_5] : memref<1x256xf32, #tpu.memory_space<vmem>>, vector<1x256xf32>
    %5 = vector.broadcast %4 : vector<1x256xf32> to vector<112x256xf32>
    %6 = arith.addf %3, %5 : vector<112x256xf32>
    %cst_6 = arith.constant 0.000000e+00 : f32
    %7 = vector.broadcast %cst_6 : f32 to vector<112x256xf32>
    %8 = arith.maximumf %6, %7 : vector<112x256xf32>
    %9 = arith.truncf %8 : vector<112x256xf32> to vector<112x256xbf16>
    %c0_7 = arith.constant 0 : index
    %c0_8 = arith.constant 0 : index
    %10 = vector.load %arg4[%c0_7, %c0_8] : memref<56x112xbf16, #tpu.memory_space<vmem>>, vector<56x112xbf16>
    %cst_9 = arith.constant dense<0.000000e+00> : vector<56x256xf32>
    %11 = tpu.matmul %10, %9, %cst_9 {dimension_numbers = #tpu.dot_dimension_numbers<[1], [0], [0], [1], [0, 0, 1, 1], [], []>} : vector<56x112xbf16>, vector<112x256xbf16>, vector<56x256xf32> -> vector<56x256xf32>
    %c0_10 = arith.constant 0 : index
    %c0_11 = arith.constant 0 : index
    %12 = vector.load %arg5[%c0_10, %c0_11] : memref<56x112xbf16, #tpu.memory_space<vmem>>, vector<56x112xbf16>
    %cst_12 = arith.constant dense<0.000000e+00> : vector<56x256xf32>
    %13 = tpu.matmul %12, %9, %cst_12 {dimension_numbers = #tpu.dot_dimension_numbers<[1], [0], [0], [1], [0, 0, 1, 1], [], []>} : vector<56x112xbf16>, vector<112x256xbf16>, vector<56x256xf32> -> vector<56x256xf32>
    %14 = arith.maximumf %11, %13 : vector<56x256xf32>
    %15 = vector.extract_strided_slice %14 {offsets = [0, 0], sizes = [56, 128], strides = [1, 1]} : vector<56x256xf32> to vector<56x128xf32>
    %16 = vector.extract_strided_slice %14 {offsets = [0, 128], sizes = [56, 128], strides = [1, 1]} : vector<56x256xf32> to vector<56x128xf32>
    %17 = arith.maximumf %15, %16 : vector<56x128xf32>
    %18 = arith.truncf %17 : vector<56x128xf32> to vector<56x128xbf16>
    %cst_13 = arith.constant 0.000000e+00 : f32
    %19 = vector.broadcast %cst_13 : f32 to vector<40x256xf32>
    %c0_14 = arith.constant 0 : index
    %c0_15 = arith.constant 0 : index
    %c0_16 = arith.constant 0 : index
    %20 = vector.load %arg6[%c0_14, %c0_15, %c0_16] : memref<5x40x56xbf16, #tpu.memory_space<vmem>>, vector<1x40x56xbf16>
    %21 = vector.shape_cast %20 : vector<1x40x56xbf16> to vector<40x56xbf16>
    %cst_17 = arith.constant dense<0.000000e+00> : vector<40x128xf32>
    %22 = tpu.matmul %21, %18, %cst_17 {dimension_numbers = #tpu.dot_dimension_numbers<[1], [0], [0], [1], [0, 0, 1, 1], [], []>} : vector<40x56xbf16>, vector<56x128xbf16>, vector<40x128xf32> -> vector<40x128xf32>
    %23 = arith.truncf %22 : vector<40x128xf32> to vector<40x128xbf16>
    %c0_18 = arith.constant 0 : index
    %c0_19 = arith.constant 0 : index
    %c0_20 = arith.constant 0 : index
    %24 = vector.load %arg7[%c0_18, %c0_19, %c0_20] : memref<5x128x256xbf16, #tpu.memory_space<vmem>>, vector<1x128x256xbf16>
    %25 = vector.shape_cast %24 : vector<1x128x256xbf16> to vector<128x256xbf16>
    %cst_21 = arith.constant dense<0.000000e+00> : vector<40x256xf32>
    %26 = tpu.matmul %23, %25, %cst_21 {dimension_numbers = #tpu.dot_dimension_numbers<[1], [0], [0], [1], [0, 0, 1, 1], [], []>} : vector<40x128xbf16>, vector<128x256xbf16>, vector<40x256xf32> -> vector<40x256xf32>
    %27 = arith.addf %19, %26 : vector<40x256xf32>
    %c1 = arith.constant 1 : index
    %c0_22 = arith.constant 0 : index
    %c0_23 = arith.constant 0 : index
    %28 = vector.load %arg6[%c1, %c0_22, %c0_23] : memref<5x40x56xbf16, #tpu.memory_space<vmem>>, vector<1x40x56xbf16>
    %29 = vector.shape_cast %28 : vector<1x40x56xbf16> to vector<40x56xbf16>
    %cst_24 = arith.constant dense<0.000000e+00> : vector<40x128xf32>
    %30 = tpu.matmul %29, %18, %cst_24 {dimension_numbers = #tpu.dot_dimension_numbers<[1], [0], [0], [1], [0, 0, 1, 1], [], []>} : vector<40x56xbf16>, vector<56x128xbf16>, vector<40x128xf32> -> vector<40x128xf32>
    %31 = arith.truncf %30 : vector<40x128xf32> to vector<40x128xbf16>
    %c1_25 = arith.constant 1 : index
    %c0_26 = arith.constant 0 : index
    %c0_27 = arith.constant 0 : index
    %32 = vector.load %arg7[%c1_25, %c0_26, %c0_27] : memref<5x128x256xbf16, #tpu.memory_space<vmem>>, vector<1x128x256xbf16>
    %33 = vector.shape_cast %32 : vector<1x128x256xbf16> to vector<128x256xbf16>
    %cst_28 = arith.constant dense<0.000000e+00> : vector<40x256xf32>
    %34 = tpu.matmul %31, %33, %cst_28 {dimension_numbers = #tpu.dot_dimension_numbers<[1], [0], [0], [1], [0, 0, 1, 1], [], []>} : vector<40x128xbf16>, vector<128x256xbf16>, vector<40x256xf32> -> vector<40x256xf32>
    %35 = arith.addf %27, %34 : vector<40x256xf32>
    %c2 = arith.constant 2 : index
    %c0_29 = arith.constant 0 : index
    %c0_30 = arith.constant 0 : index
    %36 = vector.load %arg6[%c2, %c0_29, %c0_30] : memref<5x40x56xbf16, #tpu.memory_space<vmem>>, vector<1x40x56xbf16>
    %37 = vector.shape_cast %36 : vector<1x40x56xbf16> to vector<40x56xbf16>
    %cst_31 = arith.constant dense<0.000000e+00> : vector<40x128xf32>
    %38 = tpu.matmul %37, %18, %cst_31 {dimension_numbers = #tpu.dot_dimension_numbers<[1], [0], [0], [1], [0, 0, 1, 1], [], []>} : vector<40x56xbf16>, vector<56x128xbf16>, vector<40x128xf32> -> vector<40x128xf32>
    %39 = arith.truncf %38 : vector<40x128xf32> to vector<40x128xbf16>
    %c2_32 = arith.constant 2 : index
    %c0_33 = arith.constant 0 : index
    %c0_34 = arith.constant 0 : index
    %40 = vector.load %arg7[%c2_32, %c0_33, %c0_34] : memref<5x128x256xbf16, #tpu.memory_space<vmem>>, vector<1x128x256xbf16>
    %41 = vector.shape_cast %40 : vector<1x128x256xbf16> to vector<128x256xbf16>
    %cst_35 = arith.constant dense<0.000000e+00> : vector<40x256xf32>
    %42 = tpu.matmul %39, %41, %cst_35 {dimension_numbers = #tpu.dot_dimension_numbers<[1], [0], [0], [1], [0, 0, 1, 1], [], []>} : vector<40x128xbf16>, vector<128x256xbf16>, vector<40x256xf32> -> vector<40x256xf32>
    %43 = arith.addf %35, %42 : vector<40x256xf32>
    %c3 = arith.constant 3 : index
    %c0_36 = arith.constant 0 : index
    %c0_37 = arith.constant 0 : index
    %44 = vector.load %arg6[%c3, %c0_36, %c0_37] : memref<5x40x56xbf16, #tpu.memory_space<vmem>>, vector<1x40x56xbf16>
    %45 = vector.shape_cast %44 : vector<1x40x56xbf16> to vector<40x56xbf16>
    %cst_38 = arith.constant dense<0.000000e+00> : vector<40x128xf32>
    %46 = tpu.matmul %45, %18, %cst_38 {dimension_numbers = #tpu.dot_dimension_numbers<[1], [0], [0], [1], [0, 0, 1, 1], [], []>} : vector<40x56xbf16>, vector<56x128xbf16>, vector<40x128xf32> -> vector<40x128xf32>
    %47 = arith.truncf %46 : vector<40x128xf32> to vector<40x128xbf16>
    %c3_39 = arith.constant 3 : index
    %c0_40 = arith.constant 0 : index
    %c0_41 = arith.constant 0 : index
    %48 = vector.load %arg7[%c3_39, %c0_40, %c0_41] : memref<5x128x256xbf16, #tpu.memory_space<vmem>>, vector<1x128x256xbf16>
    %49 = vector.shape_cast %48 : vector<1x128x256xbf16> to vector<128x256xbf16>
    %cst_42 = arith.constant dense<0.000000e+00> : vector<40x256xf32>
    %50 = tpu.matmul %47, %49, %cst_42 {dimension_numbers = #tpu.dot_dimension_numbers<[1], [0], [0], [1], [0, 0, 1, 1], [], []>} : vector<40x128xbf16>, vector<128x256xbf16>, vector<40x256xf32> -> vector<40x256xf32>
    %51 = arith.addf %43, %50 : vector<40x256xf32>
    %c4 = arith.constant 4 : index
    %c0_43 = arith.constant 0 : index
    %c0_44 = arith.constant 0 : index
    %52 = vector.load %arg6[%c4, %c0_43, %c0_44] : memref<5x40x56xbf16, #tpu.memory_space<vmem>>, vector<1x40x56xbf16>
    %53 = vector.shape_cast %52 : vector<1x40x56xbf16> to vector<40x56xbf16>
    %cst_45 = arith.constant dense<0.000000e+00> : vector<40x128xf32>
    %54 = tpu.matmul %53, %18, %cst_45 {dimension_numbers = #tpu.dot_dimension_numbers<[1], [0], [0], [1], [0, 0, 1, 1], [], []>} : vector<40x56xbf16>, vector<56x128xbf16>, vector<40x128xf32> -> vector<40x128xf32>
    %55 = arith.truncf %54 : vector<40x128xf32> to vector<40x128xbf16>
    %c4_46 = arith.constant 4 : index
    %c0_47 = arith.constant 0 : index
    %c0_48 = arith.constant 0 : index
    %56 = vector.load %arg7[%c4_46, %c0_47, %c0_48] : memref<5x128x256xbf16, #tpu.memory_space<vmem>>, vector<1x128x256xbf16>
    %57 = vector.shape_cast %56 : vector<1x128x256xbf16> to vector<128x256xbf16>
    %cst_49 = arith.constant dense<0.000000e+00> : vector<40x256xf32>
    %58 = tpu.matmul %55, %57, %cst_49 {dimension_numbers = #tpu.dot_dimension_numbers<[1], [0], [0], [1], [0, 0, 1, 1], [], []>} : vector<40x128xbf16>, vector<128x256xbf16>, vector<40x256xf32> -> vector<40x256xf32>
    %59 = arith.addf %51, %58 : vector<40x256xf32>
    %c0_50 = arith.constant 0 : index
    %c0_51 = arith.constant 0 : index
    %60 = vector.load %arg8[%c0_50, %c0_51] : memref<1x256xf32, #tpu.memory_space<vmem>>, vector<1x256xf32>
    %61 = vector.broadcast %60 : vector<1x256xf32> to vector<40x256xf32>
    %62 = arith.addf %59, %61 : vector<40x256xf32>
    %cst_52 = arith.constant 0.000000e+00 : f32
    %63 = vector.broadcast %cst_52 : f32 to vector<40x256xf32>
    %64 = arith.maximumf %62, %63 : vector<40x256xf32>
    %65 = arith.truncf %64 : vector<40x256xf32> to vector<40x256xbf16>
    %c0_53 = arith.constant 0 : index
    %c0_54 = arith.constant 0 : index
    %c0_55 = arith.constant 0 : index
    %66 = vector.load %arg9[%c0_53, %c0_54, %c0_55] : memref<10x4x40xbf16, #tpu.memory_space<vmem>>, vector<1x4x40xbf16>
    %67 = vector.shape_cast %66 : vector<1x4x40xbf16> to vector<4x40xbf16>
    %cst_56 = arith.constant dense<0.000000e+00> : vector<4x256xf32>
    %68 = tpu.matmul %67, %65, %cst_56 {dimension_numbers = #tpu.dot_dimension_numbers<[1], [0], [0], [1], [0, 0, 1, 1], [], []>} : vector<4x40xbf16>, vector<40x256xbf16>, vector<4x256xf32> -> vector<4x256xf32>
    %c1_57 = arith.constant 1 : index
    %c0_58 = arith.constant 0 : index
    %c0_59 = arith.constant 0 : index
    %69 = vector.load %arg9[%c1_57, %c0_58, %c0_59] : memref<10x4x40xbf16, #tpu.memory_space<vmem>>, vector<1x4x40xbf16>
    %70 = vector.shape_cast %69 : vector<1x4x40xbf16> to vector<4x40xbf16>
    %cst_60 = arith.constant dense<0.000000e+00> : vector<4x256xf32>
    %71 = tpu.matmul %70, %65, %cst_60 {dimension_numbers = #tpu.dot_dimension_numbers<[1], [0], [0], [1], [0, 0, 1, 1], [], []>} : vector<4x40xbf16>, vector<40x256xbf16>, vector<4x256xf32> -> vector<4x256xf32>
    %72 = arith.maximumf %68, %71 : vector<4x256xf32>
    %73 = vector.extract_strided_slice %72 {offsets = [0, 0], sizes = [4, 128], strides = [1, 1]} : vector<4x256xf32> to vector<4x128xf32>
    %74 = vector.extract_strided_slice %72 {offsets = [0, 128], sizes = [4, 128], strides = [1, 1]} : vector<4x256xf32> to vector<4x128xf32>
    %75 = arith.maximumf %73, %74 : vector<4x128xf32>
    %c2_61 = arith.constant 2 : index
    %c0_62 = arith.constant 0 : index
    %c0_63 = arith.constant 0 : index
    %76 = vector.load %arg9[%c2_61, %c0_62, %c0_63] : memref<10x4x40xbf16, #tpu.memory_space<vmem>>, vector<1x4x40xbf16>
    %77 = vector.shape_cast %76 : vector<1x4x40xbf16> to vector<4x40xbf16>
    %cst_64 = arith.constant dense<0.000000e+00> : vector<4x256xf32>
    %78 = tpu.matmul %77, %65, %cst_64 {dimension_numbers = #tpu.dot_dimension_numbers<[1], [0], [0], [1], [0, 0, 1, 1], [], []>} : vector<4x40xbf16>, vector<40x256xbf16>, vector<4x256xf32> -> vector<4x256xf32>
    %c3_65 = arith.constant 3 : index
    %c0_66 = arith.constant 0 : index
    %c0_67 = arith.constant 0 : index
    %79 = vector.load %arg9[%c3_65, %c0_66, %c0_67] : memref<10x4x40xbf16, #tpu.memory_space<vmem>>, vector<1x4x40xbf16>
    %80 = vector.shape_cast %79 : vector<1x4x40xbf16> to vector<4x40xbf16>
    %cst_68 = arith.constant dense<0.000000e+00> : vector<4x256xf32>
    %81 = tpu.matmul %80, %65, %cst_68 {dimension_numbers = #tpu.dot_dimension_numbers<[1], [0], [0], [1], [0, 0, 1, 1], [], []>} : vector<4x40xbf16>, vector<40x256xbf16>, vector<4x256xf32> -> vector<4x256xf32>
    %82 = arith.maximumf %78, %81 : vector<4x256xf32>
    %83 = vector.extract_strided_slice %82 {offsets = [0, 0], sizes = [4, 128], strides = [1, 1]} : vector<4x256xf32> to vector<4x128xf32>
    %84 = vector.extract_strided_slice %82 {offsets = [0, 128], sizes = [4, 128], strides = [1, 1]} : vector<4x256xf32> to vector<4x128xf32>
    %85 = arith.maximumf %83, %84 : vector<4x128xf32>
    %c4_69 = arith.constant 4 : index
    %c0_70 = arith.constant 0 : index
    %c0_71 = arith.constant 0 : index
    %86 = vector.load %arg9[%c4_69, %c0_70, %c0_71] : memref<10x4x40xbf16, #tpu.memory_space<vmem>>, vector<1x4x40xbf16>
    %87 = vector.shape_cast %86 : vector<1x4x40xbf16> to vector<4x40xbf16>
    %cst_72 = arith.constant dense<0.000000e+00> : vector<4x256xf32>
    %88 = tpu.matmul %87, %65, %cst_72 {dimension_numbers = #tpu.dot_dimension_numbers<[1], [0], [0], [1], [0, 0, 1, 1], [], []>} : vector<4x40xbf16>, vector<40x256xbf16>, vector<4x256xf32> -> vector<4x256xf32>
    %c5 = arith.constant 5 : index
    %c0_73 = arith.constant 0 : index
    %c0_74 = arith.constant 0 : index
    %89 = vector.load %arg9[%c5, %c0_73, %c0_74] : memref<10x4x40xbf16, #tpu.memory_space<vmem>>, vector<1x4x40xbf16>
    %90 = vector.shape_cast %89 : vector<1x4x40xbf16> to vector<4x40xbf16>
    %cst_75 = arith.constant dense<0.000000e+00> : vector<4x256xf32>
    %91 = tpu.matmul %90, %65, %cst_75 {dimension_numbers = #tpu.dot_dimension_numbers<[1], [0], [0], [1], [0, 0, 1, 1], [], []>} : vector<4x40xbf16>, vector<40x256xbf16>, vector<4x256xf32> -> vector<4x256xf32>
    %92 = arith.maximumf %88, %91 : vector<4x256xf32>
    %93 = vector.extract_strided_slice %92 {offsets = [0, 0], sizes = [4, 128], strides = [1, 1]} : vector<4x256xf32> to vector<4x128xf32>
    %94 = vector.extract_strided_slice %92 {offsets = [0, 128], sizes = [4, 128], strides = [1, 1]} : vector<4x256xf32> to vector<4x128xf32>
    %95 = arith.maximumf %93, %94 : vector<4x128xf32>
    %c6 = arith.constant 6 : index
    %c0_76 = arith.constant 0 : index
    %c0_77 = arith.constant 0 : index
    %96 = vector.load %arg9[%c6, %c0_76, %c0_77] : memref<10x4x40xbf16, #tpu.memory_space<vmem>>, vector<1x4x40xbf16>
    %97 = vector.shape_cast %96 : vector<1x4x40xbf16> to vector<4x40xbf16>
    %cst_78 = arith.constant dense<0.000000e+00> : vector<4x256xf32>
    %98 = tpu.matmul %97, %65, %cst_78 {dimension_numbers = #tpu.dot_dimension_numbers<[1], [0], [0], [1], [0, 0, 1, 1], [], []>} : vector<4x40xbf16>, vector<40x256xbf16>, vector<4x256xf32> -> vector<4x256xf32>
    %c7 = arith.constant 7 : index
    %c0_79 = arith.constant 0 : index
    %c0_80 = arith.constant 0 : index
    %99 = vector.load %arg9[%c7, %c0_79, %c0_80] : memref<10x4x40xbf16, #tpu.memory_space<vmem>>, vector<1x4x40xbf16>
    %100 = vector.shape_cast %99 : vector<1x4x40xbf16> to vector<4x40xbf16>
    %cst_81 = arith.constant dense<0.000000e+00> : vector<4x256xf32>
    %101 = tpu.matmul %100, %65, %cst_81 {dimension_numbers = #tpu.dot_dimension_numbers<[1], [0], [0], [1], [0, 0, 1, 1], [], []>} : vector<4x40xbf16>, vector<40x256xbf16>, vector<4x256xf32> -> vector<4x256xf32>
    %102 = arith.maximumf %98, %101 : vector<4x256xf32>
    %103 = vector.extract_strided_slice %102 {offsets = [0, 0], sizes = [4, 128], strides = [1, 1]} : vector<4x256xf32> to vector<4x128xf32>
    %104 = vector.extract_strided_slice %102 {offsets = [0, 128], sizes = [4, 128], strides = [1, 1]} : vector<4x256xf32> to vector<4x128xf32>
    %105 = arith.maximumf %103, %104 : vector<4x128xf32>
    %c8 = arith.constant 8 : index
    %c0_82 = arith.constant 0 : index
    %c0_83 = arith.constant 0 : index
    %106 = vector.load %arg9[%c8, %c0_82, %c0_83] : memref<10x4x40xbf16, #tpu.memory_space<vmem>>, vector<1x4x40xbf16>
    %107 = vector.shape_cast %106 : vector<1x4x40xbf16> to vector<4x40xbf16>
    %cst_84 = arith.constant dense<0.000000e+00> : vector<4x256xf32>
    %108 = tpu.matmul %107, %65, %cst_84 {dimension_numbers = #tpu.dot_dimension_numbers<[1], [0], [0], [1], [0, 0, 1, 1], [], []>} : vector<4x40xbf16>, vector<40x256xbf16>, vector<4x256xf32> -> vector<4x256xf32>
    %c9 = arith.constant 9 : index
    %c0_85 = arith.constant 0 : index
    %c0_86 = arith.constant 0 : index
    %109 = vector.load %arg9[%c9, %c0_85, %c0_86] : memref<10x4x40xbf16, #tpu.memory_space<vmem>>, vector<1x4x40xbf16>
    %110 = vector.shape_cast %109 : vector<1x4x40xbf16> to vector<4x40xbf16>
    %cst_87 = arith.constant dense<0.000000e+00> : vector<4x256xf32>
    %111 = tpu.matmul %110, %65, %cst_87 {dimension_numbers = #tpu.dot_dimension_numbers<[1], [0], [0], [1], [0, 0, 1, 1], [], []>} : vector<4x40xbf16>, vector<40x256xbf16>, vector<4x256xf32> -> vector<4x256xf32>
    %112 = arith.maximumf %108, %111 : vector<4x256xf32>
    %113 = vector.extract_strided_slice %112 {offsets = [0, 0], sizes = [4, 128], strides = [1, 1]} : vector<4x256xf32> to vector<4x128xf32>
    %114 = vector.extract_strided_slice %112 {offsets = [0, 128], sizes = [4, 128], strides = [1, 1]} : vector<4x256xf32> to vector<4x128xf32>
    %115 = arith.maximumf %113, %114 : vector<4x128xf32>
    %116 = tpu.concatenate %75, %85, %95, %105, %115 in 1 : vector<4x128xf32>, vector<4x128xf32>, vector<4x128xf32>, vector<4x128xf32>, vector<4x128xf32> -> vector<4x640xf32>
    %117 = arith.truncf %116 : vector<4x640xf32> to vector<4x640xbf16>
    %c0_88 = arith.constant 0 : index
    %c0_89 = arith.constant 0 : index
    %118 = vector.load %arg10[%c0_88, %c0_89] : memref<640x128xbf16, #tpu.memory_space<vmem>>, vector<640x128xbf16>
    %cst_90 = arith.constant dense<0.000000e+00> : vector<4x128xf32>
    %119 = tpu.matmul %117, %118, %cst_90 {dimension_numbers = #tpu.dot_dimension_numbers<[1], [0], [0], [1], [0, 0, 1, 1], [], []>} : vector<4x640xbf16>, vector<640x128xbf16>, vector<4x128xf32> -> vector<4x128xf32>
    %c0_91 = arith.constant 0 : index
    %c0_92 = arith.constant 0 : index
    %120 = vector.load %arg11[%c0_91, %c0_92] : memref<1x128xf32, #tpu.memory_space<vmem>>, vector<1x128xf32>
    %121 = vector.broadcast %120 : vector<1x128xf32> to vector<4x128xf32>
    %122 = arith.addf %119, %121 : vector<4x128xf32>
    %cst_93 = arith.constant 0.000000e+00 : f32
    %123 = vector.broadcast %cst_93 : f32 to vector<4x128xf32>
    %124 = arith.maximumf %122, %123 : vector<4x128xf32>
    %125 = arith.truncf %124 : vector<4x128xf32> to vector<4x128xbf16>
    %c0_94 = arith.constant 0 : index
    %c0_95 = arith.constant 0 : index
    %126 = vector.load %arg12[%c0_94, %c0_95] : memref<128x128xbf16, #tpu.memory_space<vmem>>, vector<128x128xbf16>
    %cst_96 = arith.constant dense<0.000000e+00> : vector<4x128xf32>
    %127 = tpu.matmul %125, %126, %cst_96 {dimension_numbers = #tpu.dot_dimension_numbers<[1], [0], [0], [1], [0, 0, 1, 1], [], []>} : vector<4x128xbf16>, vector<128x128xbf16>, vector<4x128xf32> -> vector<4x128xf32>
    %c0_97 = arith.constant 0 : index
    %c0_98 = arith.constant 0 : index
    %128 = vector.load %arg13[%c0_97, %c0_98] : memref<1x128xf32, #tpu.memory_space<vmem>>, vector<1x128xf32>
    %129 = vector.broadcast %128 : vector<1x128xf32> to vector<4x128xf32>
    %130 = arith.addf %127, %129 : vector<4x128xf32>
    %cst_99 = arith.constant 0.000000e+00 : f32
    %131 = vector.broadcast %cst_99 : f32 to vector<4x128xf32>
    %132 = arith.maximumf %130, %131 : vector<4x128xf32>
    %133 = arith.truncf %132 : vector<4x128xf32> to vector<4x128xbf16>
    %c0_100 = arith.constant 0 : index
    %c0_101 = arith.constant 0 : index
    %134 = vector.load %arg14[%c0_100, %c0_101] : memref<128x128xbf16, #tpu.memory_space<vmem>>, vector<128x128xbf16>
    %cst_102 = arith.constant dense<0.000000e+00> : vector<4x128xf32>
    %135 = tpu.matmul %133, %134, %cst_102 {dimension_numbers = #tpu.dot_dimension_numbers<[1], [0], [0], [1], [0, 0, 1, 1], [], []>} : vector<4x128xbf16>, vector<128x128xbf16>, vector<4x128xf32> -> vector<4x128xf32>
    %c0_103 = arith.constant 0 : index
    %c0_104 = arith.constant 0 : index
    %136 = vector.load %arg15[%c0_103, %c0_104] : memref<1x128xf32, #tpu.memory_space<vmem>>, vector<1x128xf32>
    %137 = vector.broadcast %136 : vector<1x128xf32> to vector<4x128xf32>
    %138 = arith.addf %135, %137 : vector<4x128xf32>
    %c0_105 = arith.constant 0 : index
    %c0_106 = arith.constant 0 : index
    %c0_107 = arith.constant 0 : index
    %139 = vector.load %arg16[%c0_105, %c0_106, %c0_107] : memref<1x4x128xf32, #tpu.memory_space<vmem>>, vector<1x4x128xf32>
    %140 = vector.shape_cast %139 : vector<1x4x128xf32> to vector<4x128xf32>
    %141 = vector.shape_cast %138 : vector<4x128xf32> to vector<1x4x128xf32>
    tpu.vector_store %arg16[%c0_105, %c0_106, %c0_107], %141 {strides = array<i32>} : memref<1x4x128xf32, #tpu.memory_space<vmem>>, vector<1x4x128xf32>,
    return
  }
  func.func @transform_0(%arg0: i32) -> (i32, i32, i32) {
    %c0_i32 = arith.constant 0 : i32
    %c0_i32_0 = arith.constant 0 : i32
    %c0_i32_1 = arith.constant 0 : i32
    return %arg0, %c0_i32, %c0_i32_0 : i32, i32, i32
  }
  func.func @transform_1(%arg0: i32) -> (i32, i32) {
    %c0_i32 = arith.constant 0 : i32
    %c0_i32_0 = arith.constant 0 : i32
    %c0_i32_1 = arith.constant 0 : i32
    return %c0_i32, %c0_i32_0 : i32, i32
  }
  func.func @transform_2(%arg0: i32) -> (i32, i32) {
    %c0_i32 = arith.constant 0 : i32
    %c0_i32_0 = arith.constant 0 : i32
    %c0_i32_1 = arith.constant 0 : i32
    return %c0_i32, %c0_i32_0 : i32, i32
  }
  func.func @transform_3(%arg0: i32) -> (i32, i32) {
    %c0_i32 = arith.constant 0 : i32
    %c0_i32_0 = arith.constant 0 : i32
    %c0_i32_1 = arith.constant 0 : i32
    return %c0_i32, %c0_i32_0 : i32, i32
  }
  func.func @transform_4(%arg0: i32) -> (i32, i32) {
    %c0_i32 = arith.constant 0 : i32
    %c0_i32_0 = arith.constant 0 : i32
    %c0_i32_1 = arith.constant 0 : i32
    return %c0_i32, %c0_i32_0 : i32, i32
  }
  func.func @transform_5(%arg0: i32) -> (i32, i32, i32) {
    %c0_i32 = arith.constant 0 : i32
    %c0_i32_0 = arith.constant 0 : i32
    %c0_i32_1 = arith.constant 0 : i32
    %c0_i32_2 = arith.constant 0 : i32
    return %c0_i32, %c0_i32_0, %c0_i32_1 : i32, i32, i32
  }
  func.func @transform_6(%arg0: i32) -> (i32, i32, i32) {
    %c0_i32 = arith.constant 0 : i32
    %c0_i32_0 = arith.constant 0 : i32
    %c0_i32_1 = arith.constant 0 : i32
    %c0_i32_2 = arith.constant 0 : i32
    return %c0_i32, %c0_i32_0, %c0_i32_1 : i32, i32, i32
  }
  func.func @transform_7(%arg0: i32) -> (i32, i32) {
    %c0_i32 = arith.constant 0 : i32
    %c0_i32_0 = arith.constant 0 : i32
    %c0_i32_1 = arith.constant 0 : i32
    return %c0_i32, %c0_i32_0 : i32, i32
  }
  func.func @transform_8(%arg0: i32) -> (i32, i32, i32) {
    %c0_i32 = arith.constant 0 : i32
    %c0_i32_0 = arith.constant 0 : i32
    %c0_i32_1 = arith.constant 0 : i32
    %c0_i32_2 = arith.constant 0 : i32
    return %c0_i32, %c0_i32_0, %c0_i32_1 : i32, i32, i32
  }
  func.func @transform_9(%arg0: i32) -> (i32, i32) {
    %c0_i32 = arith.constant 0 : i32
    %c0_i32_0 = arith.constant 0 : i32
    %c0_i32_1 = arith.constant 0 : i32
    return %c0_i32, %c0_i32_0 : i32, i32
  }
  func.func @transform_10(%arg0: i32) -> (i32, i32) {
    %c0_i32 = arith.constant 0 : i32
    %c0_i32_0 = arith.constant 0 : i32
    %c0_i32_1 = arith.constant 0 : i32
    return %c0_i32, %c0_i32_0 : i32, i32
  }
  func.func @transform_11(%arg0: i32) -> (i32, i32) {
    %c0_i32 = arith.constant 0 : i32
    %c0_i32_0 = arith.constant 0 : i32
    %c0_i32_1 = arith.constant 0 : i32
    return %c0_i32, %c0_i32_0 : i32, i32
  }
  func.func @transform_12(%arg0: i32) -> (i32, i32) {
    %c0_i32 = arith.constant 0 : i32
    %c0_i32_0 = arith.constant 0 : i32
    %c0_i32_1 = arith.constant 0 : i32
    return %c0_i32, %c0_i32_0 : i32, i32
  }
  func.func @transform_13(%arg0: i32) -> (i32, i32) {
    %c0_i32 = arith.constant 0 : i32
    %c0_i32_0 = arith.constant 0 : i32
    %c0_i32_1 = arith.constant 0 : i32
    return %c0_i32, %c0_i32_0 : i32, i32
  }
  func.func @transform_14(%arg0: i32) -> (i32, i32) {
    %c0_i32 = arith.constant 0 : i32
    %c0_i32_0 = arith.constant 0 : i32
    %c0_i32_1 = arith.constant 0 : i32
    return %c0_i32, %c0_i32_0 : i32, i32
  }
  func.func @transform_15(%arg0: i32) -> (i32, i32, i32) {
    %c0_i32 = arith.constant 0 : i32
    %c0_i32_0 = arith.constant 0 : i32
    %c0_i32_1 = arith.constant 0 : i32
    return %arg0, %c0_i32, %c0_i32_0 : i32, i32, i32
  }
}

</mosaic_0001>

<llo_original>
// kernel: net_forward.1
$region0: #{net_forward.1}
  #allocation0 [shape = 'u32[]', space=smem, size = 0x4, offset = 0x4, fixed_abs, tag = 'smem constant byte address 0x4 - core index']
  #allocation1 [shape = 'u32[144,128]{1,0:T(1,128)}', space=vmem, size = 0x12000, scoped, tag = 'internal scratch']
  %s0 = inlined_call_operand.vmem [shape: bf16[2,112,640], index: 0, kind: input, shape index: {}]
  %s1 = inlined_call_operand.vmem [shape: bf16[640,256], index: 1, kind: input, shape index: {}]
  %s2 = inlined_call_operand.vmem [shape: f32[1,256], index: 2, kind: input, shape index: {}]
  %s3 = inlined_call_operand.vmem [shape: bf16[56,112], index: 3, kind: input, shape index: {}]
  %s4 = inlined_call_operand.vmem [shape: bf16[56,112], index: 4, kind: input, shape index: {}]
  %s5 = inlined_call_operand.vmem [shape: bf16[5,40,56], index: 5, kind: input, shape index: {}]
  %s6 = inlined_call_operand.vmem [shape: bf16[5,128,256], index: 6, kind: input, shape index: {}]
  %s7 = inlined_call_operand.vmem [shape: f32[1,256], index: 7, kind: input, shape index: {}]
  %s8 = inlined_call_operand.vmem [shape: bf16[10,4,40], index: 8, kind: input, shape index: {}]
  %s9 = inlined_call_operand.vmem [shape: bf16[640,128], index: 9, kind: input, shape index: {}]
  %s10 = inlined_call_operand.vmem [shape: f32[1,128], index: 10, kind: input, shape index: {}]
  %s11 = inlined_call_operand.vmem [shape: bf16[128,128], index: 11, kind: input, shape index: {}]
  %s12 = inlined_call_operand.vmem [shape: f32[1,128], index: 12, kind: input, shape index: {}]
  %s13 = inlined_call_operand.vmem [shape: bf16[128,128], index: 13, kind: input, shape index: {}]
  %s14 = inlined_call_operand.vmem [shape: f32[1,128], index: 14, kind: input, shape index: {}]
  %s15 = inlined_call_operand.vmem [shape: f32[2,4,128], index: 15, kind: output, shape index: {}]
  %s16 = sld [smem:[#allocation0]]
  $region93: #{net_forward.1} parent=0
    _
  %s18 = ssub.s32 1, %s16
  %s19 = scalar_select 0, %s18, %s16
  loop: start=0, step=1, limit=4
  $region2: #{net_forward.1} parent=0 // loop_pre_header
    _
  $region3: #{net_forward.1} parent=0 // loop_header
    %s21 = sphi 0, %s25
    %p22 = scmp.ge.s32.totalorder %s21, 4
    %s31 = sphi 0, %s33
    %s34 = sphi 0, %s31
    %s35 = sphi 0, %s34
    %s51 = sphi 0, %s35
    %s55 = sphi 0, %s55
    %s57 = sphi 0, %s55
    %s58 = sphi 0, %s57
    %s72 = sphi 0, %s58
    %s76 = sphi 0, %s76
    %s78 = sphi 0, %s76
    %s79 = sphi 0, %s78
    %s93 = sphi 0, %s79
    %s97 = sphi 0, %s97
    %s99 = sphi 0, %s97
    %s100 = sphi 0, %s99
    %s114 = sphi 0, %s100
    %s118 = sphi 0, %s118
    %s120 = sphi 0, %s118
    %s121 = sphi 0, %s120
    %s135 = sphi 0, %s121
    %s139 = sphi 0, %s139
    %s141 = sphi 0, %s139
    %s142 = sphi 0, %s141
    %s156 = sphi 0, %s142
    %s160 = sphi 0, %s160
    %s162 = sphi 0, %s160
    %s163 = sphi 0, %s162
    %s177 = sphi 0, %s163
    %s181 = sphi 0, %s181
    %s183 = sphi 0, %s181
    %s184 = sphi 0, %s183
    %s198 = sphi 0, %s184
    %s202 = sphi 0, %s202
    %s204 = sphi 0, %s202
    %s205 = sphi 0, %s204
    %s219 = sphi 0, %s205
    %s223 = sphi 0, %s223
    %s225 = sphi 0, %s223
    %s226 = sphi 0, %s225
    %s240 = sphi 0, %s226
    %s244 = sphi 0, %s244
    %s246 = sphi 0, %s244
    %s247 = sphi 0, %s246
    %s261 = sphi 0, %s247
    %s265 = sphi 0, %s265
    %s267 = sphi 0, %s265
    %s268 = sphi 0, %s267
    %s282 = sphi 0, %s268
    %s286 = sphi 0, %s286
    %s288 = sphi 0, %s286
    %s289 = sphi 0, %s288
    %s303 = sphi 0, %s289
    %s307 = sphi 0, %s307
    %s309 = sphi 0, %s307
    %s310 = sphi 0, %s309
    %s324 = sphi 0, %s310
    %s328 = sphi 0, %s328
    %s330 = sphi 0, %s328
    %s331 = sphi 0, %s330
    %s345 = sphi 0, %s331
    %s351 = sphi 0, %s353
    %s354 = sphi 0, %s351
    %s355 = sphi 0, %s354
    %s371 = sphi 0, %s355
  $region4: #{net_forward.1} parent=0 // loop_header_branch
    %24 = sbr.rel (%p22) target = $region8
  $region5: #{net_forward.1} parent=0 // loop_body
    %s26 = ssub.s32 %s21, 1
    %s27 = ssub.s32 %s21, 2
    %s28 = sadd.s32 %s21, 1
    %s29 = ssub.s32 %s21, %s28
    %p30 = scmp.eq.s32.totalorder %s29, 0
    %s32 = sadd.s32 %s31, 1
    %s33 = scalar_select %p30, %s31, %s32
    %p36 = pneg %p30
    %p37 = scmp.eq.s32.totalorder %s21, 1
    %p38 = por %p36, %p37
    %p39 = scmp.ne.s32.totalorder %s31, %s34
    %p40 = scmp.eq.s32.totalorder %s21, 0
    %p41 = por %p39, %p40
    %p42 = scmp.ne.s32.totalorder %s31, %s34
    %p43 = scmp.eq.s32.totalorder %s26, 1
    %p44 = por %p42, %p43
    %p45 = scmp.ne.s32.totalorder %s34, %s35
    %p46 = scmp.eq.s32.totalorder %s26, 0
    %p47 = por %p45, %p46
    %p48 = scmp.ne.s32.totalorder %s34, %s35
    %p49 = scmp.eq.s32.totalorder %s27, 1
    %p50 = por %p48, %p49
    %p52 = scmp.ne.s32.totalorder %s35, %s51
    %p53 = scmp.eq.s32.totalorder %s27, 0
    %p54 = por %p52, %p53
    %s56 = sadd.s32 %s55, 1
    %p59 = scmp.eq.s32.totalorder %s21, 1
    %p60 = scmp.ne.s32.totalorder %s55, %s57
    %p61 = scmp.eq.s32.totalorder %s21, 0
    %p62 = por %p60, %p61
    %p63 = scmp.ne.s32.totalorder %s55, %s57
    %p64 = scmp.eq.s32.totalorder %s26, 1
    %p65 = por %p63, %p64
    %p66 = scmp.ne.s32.totalorder %s57, %s58
    %p67 = scmp.eq.s32.totalorder %s26, 0
    %p68 = por %p66, %p67
    %p69 = scmp.ne.s32.totalorder %s57, %s58
    %p70 = scmp.eq.s32.totalorder %s27, 1
    %p71 = por %p69, %p70
    %p73 = scmp.ne.s32.totalorder %s58, %s72
    %p74 = scmp.eq.s32.totalorder %s27, 0
    %p75 = por %p73, %p74
    %s77 = sadd.s32 %s76, 1
    %p80 = scmp.eq.s32.totalorder %s21, 1
    %p81 = scmp.ne.s32.totalorder %s76, %s78
    %p82 = scmp.eq.s32.totalorder %s21, 0
    %p83 = por %p81, %p82
    %p84 = scmp.ne.s32.totalorder %s76, %s78
    %p85 = scmp.eq.s32.totalorder %s26, 1
    %p86 = por %p84, %p85
    %p87 = scmp.ne.s32.totalorder %s78, %s79
    %p88 = scmp.eq.s32.totalorder %s26, 0
    %p89 = por %p87, %p88
    %p90 = scmp.ne.s32.totalorder %s78, %s79
    %p91 = scmp.eq.s32.totalorder %s27, 1
    %p92 = por %p90, %p91
    %p94 = scmp.ne.s32.totalorder %s79, %s93
    %p95 = scmp.eq.s32.totalorder %s27, 0
    %p96 = por %p94, %p95
    %s98 = sadd.s32 %s97, 1
    %p101 = scmp.eq.s32.totalorder %s21, 1
    %p102 = scmp.ne.s32.totalorder %s97, %s99
    %p103 = scmp.eq.s32.totalorder %s21, 0
    %p104 = por %p102, %p103
    %p105 = scmp.ne.s32.totalorder %s97, %s99
    %p106 = scmp.eq.s32.totalorder %s26, 1
    %p107 = por %p105, %p106
    %p108 = scmp.ne.s32.totalorder %s99, %s100
    %p109 = scmp.eq.s32.totalorder %s26, 0
    %p110 = por %p108, %p109
    %p111 = scmp.ne.s32.totalorder %s99, %s100
    %p112 = scmp.eq.s32.totalorder %s27, 1
    %p113 = por %p111, %p112
    %p115 = scmp.ne.s32.totalorder %s100, %s114
    %p116 = scmp.eq.s32.totalorder %s27, 0
    %p117 = por %p115, %p116
    %s119 = sadd.s32 %s118, 1
    %p122 = scmp.eq.s32.totalorder %s21, 1
    %p123 = scmp.ne.s32.totalorder %s118, %s120
    %p124 = scmp.eq.s32.totalorder %s21, 0
    %p125 = por %p123, %p124
    %p126 = scmp.ne.s32.totalorder %s118, %s120
    %p127 = scmp.eq.s32.totalorder %s26, 1
    %p128 = por %p126, %p127
    %p129 = scmp.ne.s32.totalorder %s120, %s121
    %p130 = scmp.eq.s32.totalorder %s26, 0
    %p131 = por %p129, %p130
    %p132 = scmp.ne.s32.totalorder %s120, %s121
    %p133 = scmp.eq.s32.totalorder %s27, 1
    %p134 = por %p132, %p133
    %p136 = scmp.ne.s32.totalorder %s121, %s135
    %p137 = scmp.eq.s32.totalorder %s27, 0
    %p138 = por %p136, %p137
    %s140 = sadd.s32 %s139, 1
    %p143 = scmp.eq.s32.totalorder %s21, 1
    %p144 = scmp.ne.s32.totalorder %s139, %s141
    %p145 = scmp.eq.s32.totalorder %s21, 0
    %p146 = por %p144, %p145
    %p147 = scmp.ne.s32.totalorder %s139, %s141
    %p148 = scmp.eq.s32.totalorder %s26, 1
    %p149 = por %p147, %p148
    %p150 = scmp.ne.s32.totalorder %s141, %s142
    %p151 = scmp.eq.s32.totalorder %s26, 0
    %p152 = por %p150, %p151
    %p153 = scmp.ne.s32.totalorder %s141, %s142
    %p154 = scmp.eq.s32.totalorder %s27, 1
    %p155 = por %p153, %p154
    %p157 = scmp.ne.s32.totalorder %s142, %s156
    %p158 = scmp.eq.s32.totalorder %s27, 0
    %p159 = por %p157, %p158
    %s161 = sadd.s32 %s160, 1
    %p164 = scmp.eq.s32.totalorder %s21, 1
    %p165 = scmp.ne.s32.totalorder %s160, %s162
    %p166 = scmp.eq.s32.totalorder %s21, 0
    %p167 = por %p165, %p166
    %p168 = scmp.ne.s32.totalorder %s160, %s162
    %p169 = scmp.eq.s32.totalorder %s26, 1
    %p170 = por %p168, %p169
    %p171 = scmp.ne.s32.totalorder %s162, %s163
    %p172 = scmp.eq.s32.totalorder %s26, 0
    %p173 = por %p171, %p172
    %p174 = scmp.ne.s32.totalorder %s162, %s163
    %p175 = scmp.eq.s32.totalorder %s27, 1
    %p176 = por %p174, %p175
    %p178 = scmp.ne.s32.totalorder %s163, %s177
    %p179 = scmp.eq.s32.totalorder %s27, 0
    %p180 = por %p178, %p179
    %s182 = sadd.s32 %s181, 1
    %p185 = scmp.eq.s32.totalorder %s21, 1
    %p186 = scmp.ne.s32.totalorder %s181, %s183
    %p187 = scmp.eq.s32.totalorder %s21, 0
    %p188 = por %p186, %p187
    %p189 = scmp.ne.s32.totalorder %s181, %s183
    %p190 = scmp.eq.s32.totalorder %s26, 1
    %p191 = por %p189, %p190
    %p192 = scmp.ne.s32.totalorder %s183, %s184
    %p193 = scmp.eq.s32.totalorder %s26, 0
    %p194 = por %p192, %p193
    %p195 = scmp.ne.s32.totalorder %s183, %s184
    %p196 = scmp.eq.s32.totalorder %s27, 1
    %p197 = por %p195, %p196
    %p199 = scmp.ne.s32.totalorder %s184, %s198
    %p200 = scmp.eq.s32.totalorder %s27, 0
    %p201 = por %p199, %p200
    %s203 = sadd.s32 %s202, 1
    %p206 = scmp.eq.s32.totalorder %s21, 1
    %p207 = scmp.ne.s32.totalorder %s202, %s204
    %p208 = scmp.eq.s32.totalorder %s21, 0
    %p209 = por %p207, %p208
    %p210 = scmp.ne.s32.totalorder %s202, %s204
    %p211 = scmp.eq.s32.totalorder %s26, 1
    %p212 = por %p210, %p211
    %p213 = scmp.ne.s32.totalorder %s204, %s205
    %p214 = scmp.eq.s32.totalorder %s26, 0
    %p215 = por %p213, %p214
    %p216 = scmp.ne.s32.totalorder %s204, %s205
    %p217 = scmp.eq.s32.totalorder %s27, 1
    %p218 = por %p216, %p217
    %p220 = scmp.ne.s32.totalorder %s205, %s219
    %p221 = scmp.eq.s32.totalorder %s27, 0
    %p222 = por %p220, %p221
    %s224 = sadd.s32 %s223, 1
    %p227 = scmp.eq.s32.totalorder %s21, 1
    %p228 = scmp.ne.s32.totalorder %s223, %s225
    %p229 = scmp.eq.s32.totalorder %s21, 0
    %p230 = por %p228, %p229
    %p231 = scmp.ne.s32.totalorder %s223, %s225
    %p232 = scmp.eq.s32.totalorder %s26, 1
    %p233 = por %p231, %p232
    %p234 = scmp.ne.s32.totalorder %s225, %s226
    %p235 = scmp.eq.s32.totalorder %s26, 0
    %p236 = por %p234, %p235
    %p237 = scmp.ne.s32.totalorder %s225, %s226
    %p238 = scmp.eq.s32.totalorder %s27, 1
    %p239 = por %p237, %p238
    %p241 = scmp.ne.s32.totalorder %s226, %s240
    %p242 = scmp.eq.s32.totalorder %s27, 0
    %p243 = por %p241, %p242
    %s245 = sadd.s32 %s244, 1
    %p248 = scmp.eq.s32.totalorder %s21, 1
    %p249 = scmp.ne.s32.totalorder %s244, %s246
    %p250 = scmp.eq.s32.totalorder %s21, 0
    %p251 = por %p249, %p250
    %p252 = scmp.ne.s32.totalorder %s244, %s246
    %p253 = scmp.eq.s32.totalorder %s26, 1
    %p254 = por %p252, %p253
    %p255 = scmp.ne.s32.totalorder %s246, %s247
    %p256 = scmp.eq.s32.totalorder %s26, 0
    %p257 = por %p255, %p256
    %p258 = scmp.ne.s32.totalorder %s246, %s247
    %p259 = scmp.eq.s32.totalorder %s27, 1
    %p260 = por %p258, %p259
    %p262 = scmp.ne.s32.totalorder %s247, %s261
    %p263 = scmp.eq.s32.totalorder %s27, 0
    %p264 = por %p262, %p263
    %s266 = sadd.s32 %s265, 1
    %p269 = scmp.eq.s32.totalorder %s21, 1
    %p270 = scmp.ne.s32.totalorder %s265, %s267
    %p271 = scmp.eq.s32.totalorder %s21, 0
    %p272 = por %p270, %p271
    %p273 = scmp.ne.s32.totalorder %s265, %s267
    %p274 = scmp.eq.s32.totalorder %s26, 1
    %p275 = por %p273, %p274
    %p276 = scmp.ne.s32.totalorder %s267, %s268
    %p277 = scmp.eq.s32.totalorder %s26, 0
    %p278 = por %p276, %p277
    %p279 = scmp.ne.s32.totalorder %s267, %s268
    %p280 = scmp.eq.s32.totalorder %s27, 1
    %p281 = por %p279, %p280
    %p283 = scmp.ne.s32.totalorder %s268, %s282
    %p284 = scmp.eq.s32.totalorder %s27, 0
    %p285 = por %p283, %p284
    %s287 = sadd.s32 %s286, 1
    %p290 = scmp.eq.s32.totalorder %s21, 1
    %p291 = scmp.ne.s32.totalorder %s286, %s288
    %p292 = scmp.eq.s32.totalorder %s21, 0
    %p293 = por %p291, %p292
    %p294 = scmp.ne.s32.totalorder %s286, %s288
    %p295 = scmp.eq.s32.totalorder %s26, 1
    %p296 = por %p294, %p295
    %p297 = scmp.ne.s32.totalorder %s288, %s289
    %p298 = scmp.eq.s32.totalorder %s26, 0
    %p299 = por %p297, %p298
    %p300 = scmp.ne.s32.totalorder %s288, %s289
    %p301 = scmp.eq.s32.totalorder %s27, 1
    %p302 = por %p300, %p301
    %p304 = scmp.ne.s32.totalorder %s289, %s303
    %p305 = scmp.eq.s32.totalorder %s27, 0
    %p306 = por %p304, %p305
    %s308 = sadd.s32 %s307, 1
    %p311 = scmp.eq.s32.totalorder %s21, 1
    %p312 = scmp.ne.s32.totalorder %s307, %s309
    %p313 = scmp.eq.s32.totalorder %s21, 0
    %p314 = por %p312, %p313
    %p315 = scmp.ne.s32.totalorder %s307, %s309
    %p316 = scmp.eq.s32.totalorder %s26, 1
    %p317 = por %p315, %p316
    %p318 = scmp.ne.s32.totalorder %s309, %s310
    %p319 = scmp.eq.s32.totalorder %s26, 0
    %p320 = por %p318, %p319
    %p321 = scmp.ne.s32.totalorder %s309, %s310
    %p322 = scmp.eq.s32.totalorder %s27, 1
    %p323 = por %p321, %p322
    %p325 = scmp.ne.s32.totalorder %s310, %s324
    %p326 = scmp.eq.s32.totalorder %s27, 0
    %p327 = por %p325, %p326
    %s329 = sadd.s32 %s328, 1
    %p332 = scmp.eq.s32.totalorder %s21, 1
    %p333 = scmp.ne.s32.totalorder %s328, %s330
    %p334 = scmp.eq.s32.totalorder %s21, 0
    %p335 = por %p333, %p334
    %p336 = scmp.ne.s32.totalorder %s328, %s330
    %p337 = scmp.eq.s32.totalorder %s26, 1
    %p338 = por %p336, %p337
    %p339 = scmp.ne.s32.totalorder %s330, %s331
    %p340 = scmp.eq.s32.totalorder %s26, 0
    %p341 = por %p339, %p340
    %p342 = scmp.ne.s32.totalorder %s330, %s331
    %p343 = scmp.eq.s32.totalorder %s27, 1
    %p344 = por %p342, %p343
    %p346 = scmp.ne.s32.totalorder %s331, %s345
    %p347 = scmp.eq.s32.totalorder %s27, 0
    %p348 = por %p346, %p347
    %s349 = ssub.s32 %s21, %s28
    %p350 = scmp.eq.s32.totalorder %s349, 0
    %s352 = sadd.s32 %s351, 1
    %s353 = scalar_select %p350, %s351, %s352
    %p356 = pneg %p350
    %p357 = scmp.eq.s32.totalorder %s21, 1
    %p358 = por %p356, %p357
    %p359 = scmp.ne.s32.totalorder %s351, %s354
    %p360 = scmp.eq.s32.totalorder %s21, 0
    %p361 = por %p359, %p360
    %p362 = scmp.ne.s32.totalorder %s351, %s354
    %p363 = scmp.eq.s32.totalorder %s26, 1
    %p364 = por %p362, %p363
    %p365 = scmp.ne.s32.totalorder %s354, %s355
    %p366 = scmp.eq.s32.totalorder %s26, 0
    %p367 = por %p365, %p366
    %p368 = scmp.ne.s32.totalorder %s354, %s355
    %p369 = scmp.eq.s32.totalorder %s27, 1
    %p370 = por %p368, %p369
    %p372 = scmp.ne.s32.totalorder %s355, %s371
    %p373 = scmp.eq.s32.totalorder %s27, 0
    %p374 = por %p372, %p373
    %p375 = scmp.le.s32.totalorder 1, %s21
    %p376 = scmp.lt.s32.totalorder %s21, 3
    %p377 = pnand %p375, %p376
    %p378 = pneg %p377
    // Predicated region
    $region9: #{net_forward.1} parent=5 // pred_check
      _
    $region10: #{net_forward.1} parent=5 // pred_check_branch
      %380 = sbr.rel (%p377) target = $region12
    $region11: #{net_forward.1} parent=5 // pred_region
      %s381 = ssub.s32 %s21, 1
      // Predicated region
      $region13: #{net_forward.1} parent=11 // pred_check
        %p382 = pneg %p68
      $region14: #{net_forward.1} parent=11 // pred_check_branch
        %384 = sbr.rel (%p382) target = $region16
      $region15: #{net_forward.1} parent=11 // pred_region
        _
      $region16: #{net_forward.1} parent=11 // pred_fallthru
        _
      // Predicated region
      $region17: #{net_forward.1} parent=11 // pred_check
        %p385 = pneg %p89
      $region18: #{net_forward.1} parent=11 // pred_check_branch
        %387 = sbr.rel (%p385) target = $region20
      $region19: #{net_forward.1} parent=11 // pred_region
        _
      $region20: #{net_forward.1} parent=11 // pred_fallthru
        _
      // Predicated region
      $region21: #{net_forward.1} parent=11 // pred_check
        %p388 = pneg %p110
      $region22: #{net_forward.1} parent=11 // pred_check_branch
        %390 = sbr.rel (%p388) target = $region24
      $region23: #{net_forward.1} parent=11 // pred_region
        _
      $region24: #{net_forward.1} parent=11 // pred_fallthru
        _
      // Predicated region
      $region25: #{net_forward.1} parent=11 // pred_check
        %p391 = pneg %p131
      $region26: #{net_forward.1} parent=11 // pred_check_branch
        %393 = sbr.rel (%p391) target = $region28
      $region27: #{net_forward.1} parent=11 // pred_region
        _
      $region28: #{net_forward.1} parent=11 // pred_fallthru
        _
      // Predicated region
      $region29: #{net_forward.1} parent=11 // pred_check
        %p394 = pneg %p152
      $region30: #{net_forward.1} parent=11 // pred_check_branch
        %396 = sbr.rel (%p394) target = $region32
      $region31: #{net_forward.1} parent=11 // pred_region
        _
      $region32: #{net_forward.1} parent=11 // pred_fallthru
        _
      // Predicated region
      $region33: #{net_forward.1} parent=11 // pred_check
        %p397 = pneg %p173
      $region34: #{net_forward.1} parent=11 // pred_check_branch
        %399 = sbr.rel (%p397) target = $region36
      $region35: #{net_forward.1} parent=11 // pred_region
        _
      $region36: #{net_forward.1} parent=11 // pred_fallthru
        _
      // Predicated region
      $region37: #{net_forward.1} parent=11 // pred_check
        %p400 = pneg %p194
      $region38: #{net_forward.1} parent=11 // pred_check_branch
        %402 = sbr.rel (%p400) target = $region40
      $region39: #{net_forward.1} parent=11 // pred_region
        _
      $region40: #{net_forward.1} parent=11 // pred_fallthru
        _
      // Predicated region
      $region41: #{net_forward.1} parent=11 // pred_check
        %p403 = pneg %p215
      $region42: #{net_forward.1} parent=11 // pred_check_branch
        %405 = sbr.rel (%p403) target = $region44
      $region43: #{net_forward.1} parent=11 // pred_region
        _
      $region44: #{net_forward.1} parent=11 // pred_fallthru
        _
      // Predicated region
      $region45: #{net_forward.1} parent=11 // pred_check
        %p406 = pneg %p236
      $region46: #{net_forward.1} parent=11 // pred_check_branch
        %408 = sbr.rel (%p406) target = $region48
      $region47: #{net_forward.1} parent=11 // pred_region
        _
      $region48: #{net_forward.1} parent=11 // pred_fallthru
        _
      // Predicated region
      $region49: #{net_forward.1} parent=11 // pred_check
        %p409 = pneg %p257
      $region50: #{net_forward.1} parent=11 // pred_check_branch
        %411 = sbr.rel (%p409) target = $region52
      $region51: #{net_forward.1} parent=11 // pred_region
        _
      $region52: #{net_forward.1} parent=11 // pred_fallthru
        _
      // Predicated region
      $region53: #{net_forward.1} parent=11 // pred_check
        %p412 = pneg %p278
      $region54: #{net_forward.1} parent=11 // pred_check_branch
        %414 = sbr.rel (%p412) target = $region56
      $region55: #{net_forward.1} parent=11 // pred_region
        _
      $region56: #{net_forward.1} parent=11 // pred_fallthru
        _
      // Predicated region
      $region57: #{net_forward.1} parent=11 // pred_check
        %p415 = pneg %p299
      $region58: #{net_forward.1} parent=11 // pred_check_branch
        %417 = sbr.rel (%p415) target = $region60
      $region59: #{net_forward.1} parent=11 // pred_region
        _
      $region60: #{net_forward.1} parent=11 // pred_fallthru
        _
      // Predicated region
      $region61: #{net_forward.1} parent=11 // pred_check
        %p418 = pneg %p320
      $region62: #{net_forward.1} parent=11 // pred_check_branch
        %420 = sbr.rel (%p418) target = $region64
      $region63: #{net_forward.1} parent=11 // pred_region
        _
      $region64: #{net_forward.1} parent=11 // pred_fallthru
        _
      // Predicated region
      $region65: #{net_forward.1} parent=11 // pred_check
        %p421 = pneg %p341
      $region66: #{net_forward.1} parent=11 // pred_check_branch
        %423 = sbr.rel (%p421) target = $region68
      $region67: #{net_forward.1} parent=11 // pred_region
        _
      $region68: #{net_forward.1} parent=11 // pred_fallthru
        _
    $region12: #{net_forward.1} parent=5 // pred_fallthru
      _
    %p424 = scmp.lt.s32.totalorder %s21, 2
    // Predicated region
    $region69: #{net_forward.1} parent=5 // pred_check
      %p425 = pneg %p424
    $region70: #{net_forward.1} parent=5 // pred_check_branch
      %427 = sbr.rel (%p425) target = $region72
    $region71: #{net_forward.1} parent=5 // pred_region
      // Predicated region
      $region73: #{net_forward.1} parent=71 // pred_check
        %p428 = pneg %p41
      $region74: #{net_forward.1} parent=71 // pred_check_branch
        %430 = sbr.rel (%p428) target = $region76
      $region75: #{net_forward.1} parent=71 // pred_region
        %p431 = scmp.lt.s32.totalorder %s21, 1
        %s432 = scalar_select %p431, %s21, 1
        %s433 = smul.addr %s432, 70
        %s434 = smul.addr %s433, 4
        %s435 = scalar_lea.vmem %s0, %s434
      $region76: #{net_forward.1} parent=71 // pred_fallthru
        _
    $region72: #{net_forward.1} parent=5 // pred_fallthru
      _
    %p436 = scmp.le.s32.totalorder 1, %s21
    %p437 = scmp.lt.s32.totalorder %s21, 3
    %p438 = pnand %p436, %p437
    %p439 = pneg %p438
    // Predicated region
    $region77: #{net_forward.1} parent=5 // pred_check
      _
    $region78: #{net_forward.1} parent=5 // pred_check_branch
      %441 = sbr.rel (%p438) target = $region80
    $region79: #{net_forward.1} parent=5 // pred_region
      %s442 = ssub.s32 %s21, 1
      %p443 = scmp.lt.s32.totalorder %s26, 1
      %s444 = scalar_select %p443, %s26, 1
      %s445 = smul.addr %s444, 70
      %s446 = smul.addr %s445, 4
      %s447 = scalar_lea.vmem %s0, %s446
      %p448 = pneg %p47
      %p449 = pneg %p44
      %p450 = pneg %p68
      %p451 = pneg %p65
      %p452 = pneg %p89
      %p453 = pneg %p86
      %p454 = pneg %p110
      %p455 = pneg %p107
      %p456 = pneg %p131
      %p457 = pneg %p128
      %p458 = pneg %p152
      %p459 = pneg %p149
      %p460 = pneg %p173
      %p461 = pneg %p170
      %p462 = pneg %p194
      %p463 = pneg %p191
      %p464 = pneg %p215
      %p465 = pneg %p212
      %p466 = pneg %p236
      %p467 = pneg %p233
      %p468 = pneg %p257
      %p469 = pneg %p254
      %p470 = pneg %p278
      %p471 = pneg %p275
      %p472 = pneg %p299
      %p473 = pneg %p296
      %p474 = pneg %p320
      %p475 = pneg %p317
      %p476 = pneg %p341
      %p477 = pneg %p338
      %p478 = pneg %p367
      %p479 = pneg %p364
      %p480 = scmp.lt.s32.totalorder %s26, 1
      %s481 = scalar_select %p480, %s26, 1
      %s482 = smul.addr %s481, 4
      %s483 = scalar_lea.vmem %s15, %s482
      %p484 = scmp.lt.s32.totalorder %s26, 1
      %s485 = scalar_select %p484, %s26, 1
      %s486 = smul.addr %s485, 70
      %s487 = smul.addr %s486, 4
      %s488 = scalar_lea.vmem %s0, %s487
      %p489 = scmp.lt.s32.totalorder %s26, 1
      %s490 = scalar_select %p489, %s26, 1
      %s491 = smul.addr %s490, 4
      %s492 = scalar_lea.vmem %s15, %s491
      %v494 = vld [vmem:[%s488] sm:$0xff]
      %v495 = vld [vmem:[%s488 + $0x8] sm:$0xff]
      %v496 = vld [vmem:[%s488 + $0x10] sm:$0xf]
      %v497 = vld [vmem:[%s488 + $0x14] sm:$0xff]
      %v498 = vld [vmem:[%s488 + $0x1c] sm:$0xff]
      %v499 = vld [vmem:[%s488 + $0x24] sm:$0xf]
      %v500 = vld [vmem:[%s488 + $0x28] sm:$0xff]
      %v501 = vld [vmem:[%s488 + $0x30] sm:$0xff]
      %v502 = vld [vmem:[%s488 + $0x38] sm:$0xf]
      %v503 = vld [vmem:[%s488 + $0x3c] sm:$0xff]
      %v504 = vld [vmem:[%s488 + $0x44] sm:$0xff]
      %v505 = vld [vmem:[%s488 + $0x4c] sm:$0xf]
      %v506 = vld [vmem:[%s488 + $0x50] sm:$0xff]
      %v507 = vld [vmem:[%s488 + $0x58] sm:$0xff]
      %v508 = vld [vmem:[%s488 + $0x60] sm:$0xf]
      %v509 = vld [vmem:[%s488 + $0x64] sm:$0xff]
      %v510 = vld [vmem:[%s488 + $0x6c] sm:$0xff]
      %v511 = vld [vmem:[%s488 + $0x74] sm:$0xf]
      %v512 = vld [vmem:[%s488 + $0x78] sm:$0xff]
      %v513 = vld [vmem:[%s488 + $0x80] sm:$0xff]
      %v514 = vld [vmem:[%s488 + $0x88] sm:$0xf]
      %v515 = vld [vmem:[%s488 + $0x8c] sm:$0xff]
      %v516 = vld [vmem:[%s488 + $0x94] sm:$0xff]
      %v517 = vld [vmem:[%s488 + $0x9c] sm:$0xf]
      %v518 = vld [vmem:[%s488 + $0xa0] sm:$0xff]
      %v519 = vld [vmem:[%s488 + $0xa8] sm:$0xff]
      %v520 = vld [vmem:[%s488 + $0xb0] sm:$0xf]
      %v521 = vld [vmem:[%s488 + $0xb4] sm:$0xff]
      %v522 = vld [vmem:[%s488 + $0xbc] sm:$0xff]
      %v523 = vld [vmem:[%s488 + $0xc4] sm:$0xf]
      %v524 = vld [vmem:[%s488 + $0xc8] sm:$0xff]
      %v525 = vld [vmem:[%s488 + $0xd0] sm:$0xff]
      %v526 = vld [vmem:[%s488 + $0xd8] sm:$0xf]
      %v527 = vld [vmem:[%s488 + $0xdc] sm:$0xff]
      %v528 = vld [vmem:[%s488 + $0xe4] sm:$0xff]
      %v529 = vld [vmem:[%s488 + $0xec] sm:$0xf]
      %v530 = vld [vmem:[%s488 + $0xf0] sm:$0xff]
      %v531 = vld [vmem:[%s488 + $0xf8] sm:$0xff]
      %v532 = vld [vmem:[%s488 + $0x100] sm:$0xf]
      %v533 = vld [vmem:[%s488 + $0x104] sm:$0xff]
      %v534 = vld [vmem:[%s488 + $0x10c] sm:$0xff]
      %v535 = vld [vmem:[%s488 + $0x114] sm:$0xf]
      %v536 = vld [vmem:[%s1] sm:$0xff]
      %v537 = vld [vmem:[%s1 + $0x8] sm:$0xff]
      %v538 = vld [vmem:[%s1 + $0x10] sm:$0xff]
      %v539 = vld [vmem:[%s1 + $0x18] sm:$0xff]
      %v540 = vld [vmem:[%s1 + $0x20] sm:$0xff]
      %v541 = vld [vmem:[%s1 + $0x28] sm:$0xff]
      %v542 = vld [vmem:[%s1 + $0x30] sm:$0xff]
      %v543 = vld [vmem:[%s1 + $0x38] sm:$0xff]
      %v544 = vld [vmem:[%s1 + $0x40] sm:$0xff]
      %v545 = vld [vmem:[%s1 + $0x48] sm:$0xff]
      %v546 = vld [vmem:[%s1 + $0x50] sm:$0xff]
      %v547 = vld [vmem:[%s1 + $0x58] sm:$0xff]
      %v548 = vld [vmem:[%s1 + $0x60] sm:$0xff]
      %v549 = vld [vmem:[%s1 + $0x68] sm:$0xff]
      %v550 = vld [vmem:[%s1 + $0x70] sm:$0xff]
      %v551 = vld [vmem:[%s1 + $0x78] sm:$0xff]
      %v552 = vld [vmem:[%s1 + $0x80] sm:$0xff]
      %v553 = vld [vmem:[%s1 + $0x88] sm:$0xff]
      %v554 = vld [vmem:[%s1 + $0x90] sm:$0xff]
      %v555 = vld [vmem:[%s1 + $0x98] sm:$0xff]
      %v556 = vld [vmem:[%s1 + $0xa0] sm:$0xff]
      %v557 = vld [vmem:[%s1 + $0xa8] sm:$0xff]
      %v558 = vld [vmem:[%s1 + $0xb0] sm:$0xff]
      %v559 = vld [vmem:[%s1 + $0xb8] sm:$0xff]
      %v560 = vld [vmem:[%s1 + $0xc0] sm:$0xff]
      %v561 = vld [vmem:[%s1 + $0xc8] sm:$0xff]
      %v562 = vld [vmem:[%s1 + $0xd0] sm:$0xff]
      %v563 = vld [vmem:[%s1 + $0xd8] sm:$0xff]
      %v564 = vld [vmem:[%s1 + $0xe0] sm:$0xff]
      %v565 = vld [vmem:[%s1 + $0xe8] sm:$0xff]
      %v566 = vld [vmem:[%s1 + $0xf0] sm:$0xff]
      %v567 = vld [vmem:[%s1 + $0xf8] sm:$0xff]
      %v568 = vld [vmem:[%s1 + $0x100] sm:$0xff]
      %v569 = vld [vmem:[%s1 + $0x108] sm:$0xff]
      %v570 = vld [vmem:[%s1 + $0x110] sm:$0xff]
      %v571 = vld [vmem:[%s1 + $0x118] sm:$0xff]
      %v572 = vld [vmem:[%s1 + $0x120] sm:$0xff]
      %v573 = vld [vmem:[%s1 + $0x128] sm:$0xff]
      %v574 = vld [vmem:[%s1 + $0x130] sm:$0xff]
      %v575 = vld [vmem:[%s1 + $0x138] sm:$0xff]
      %v576 = vld [vmem:[%s1 + $0x140] sm:$0xff]
      %v577 = vld [vmem:[%s1 + $0x148] sm:$0xff]
      %v578 = vld [vmem:[%s1 + $0x150] sm:$0xff]
      %v579 = vld [vmem:[%s1 + $0x158] sm:$0xff]
      %v580 = vld [vmem:[%s1 + $0x160] sm:$0xff]
      %v581 = vld [vmem:[%s1 + $0x168] sm:$0xff]
      %v582 = vld [vmem:[%s1 + $0x170] sm:$0xff]
      %v583 = vld [vmem:[%s1 + $0x178] sm:$0xff]
      %v584 = vld [vmem:[%s1 + $0x180] sm:$0xff]
      %v585 = vld [vmem:[%s1 + $0x188] sm:$0xff]
      %v586 = vld [vmem:[%s1 + $0x190] sm:$0xff]
      %v587 = vld [vmem:[%s1 + $0x198] sm:$0xff]
      %v588 = vld [vmem:[%s1 + $0x1a0] sm:$0xff]
      %v589 = vld [vmem:[%s1 + $0x1a8] sm:$0xff]
      %v590 = vld [vmem:[%s1 + $0x1b0] sm:$0xff]
      %v591 = vld [vmem:[%s1 + $0x1b8] sm:$0xff]
      %v592 = vld [vmem:[%s1 + $0x1c0] sm:$0xff]
      %v593 = vld [vmem:[%s1 + $0x1c8] sm:$0xff]
      %v594 = vld [vmem:[%s1 + $0x1d0] sm:$0xff]
      %v595 = vld [vmem:[%s1 + $0x1d8] sm:$0xff]
      %v596 = vld [vmem:[%s1 + $0x1e0] sm:$0xff]
      %v597 = vld [vmem:[%s1 + $0x1e8] sm:$0xff]
      %v598 = vld [vmem:[%s1 + $0x1f0] sm:$0xff]
      %v599 = vld [vmem:[%s1 + $0x1f8] sm:$0xff]
      %v600 = vld [vmem:[%s1 + $0x200] sm:$0xff]
      %v601 = vld [vmem:[%s1 + $0x208] sm:$0xff]
      %v602 = vld [vmem:[%s1 + $0x210] sm:$0xff]
      %v603 = vld [vmem:[%s1 + $0x218] sm:$0xff]
      %v604 = vld [vmem:[%s1 + $0x220] sm:$0xff]
      %v605 = vld [vmem:[%s1 + $0x228] sm:$0xff]
      %v606 = vld [vmem:[%s1 + $0x230] sm:$0xff]
      %v607 = vld [vmem:[%s1 + $0x238] sm:$0xff]
      %v608 = vld [vmem:[%s1 + $0x240] sm:$0xff]
      %v609 = vld [vmem:[%s1 + $0x248] sm:$0xff]
      %v610 = vld [vmem:[%s1 + $0x250] sm:$0xff]
      %v611 = vld [vmem:[%s1 + $0x258] sm:$0xff]
      %v612 = vld [vmem:[%s1 + $0x260] sm:$0xff]
      %v613 = vld [vmem:[%s1 + $0x268] sm:$0xff]
      %v614 = vld [vmem:[%s1 + $0x270] sm:$0xff]
      %v615 = vld [vmem:[%s1 + $0x278] sm:$0xff]
      %v616 = vld [vmem:[%s2] sm:$0x3]
      %v618 = vlaneseq
      %v619 = vshrl.u32 %v618, 7
      %v620 = vsub.s32 0, %v619
      %v621 = vrot.slane %v616, %v620
      %v622 = vlaneseq
      %v623 = vshrl.u32 %v622, 7
      %v624 = vsub.s32 1, %v623
      %v625 = vrot.slane %v616, %v624
      %v670 = vunpack.c.l.b16 %v494
      %v671 = vunpack.c.h.b16 %v494
      %v672 = vunpack.c.l.b16 %v495
      %v673 = vunpack.c.h.b16 %v495
      %v674 = vunpack.c.l.b16 %v496
      %v675 = vunpack.c.l.b16 %v497
      %v676 = vunpack.c.h.b16 %v497
      %v677 = vunpack.c.l.b16 %v498
      %v678 = vunpack.c.h.b16 %v498
      %v679 = vunpack.c.l.b16 %v499
      %v680 = vunpack.c.l.b16 %v500
      %v681 = vunpack.c.h.b16 %v500
      %v682 = vunpack.c.l.b16 %v501
      %v683 = vunpack.c.h.b16 %v501
      %v684 = vunpack.c.l.b16 %v502
      %v685 = vunpack.c.l.b16 %v503
      %v686 = vunpack.c.h.b16 %v503
      %v687 = vunpack.c.l.b16 %v504
      %v688 = vunpack.c.h.b16 %v504
      %v689 = vunpack.c.l.b16 %v505
      %v690 = vunpack.c.l.b16 %v506
      %v691 = vunpack.c.h.b16 %v506
      %v692 = vunpack.c.l.b16 %v507
      %v693 = vunpack.c.h.b16 %v507
      %v694 = vunpack.c.l.b16 %v508
      %v695 = vunpack.c.l.b16 %v509
      %v696 = vunpack.c.h.b16 %v509
      %v697 = vunpack.c.l.b16 %v510
      %v698 = vunpack.c.h.b16 %v510
      %v699 = vunpack.c.l.b16 %v511
      %v700 = vunpack.c.l.b16 %v512
      %v701 = vunpack.c.h.b16 %v512
      %v702 = vunpack.c.l.b16 %v513
      %v703 = vunpack.c.h.b16 %v513
      %v704 = vunpack.c.l.b16 %v514
      %v705 = vunpack.c.l.b16 %v515
      %v706 = vunpack.c.h.b16 %v515
      %v707 = vunpack.c.l.b16 %v516
      %v708 = vunpack.c.h.b16 %v516
      %v709 = vunpack.c.l.b16 %v517
      %v710 = vunpack.c.l.b16 %v518
      %v711 = vunpack.c.h.b16 %v518
      %v712 = vunpack.c.l.b16 %v519
      %v713 = vunpack.c.h.b16 %v519
      %v714 = vunpack.c.l.b16 %v520
      %v715 = vunpack.c.l.b16 %v521
      %v716 = vunpack.c.h.b16 %v521
      %v717 = vunpack.c.l.b16 %v522
      %v718 = vunpack.c.h.b16 %v522
      %v719 = vunpack.c.l.b16 %v523
      %v720 = vunpack.c.l.b16 %v524
      %v721 = vunpack.c.h.b16 %v524
      %v722 = vunpack.c.l.b16 %v525
      %v723 = vunpack.c.h.b16 %v525
      %v724 = vunpack.c.l.b16 %v526
      %v725 = vunpack.c.l.b16 %v527
      %v726 = vunpack.c.h.b16 %v527
      %v727 = vunpack.c.l.b16 %v528
      %v728 = vunpack.c.h.b16 %v528
      %v729 = vunpack.c.l.b16 %v529
      %v730 = vunpack.c.l.b16 %v530
      %v731 = vunpack.c.h.b16 %v530
      %v732 = vunpack.c.l.b16 %v531
      %v733 = vunpack.c.h.b16 %v531
      %v734 = vunpack.c.l.b16 %v532
      %v735 = vunpack.c.l.b16 %v533
      %v736 = vunpack.c.h.b16 %v533
      %v737 = vunpack.c.l.b16 %v534
      %v738 = vunpack.c.h.b16 %v534
      %v739 = vunpack.c.l.b16 %v535
      %v740 = vpack.c.b16 %v675, %v670
      %v741 = vpack.c.b16 %v676, %v671
      %v742 = vpack.c.b16 %v677, %v672
      %v743 = vpack.c.b16 %v678, %v673
      %v744 = vpack.c.b16 %v679, %v674
      %v745 = vpack.c.b16 %v685, %v680
      %v746 = vpack.c.b16 %v686, %v681
      %v747 = vpack.c.b16 %v687, %v682
      %v748 = vpack.c.b16 %v688, %v683
      %v749 = vpack.c.b16 %v689, %v684
      %v750 = vpack.c.b16 %v695, %v690
      %v751 = vpack.c.b16 %v696, %v691
      %v752 = vpack.c.b16 %v697, %v692
      %v753 = vpack.c.b16 %v698, %v693
      %v754 = vpack.c.b16 %v699, %v694
      %v755 = vpack.c.b16 %v705, %v700
      %v756 = vpack.c.b16 %v706, %v701
      %v757 = vpack.c.b16 %v707, %v702
      %v758 = vpack.c.b16 %v708, %v703
      %v759 = vpack.c.b16 %v709, %v704
      %v760 = vpack.c.b16 %v715, %v710
      %v761 = vpack.c.b16 %v716, %v711
      %v762 = vpack.c.b16 %v717, %v712
      %v763 = vpack.c.b16 %v718, %v713
      %v764 = vpack.c.b16 %v719, %v714
      %v765 = vpack.c.b16 %v725, %v720
      %v766 = vpack.c.b16 %v726, %v721
      %v767 = vpack.c.b16 %v727, %v722
      %v768 = vpack.c.b16 %v728, %v723
      %v769 = vpack.c.b16 %v729, %v724
      %v770 = vpack.c.b16 %v735, %v730
      %v771 = vpack.c.b16 %v736, %v731
      %v772 = vpack.c.b16 %v737, %v732
      %v773 = vpack.c.b16 %v738, %v733
      %v774 = vpack.c.b16 %v739, %v734
      %v890 = vunpack.c.l.b16 %v536
      %v891 = vunpack.c.h.b16 %v536
      %v892 = vunpack.c.l.b16 %v537
      %v893 = vunpack.c.h.b16 %v537
      %v894 = vunpack.c.l.b16 %v538
      %v895 = vunpack.c.h.b16 %v538
      %v896 = vunpack.c.l.b16 %v539
      %v897 = vunpack.c.h.b16 %v539
      %v898 = vunpack.c.l.b16 %v540
      %v899 = vunpack.c.h.b16 %v540
      %v900 = vunpack.c.l.b16 %v541
      %v901 = vunpack.c.h.b16 %v541
      %v902 = vunpack.c.l.b16 %v542
      %v903 = vunpack.c.h.b16 %v542
      %v904 = vunpack.c.l.b16 %v543
      %v905 = vunpack.c.h.b16 %v543
      %v906 = vunpack.c.l.b16 %v544
      %v907 = vunpack.c.h.b16 %v544
      %v908 = vunpack.c.l.b16 %v545
      %v909 = vunpack.c.h.b16 %v545
      %v910 = vunpack.c.l.b16 %v546
      %v911 = vunpack.c.h.b16 %v546
      %v912 = vunpack.c.l.b16 %v547
      %v913 = vunpack.c.h.b16 %v547
      %v914 = vunpack.c.l.b16 %v548
      %v915 = vunpack.c.h.b16 %v548
      %v916 = vunpack.c.l.b16 %v549
      %v917 = vunpack.c.h.b16 %v549
      %v918 = vunpack.c.l.b16 %v550
      %v919 = vunpack.c.h.b16 %v550
      %v920 = vunpack.c.l.b16 %v551
      %v921 = vunpack.c.h.b16 %v551
      %v922 = vunpack.c.l.b16 %v552
      %v923 = vunpack.c.h.b16 %v552
      %v924 = vunpack.c.l.b16 %v553
      %v925 = vunpack.c.h.b16 %v553
      %v926 = vunpack.c.l.b16 %v554
      %v927 = vunpack.c.h.b16 %v554
      %v928 = vunpack.c.l.b16 %v555
      %v929 = vunpack.c.h.b16 %v555
      %v930 = vunpack.c.l.b16 %v556
      %v931 = vunpack.c.h.b16 %v556
      %v932 = vunpack.c.l.b16 %v557
      %v933 = vunpack.c.h.b16 %v557
      %v934 = vunpack.c.l.b16 %v558
      %v935 = vunpack.c.h.b16 %v558
      %v936 = vunpack.c.l.b16 %v559
      %v937 = vunpack.c.h.b16 %v559
      %v938 = vunpack.c.l.b16 %v560
      %v939 = vunpack.c.h.b16 %v560
      %v940 = vunpack.c.l.b16 %v561
      %v941 = vunpack.c.h.b16 %v561
      %v942 = vunpack.c.l.b16 %v562
      %v943 = vunpack.c.h.b16 %v562
      %v944 = vunpack.c.l.b16 %v563
      %v945 = vunpack.c.h.b16 %v563
      %v946 = vunpack.c.l.b16 %v564
      %v947 = vunpack.c.h.b16 %v564
      %v948 = vunpack.c.l.b16 %v565
      %v949 = vunpack.c.h.b16 %v565
      %v950 = vunpack.c.l.b16 %v566
      %v951 = vunpack.c.h.b16 %v566
      %v952 = vunpack.c.l.b16 %v567
      %v953 = vunpack.c.h.b16 %v567
      %v954 = vunpack.c.l.b16 %v568
      %v955 = vunpack.c.h.b16 %v568
      %v956 = vunpack.c.l.b16 %v569
      %v957 = vunpack.c.h.b16 %v569
      %v958 = vunpack.c.l.b16 %v570
      %v959 = vunpack.c.h.b16 %v570
      %v960 = vunpack.c.l.b16 %v571
      %v961 = vunpack.c.h.b16 %v571
      %v962 = vunpack.c.l.b16 %v572
      %v963 = vunpack.c.h.b16 %v572
      %v964 = vunpack.c.l.b16 %v573
      %v965 = vunpack.c.h.b16 %v573
      %v966 = vunpack.c.l.b16 %v574
      %v967 = vunpack.c.h.b16 %v574
      %v968 = vunpack.c.l.b16 %v575
      %v969 = vunpack.c.h.b16 %v575
      %v970 = vunpack.c.l.b16 %v576
      %v971 = vunpack.c.h.b16 %v576
      %v972 = vunpack.c.l.b16 %v577
      %v973 = vunpack.c.h.b16 %v577
      %v974 = vunpack.c.l.b16 %v578
      %v975 = vunpack.c.h.b16 %v578
      %v976 = vunpack.c.l.b16 %v579
      %v977 = vunpack.c.h.b16 %v579
      %v978 = vunpack.c.l.b16 %v580
      %v979 = vunpack.c.h.b16 %v580
      %v980 = vunpack.c.l.b16 %v581
      %v981 = vunpack.c.h.b16 %v581
      %v982 = vunpack.c.l.b16 %v582
      %v983 = vunpack.c.h.b16 %v582
      %v984 = vunpack.c.l.b16 %v583
      %v985 = vunpack.c.h.b16 %v583
      %v986 = vunpack.c.l.b16 %v584
      %v987 = vunpack.c.h.b16 %v584
      %v988 = vunpack.c.l.b16 %v585
      %v989 = vunpack.c.h.b16 %v585
      %v990 = vunpack.c.l.b16 %v586
      %v991 = vunpack.c.h.b16 %v586
      %v992 = vunpack.c.l.b16 %v587
      %v993 = vunpack.c.h.b16 %v587
      %v994 = vunpack.c.l.b16 %v588
      %v995 = vunpack.c.h.b16 %v588
      %v996 = vunpack.c.l.b16 %v589
      %v997 = vunpack.c.h.b16 %v589
      %v998 = vunpack.c.l.b16 %v590
      %v999 = vunpack.c.h.b16 %v590
      %v1000 = vunpack.c.l.b16 %v591
      %v1001 = vunpack.c.h.b16 %v591
      %v1002 = vunpack.c.l.b16 %v592
      %v1003 = vunpack.c.h.b16 %v592
      %v1004 = vunpack.c.l.b16 %v593
      %v1005 = vunpack.c.h.b16 %v593
      %v1006 = vunpack.c.l.b16 %v594
      %v1007 = vunpack.c.h.b16 %v594
      %v1008 = vunpack.c.l.b16 %v595
      %v1009 = vunpack.c.h.b16 %v595
      %v1010 = vunpack.c.l.b16 %v596
      %v1011 = vunpack.c.h.b16 %v596
      %v1012 = vunpack.c.l.b16 %v597
      %v1013 = vunpack.c.h.b16 %v597
      %v1014 = vunpack.c.l.b16 %v598
      %v1015 = vunpack.c.h.b16 %v598
      %v1016 = vunpack.c.l.b16 %v599
      %v1017 = vunpack.c.h.b16 %v599
      %v1018 = vunpack.c.l.b16 %v600
      %v1019 = vunpack.c.h.b16 %v600
      %v1020 = vunpack.c.l.b16 %v601
      %v1021 = vunpack.c.h.b16 %v601
      %v1022 = vunpack.c.l.b16 %v602
      %v1023 = vunpack.c.h.b16 %v602
      %v1024 = vunpack.c.l.b16 %v603
      %v1025 = vunpack.c.h.b16 %v603
      %v1026 = vunpack.c.l.b16 %v604
      %v1027 = vunpack.c.h.b16 %v604
      %v1028 = vunpack.c.l.b16 %v605
      %v1029 = vunpack.c.h.b16 %v605
      %v1030 = vunpack.c.l.b16 %v606
      %v1031 = vunpack.c.h.b16 %v606
      %v1032 = vunpack.c.l.b16 %v607
      %v1033 = vunpack.c.h.b16 %v607
      %v1034 = vunpack.c.l.b16 %v608
      %v1035 = vunpack.c.h.b16 %v608
      %v1036 = vunpack.c.l.b16 %v609
      %v1037 = vunpack.c.h.b16 %v609
      %v1038 = vunpack.c.l.b16 %v610
      %v1039 = vunpack.c.h.b16 %v610
      %v1040 = vunpack.c.l.b16 %v611
      %v1041 = vunpack.c.h.b16 %v611
      %v1042 = vunpack.c.l.b16 %v612
      %v1043 = vunpack.c.h.b16 %v612
      %v1044 = vunpack.c.l.b16 %v613
      %v1045 = vunpack.c.h.b16 %v613
      %v1046 = vunpack.c.l.b16 %v614
      %v1047 = vunpack.c.h.b16 %v614
      %v1048 = vunpack.c.l.b16 %v615
      %v1049 = vunpack.c.h.b16 %v615
      %v1050 = vpack.c.b16 %v892, %v890
      %v1051 = vpack.c.b16 %v893, %v891
      %v1052 = vpack.c.b16 %v896, %v894
      %v1053 = vpack.c.b16 %v897, %v895
      %v1054 = vpack.c.b16 %v900, %v898
      %v1055 = vpack.c.b16 %v901, %v899
      %v1056 = vpack.c.b16 %v904, %v902
      %v1057 = vpack.c.b16 %v905, %v903
      %v1058 = vpack.c.b16 %v908, %v906
      %v1059 = vpack.c.b16 %v909, %v907
      %v1060 = vpack.c.b16 %v912, %v910
      %v1061 = vpack.c.b16 %v913, %v911
      %v1062 = vpack.c.b16 %v916, %v914
      %v1063 = vpack.c.b16 %v917, %v915
      %v1064 = vpack.c.b16 %v920, %v918
      %v1065 = vpack.c.b16 %v921, %v919
      %v1066 = vpack.c.b16 %v924, %v922
      %v1067 = vpack.c.b16 %v925, %v923
      %v1068 = vpack.c.b16 %v928, %v926
      %v1069 = vpack.c.b16 %v929, %v927
      %v1070 = vpack.c.b16 %v932, %v930
      %v1071 = vpack.c.b16 %v933, %v931
      %v1072 = vpack.c.b16 %v936, %v934
      %v1073 = vpack.c.b16 %v937, %v935
      %v1074 = vpack.c.b16 %v940, %v938
      %v1075 = vpack.c.b16 %v941, %v939
      %v1076 = vpack.c.b16 %v944, %v942
      %v1077 = vpack.c.b16 %v945, %v943
      %v1078 = vpack.c.b16 %v948, %v946
      %v1079 = vpack.c.b16 %v949, %v947
      %v1080 = vpack.c.b16 %v952, %v950
      %v1081 = vpack.c.b16 %v953, %v951
      %v1082 = vpack.c.b16 %v956, %v954
      %v1083 = vpack.c.b16 %v957, %v955
      %v1084 = vpack.c.b16 %v960, %v958
      %v1085 = vpack.c.b16 %v961, %v959
      %v1086 = vpack.c.b16 %v964, %v962
      %v1087 = vpack.c.b16 %v965, %v963
      %v1088 = vpack.c.b16 %v968, %v966
      %v1089 = vpack.c.b16 %v969, %v967
      %v1090 = vpack.c.b16 %v972, %v970
      %v1091 = vpack.c.b16 %v973, %v971
      %v1092 = vpack.c.b16 %v976, %v974
      %v1093 = vpack.c.b16 %v977, %v975
      %v1094 = vpack.c.b16 %v980, %v978
      %v1095 = vpack.c.b16 %v981, %v979
      %v1096 = vpack.c.b16 %v984, %v982
      %v1097 = vpack.c.b16 %v985, %v983
      %v1098 = vpack.c.b16 %v988, %v986
      %v1099 = vpack.c.b16 %v989, %v987
      %v1100 = vpack.c.b16 %v992, %v990
      %v1101 = vpack.c.b16 %v993, %v991
      %v1102 = vpack.c.b16 %v996, %v994
      %v1103 = vpack.c.b16 %v997, %v995
      %v1104 = vpack.c.b16 %v1000, %v998
      %v1105 = vpack.c.b16 %v1001, %v999
      %v1106 = vpack.c.b16 %v1004, %v1002
      %v1107 = vpack.c.b16 %v1005, %v1003
      %v1108 = vpack.c.b16 %v1008, %v1006
      %v1109 = vpack.c.b16 %v1009, %v1007
      %v1110 = vpack.c.b16 %v1012, %v1010
      %v1111 = vpack.c.b16 %v1013, %v1011
      %v1112 = vpack.c.b16 %v1016, %v1014
      %v1113 = vpack.c.b16 %v1017, %v1015
      %v1114 = vpack.c.b16 %v1020, %v1018
      %v1115 = vpack.c.b16 %v1021, %v1019
      %v1116 = vpack.c.b16 %v1024, %v1022
      %v1117 = vpack.c.b16 %v1025, %v1023
      %v1118 = vpack.c.b16 %v1028, %v1026
      %v1119 = vpack.c.b16 %v1029, %v1027
      %v1120 = vpack.c.b16 %v1032, %v1030
      %v1121 = vpack.c.b16 %v1033, %v1031
      %v1122 = vpack.c.b16 %v1036, %v1034
      %v1123 = vpack.c.b16 %v1037, %v1035
      %v1124 = vpack.c.b16 %v1040, %v1038
      %v1125 = vpack.c.b16 %v1041, %v1039
      %v1126 = vpack.c.b16 %v1044, %v1042
      %v1127 = vpack.c.b16 %v1045, %v1043
      %v1128 = vpack.c.b16 %v1048, %v1046
      %v1129 = vpack.c.b16 %v1049, %v1047
      %1210 = vmatprep.subr.bf16.mxu0 %v1065
      %1211 = vmatpush1.bf16.msra.mxu0 %v1064
      %1212 = vmatprep.subr.bf16.mxu0 %v1063
      %1213 = vmatpush1.bf16.msra.mxu0 %v1062
      %1214 = vmatprep.subr.bf16.mxu0 %v1061
      %1215 = vmatpush1.bf16.msra.mxu0 %v1060
      %1216 = vmatprep.subr.bf16.mxu0 %v1059
      %1217 = vmatpush1.bf16.msra.mxu0 %v1058
      %1218 = vmatprep.subr.bf16.mxu0 %v1057
      %1219 = vmatpush1.bf16.msra.mxu0 %v1056
      %1220 = vmatprep.subr.bf16.mxu0 %v1055
      %1221 = vmatpush1.bf16.msra.mxu0 %v1054
      %1222 = vmatprep.subr.bf16.mxu0 %v1053
      %1223 = vmatpush1.bf16.msra.mxu0 %v1052
      %1224 = vmatprep.subr.bf16.mxu0 %v1051
      %1225 = vmatpush1.bf16.msra.mxu0 %v1050
      %1226 = vmatprep.subr.bf16.mxu0 %v1081
      %1227 = vmatpush2.bf16.msra.mxu0 %v1080
      %1228 = vmatprep.subr.bf16.mxu0 %v1079
      %1229 = vmatpush2.bf16.msra.mxu0 %v1078
      %1230 = vmatprep.subr.bf16.mxu0 %v1077
      %1231 = vmatpush2.bf16.msra.mxu0 %v1076
      %1232 = vmatprep.subr.bf16.mxu0 %v1075
      %1233 = vmatpush2.bf16.msra.mxu0 %v1074
      %1234 = vmatprep.subr.bf16.mxu0 %v1073
      %1235 = vmatpush2.bf16.msra.mxu0 %v1072
      %1236 = vmatprep.subr.bf16.mxu0 %v1071
      %1237 = vmatpush2.bf16.msra.mxu0 %v1070
      %1238 = vmatprep.subr.bf16.mxu0 %v1069
      %1239 = vmatpush2.bf16.msra.mxu0 %v1068
      %1240 = vmatprep.subr.bf16.mxu0 %v1067
      %1241 = vmatpush2.bf16.msra.mxu0 %v1066
      %1242 = vmatprep.mubr.bf16.mxu0 %v741
      %1243 = vmatmul.mubr.bf16.gmra.mxu0 %v740
      %v1244 = vpop.f32.mrf.mxu0
      %v1245 = vadd.f32 %v621, %v1244
      %v1246 = vpop.f32.mrf.mxu0
      %v1247 = vadd.f32 %v625, %v1246
      %v1248 = vpop.f32.mrf.mxu0
      %v1249 = vadd.f32 %v621, %v1248
      %v1250 = vpop.f32.mrf.mxu0
      %v1251 = vadd.f32 %v625, %v1250
      %1252 = vmatprep.mubr.bf16.mxu0 %v746
      %1253 = vmatmul.mubr.bf16.gmra.mxu0 %v745
      %v1254 = vpop.f32.mrf.mxu0
      %v1255 = vadd.f32 %v621, %v1254
      %v1256 = vpop.f32.mrf.mxu0
      %v1257 = vadd.f32 %v625, %v1256
      %v1258 = vpop.f32.mrf.mxu0
      %v1259 = vadd.f32 %v621, %v1258
      %v1260 = vpop.f32.mrf.mxu0
      %v1261 = vadd.f32 %v625, %v1260
      %1262 = vmatprep.mubr.bf16.mxu0 %v751
      %1263 = vmatmul.mubr.bf16.gmra.mxu0 %v750
      %v1264 = vpop.f32.mrf.mxu0
      %v1265 = vadd.f32 %v621, %v1264
      %v1266 = vpop.f32.mrf.mxu0
      %v1267 = vadd.f32 %v625, %v1266
      %v1268 = vpop.f32.mrf.mxu0
      %v1269 = vadd.f32 %v621, %v1268
      %v1270 = vpop.f32.mrf.mxu0
      %v1271 = vadd.f32 %v625, %v1270
      %1272 = vmatprep.mubr.bf16.mxu0 %v756
      %1273 = vmatmul.mubr.bf16.gmra.mxu0 %v755
      %v1274 = vpop.f32.mrf.mxu0
      %v1275 = vadd.f32 %v621, %v1274
      %v1276 = vpop.f32.mrf.mxu0
      %v1277 = vadd.f32 %v625, %v1276
      %v1278 = vpop.f32.mrf.mxu0
      %v1279 = vadd.f32 %v621, %v1278
      %v1280 = vpop.f32.mrf.mxu0
      %v1281 = vadd.f32 %v625, %v1280
      %1282 = vmatprep.mubr.bf16.mxu0 %v761
      %1283 = vmatmul.mubr.bf16.gmra.mxu0 %v760
      %v1284 = vpop.f32.mrf.mxu0
      %v1285 = vadd.f32 %v621, %v1284
      %v1286 = vpop.f32.mrf.mxu0
      %v1287 = vadd.f32 %v625, %v1286
      %v1288 = vpop.f32.mrf.mxu0
      %v1289 = vadd.f32 %v621, %v1288
      %v1290 = vpop.f32.mrf.mxu0
      %v1291 = vadd.f32 %v625, %v1290
      %1292 = vmatprep.mubr.bf16.mxu0 %v766
      %1293 = vmatmul.mubr.bf16.gmra.mxu0 %v765
      %v1294 = vpop.f32.mrf.mxu0
      %v1295 = vadd.f32 %v621, %v1294
      %v1296 = vpop.f32.mrf.mxu0
      %v1297 = vadd.f32 %v625, %v1296
      %v1298 = vpop.f32.mrf.mxu0
      %v1299 = vadd.f32 %v621, %v1298
      %v1300 = vpop.f32.mrf.mxu0
      %v1301 = vadd.f32 %v625, %v1300
      %1302 = vmatprep.mubr.bf16.mxu0 %v771
      %1303 = vmatmul.mubr.bf16.gmra.mxu0 %v770
      %v1304 = vpop.f32.mrf.mxu0
      %v1305 = vadd.f32 %v621, %v1304
      %v1306 = vpop.f32.mrf.mxu0
      %v1307 = vadd.f32 %v625, %v1306
      %v1308 = vpop.f32.mrf.mxu0
      %v1309 = vadd.f32 %v621, %v1308
      %v1310 = vpop.f32.mrf.mxu0
      %v1311 = vadd.f32 %v625, %v1310
      %1312 = vdwg.mxu0
      %1313 = vmatprep.subr.bf16.mxu0 %v1097
      %1314 = vmatpush1.bf16.msra.mxu0 %v1096
      %1315 = vmatprep.subr.bf16.mxu0 %v1095
      %1316 = vmatpush1.bf16.msra.mxu0 %v1094
      %1317 = vmatprep.subr.bf16.mxu0 %v1093
      %1318 = vmatpush1.bf16.msra.mxu0 %v1092
      %1319 = vmatprep.subr.bf16.mxu0 %v1091
      %1320 = vmatpush1.bf16.msra.mxu0 %v1090
      %1321 = vmatprep.subr.bf16.mxu0 %v1089
      %1322 = vmatpush1.bf16.msra.mxu0 %v1088
      %1323 = vmatprep.subr.bf16.mxu0 %v1087
      %1324 = vmatpush1.bf16.msra.mxu0 %v1086
      %1325 = vmatprep.subr.bf16.mxu0 %v1085
      %1326 = vmatpush1.bf16.msra.mxu0 %v1084
      %1327 = vmatprep.subr.bf16.mxu0 %v1083
      %1328 = vmatpush1.bf16.msra.mxu0 %v1082
      %1329 = vmatprep.subr.bf16.mxu0 %v1113
      %1330 = vmatpush2.bf16.msra.mxu0 %v1112
      %1331 = vmatprep.subr.bf16.mxu0 %v1111
      %1332 = vmatpush2.bf16.msra.mxu0 %v1110
      %1333 = vmatprep.subr.bf16.mxu0 %v1109
      %1334 = vmatpush2.bf16.msra.mxu0 %v1108
      %1335 = vmatprep.subr.bf16.mxu0 %v1107
      %1336 = vmatpush2.bf16.msra.mxu0 %v1106
      %1337 = vmatprep.subr.bf16.mxu0 %v1105
      %1338 = vmatpush2.bf16.msra.mxu0 %v1104
      %1339 = vmatprep.subr.bf16.mxu0 %v1103
      %1340 = vmatpush2.bf16.msra.mxu0 %v1102
      %1341 = vmatprep.subr.bf16.mxu0 %v1101
      %1342 = vmatpush2.bf16.msra.mxu0 %v1100
      %1343 = vmatprep.subr.bf16.mxu0 %v1099
      %1344 = vmatpush2.bf16.msra.mxu0 %v1098
      %1345 = vmatprep.mubr.bf16.mxu0 %v743
      %1346 = vmatmul.mubr.bf16.gmra.mxu0 %v742
      %v1347 = vpop.f32.mrf.mxu0
      %v1348 = vadd.f32 %v1245, %v1347
      %v1349 = vpop.f32.mrf.mxu0
      %v1350 = vadd.f32 %v1247, %v1349
      %v1351 = vpop.f32.mrf.mxu0
      %v1352 = vadd.f32 %v1249, %v1351
      %v1353 = vpop.f32.mrf.mxu0
      %v1354 = vadd.f32 %v1251, %v1353
      %1355 = vmatprep.mubr.bf16.mxu0 %v748
      %1356 = vmatmul.mubr.bf16.gmra.mxu0 %v747
      %v1357 = vpop.f32.mrf.mxu0
      %v1358 = vadd.f32 %v1255, %v1357
      %v1359 = vpop.f32.mrf.mxu0
      %v1360 = vadd.f32 %v1257, %v1359
      %v1361 = vpop.f32.mrf.mxu0
      %v1362 = vadd.f32 %v1259, %v1361
      %v1363 = vpop.f32.mrf.mxu0
      %v1364 = vadd.f32 %v1261, %v1363
      %1365 = vmatprep.mubr.bf16.mxu0 %v753
      %1366 = vmatmul.mubr.bf16.gmra.mxu0 %v752
      %v1367 = vpop.f32.mrf.mxu0
      %v1368 = vadd.f32 %v1265, %v1367
      %v1369 = vpop.f32.mrf.mxu0
      %v1370 = vadd.f32 %v1267, %v1369
      %v1371 = vpop.f32.mrf.mxu0
      %v1372 = vadd.f32 %v1269, %v1371
      %v1373 = vpop.f32.mrf.mxu0
      %v1374 = vadd.f32 %v1271, %v1373
      %1375 = vmatprep.mubr.bf16.mxu0 %v758
      %1376 = vmatmul.mubr.bf16.gmra.mxu0 %v757
      %v1377 = vpop.f32.mrf.mxu0
      %v1378 = vadd.f32 %v1275, %v1377
      %v1379 = vpop.f32.mrf.mxu0
      %v1380 = vadd.f32 %v1277, %v1379
      %v1381 = vpop.f32.mrf.mxu0
      %v1382 = vadd.f32 %v1279, %v1381
      %v1383 = vpop.f32.mrf.mxu0
      %v1384 = vadd.f32 %v1281, %v1383
      %1385 = vmatprep.mubr.bf16.mxu0 %v763
      %1386 = vmatmul.mubr.bf16.gmra.mxu0 %v762
      %v1387 = vpop.f32.mrf.mxu0
      %v1388 = vadd.f32 %v1285, %v1387
      %v1389 = vpop.f32.mrf.mxu0
      %v1390 = vadd.f32 %v1287, %v1389
      %v1391 = vpop.f32.mrf.mxu0
      %v1392 = vadd.f32 %v1289, %v1391
      %v1393 = vpop.f32.mrf.mxu0
      %v1394 = vadd.f32 %v1291, %v1393
      %1395 = vmatprep.mubr.bf16.mxu0 %v768
      %1396 = vmatmul.mubr.bf16.gmra.mxu0 %v767
      %v1397 = vpop.f32.mrf.mxu0
      %v1398 = vadd.f32 %v1295, %v1397
      %v1399 = vpop.f32.mrf.mxu0
      %v1400 = vadd.f32 %v1297, %v1399
      %v1401 = vpop.f32.mrf.mxu0
      %v1402 = vadd.f32 %v1299, %v1401
      %v1403 = vpop.f32.mrf.mxu0
      %v1404 = vadd.f32 %v1301, %v1403
      %1405 = vmatprep.mubr.bf16.mxu0 %v773
      %1406 = vmatmul.mubr.bf16.gmra.mxu0 %v772
      %v1407 = vpop.f32.mrf.mxu0
      %v1408 = vadd.f32 %v1305, %v1407
      %v1409 = vpop.f32.mrf.mxu0
      %v1410 = vadd.f32 %v1307, %v1409
      %v1411 = vpop.f32.mrf.mxu0
      %v1412 = vadd.f32 %v1309, %v1411
      %v1413 = vpop.f32.mrf.mxu0
      %v1414 = vadd.f32 %v1311, %v1413
      %1415 = vdwg.mxu0
      %1416 = vmatprep.subr.bf16.mxu0 %v1129
      %1417 = vmatpush1.bf16.msra.mxu0 %v1128
      %1418 = vmatprep.subr.bf16.mxu0 %v1127
      %1419 = vmatpush1.bf16.msra.mxu0 %v1126
      %1420 = vmatprep.subr.bf16.mxu0 %v1125
      %1421 = vmatpush1.bf16.msra.mxu0 %v1124
      %1422 = vmatprep.subr.bf16.mxu0 %v1123
      %1423 = vmatpush1.bf16.msra.mxu0 %v1122
      %1424 = vmatprep.subr.bf16.mxu0 %v1121
      %1425 = vmatpush1.bf16.msra.mxu0 %v1120
      %1426 = vmatprep.subr.bf16.mxu0 %v1119
      %1427 = vmatpush1.bf16.msra.mxu0 %v1118
      %1428 = vmatprep.subr.bf16.mxu0 %v1117
      %1429 = vmatpush1.bf16.msra.mxu0 %v1116
      %1430 = vmatprep.subr.bf16.mxu0 %v1115
      %1431 = vmatpush1.bf16.msra.mxu0 %v1114
      %1432 = vmatprep.subr.bf16.mxu0 0
      %1433 = vmatpush2.bf16.msra.mxu0 0
      %1434 = vmatprep.subr.bf16.mxu0 0
      %1435 = vmatpush2.bf16.msra.mxu0 0
      %1436 = vmatprep.subr.bf16.mxu0 0
      %1437 = vmatpush2.bf16.msra.mxu0 0
      %1438 = vmatprep.subr.bf16.mxu0 0
      %1439 = vmatpush2.bf16.msra.mxu0 0
      %1440 = vmatprep.subr.bf16.mxu0 0
      %1441 = vmatpush2.bf16.msra.mxu0 0
      %1442 = vmatprep.subr.bf16.mxu0 0
      %1443 = vmatpush2.bf16.msra.mxu0 0
      %1444 = vmatprep.subr.bf16.mxu0 0
      %1445 = vmatpush2.bf16.msra.mxu0 0
      %1446 = vmatprep.subr.bf16.mxu0 0
      %1447 = vmatpush2.bf16.msra.mxu0 0
      %1448 = vmatprep.mubr.bf16.mxu0 0
      %1449 = vmatmul.mubr.bf16.gmra.mxu0 %v744
      %v1450 = vpop.f32.mrf.mxu0
      %v1451 = vadd.f32 %v1348, %v1450
      %v1452 = vpop.f32.mrf.mxu0
      %v1453 = vadd.f32 %v1350, %v1452
      %v1454 = vpop.f32.mrf.mxu0
      %v1455 = vadd.f32 %v1352, %v1454
      %v1456 = vpop.f32.mrf.mxu0
      %v1457 = vadd.f32 %v1354, %v1456
      %1458 = vmatprep.mubr.bf16.mxu0 0
      %1459 = vmatmul.mubr.bf16.gmra.mxu0 %v749
      %v1460 = vpop.f32.mrf.mxu0
      %v1461 = vadd.f32 %v1358, %v1460
      %v1462 = vpop.f32.mrf.mxu0
      %v1463 = vadd.f32 %v1360, %v1462
      %v1464 = vpop.f32.mrf.mxu0
      %v1465 = vadd.f32 %v1362, %v1464
      %v1466 = vpop.f32.mrf.mxu0
      %v1467 = vadd.f32 %v1364, %v1466
      %1468 = vmatprep.mubr.bf16.mxu0 0
      %1469 = vmatmul.mubr.bf16.gmra.mxu0 %v754
      %v1470 = vpop.f32.mrf.mxu0
      %v1471 = vadd.f32 %v1368, %v1470
      %v1472 = vpop.f32.mrf.mxu0
      %v1473 = vadd.f32 %v1370, %v1472
      %v1474 = vpop.f32.mrf.mxu0
      %v1475 = vadd.f32 %v1372, %v1474
      %v1476 = vpop.f32.mrf.mxu0
      %v1477 = vadd.f32 %v1374, %v1476
      %1478 = vmatprep.mubr.bf16.mxu0 0
      %1479 = vmatmul.mubr.bf16.gmra.mxu0 %v759
      %v1480 = vpop.f32.mrf.mxu0
      %v1481 = vadd.f32 %v1378, %v1480
      %v1482 = vpop.f32.mrf.mxu0
      %v1483 = vadd.f32 %v1380, %v1482
      %v1484 = vpop.f32.mrf.mxu0
      %v1485 = vadd.f32 %v1382, %v1484
      %v1486 = vpop.f32.mrf.mxu0
      %v1487 = vadd.f32 %v1384, %v1486
      %1488 = vmatprep.mubr.bf16.mxu0 0
      %1489 = vmatmul.mubr.bf16.gmra.mxu0 %v764
      %v1490 = vpop.f32.mrf.mxu0
      %v1491 = vadd.f32 %v1388, %v1490
      %v1492 = vpop.f32.mrf.mxu0
      %v1493 = vadd.f32 %v1390, %v1492
      %v1494 = vpop.f32.mrf.mxu0
      %v1495 = vadd.f32 %v1392, %v1494
      %v1496 = vpop.f32.mrf.mxu0
      %v1497 = vadd.f32 %v1394, %v1496
      %1498 = vmatprep.mubr.bf16.mxu0 0
      %1499 = vmatmul.mubr.bf16.gmra.mxu0 %v769
      %v1500 = vpop.f32.mrf.mxu0
      %v1501 = vadd.f32 %v1398, %v1500
      %v1502 = vpop.f32.mrf.mxu0
      %v1503 = vadd.f32 %v1400, %v1502
      %v1504 = vpop.f32.mrf.mxu0
      %v1505 = vadd.f32 %v1402, %v1504
      %v1506 = vpop.f32.mrf.mxu0
      %v1507 = vadd.f32 %v1404, %v1506
      %1508 = vmatprep.mubr.bf16.mxu0 0
      %1509 = vmatmul.mubr.bf16.gmra.mxu0 %v774
      %v1510 = vpop.f32.mrf.mxu0
      %v1511 = vadd.f32 %v1408, %v1510
      %v1512 = vpop.f32.mrf.mxu0
      %v1513 = vadd.f32 %v1410, %v1512
      %v1514 = vpop.f32.mrf.mxu0
      %v1515 = vadd.f32 %v1412, %v1514
      %v1516 = vpop.f32.mrf.mxu0
      %v1517 = vadd.f32 %v1414, %v1516
      %1518 = vdwg.mxu0
      %v1519 = vmax.f32 %v1451, 0.0
      %v1520 = vmax.f32 %v1453, 0.0
      %v1521 = vmax.f32 %v1455, 0.0
      %v1522 = vmax.f32 %v1457, 0.0
      %v1523 = vmax.f32 %v1461, 0.0
      %v1524 = vmax.f32 %v1463, 0.0
      %v1525 = vmax.f32 %v1465, 0.0
      %v1526 = vmax.f32 %v1467, 0.0
      %v1527 = vmax.f32 %v1471, 0.0
      %v1528 = vmax.f32 %v1473, 0.0
      %v1529 = vmax.f32 %v1475, 0.0
      %v1530 = vmax.f32 %v1477, 0.0
      %v1531 = vmax.f32 %v1481, 0.0
      %v1532 = vmax.f32 %v1483, 0.0
      %v1533 = vmax.f32 %v1485, 0.0
      %v1534 = vmax.f32 %v1487, 0.0
      %v1535 = vmax.f32 %v1491, 0.0
      %v1536 = vmax.f32 %v1493, 0.0
      %v1537 = vmax.f32 %v1495, 0.0
      %v1538 = vmax.f32 %v1497, 0.0
      %v1539 = vmax.f32 %v1501, 0.0
      %v1540 = vmax.f32 %v1503, 0.0
      %v1541 = vmax.f32 %v1505, 0.0
      %v1542 = vmax.f32 %v1507, 0.0
      %v1543 = vmax.f32 %v1511, 0.0
      %v1544 = vmax.f32 %v1513, 0.0
      %v1545 = vmax.f32 %v1515, 0.0
      %v1546 = vmax.f32 %v1517, 0.0
      %v1547 = vpack.c.bf16 %v1521, %v1519
      %v1548 = vpack.c.bf16 %v1522, %v1520
      %v1549 = vpack.c.bf16 %v1525, %v1523
      %v1550 = vpack.c.bf16 %v1526, %v1524
      %v1551 = vpack.c.bf16 %v1529, %v1527
      %v1552 = vpack.c.bf16 %v1530, %v1528
      %v1553 = vpack.c.bf16 %v1533, %v1531
      %v1554 = vpack.c.bf16 %v1534, %v1532
      %v1555 = vpack.c.bf16 %v1537, %v1535
      %v1556 = vpack.c.bf16 %v1538, %v1536
      %v1557 = vpack.c.bf16 %v1541, %v1539
      %v1558 = vpack.c.bf16 %v1542, %v1540
      %v1559 = vpack.c.bf16 %v1545, %v1543
      %v1560 = vpack.c.bf16 %v1546, %v1544
      %v1561 = vld [vmem:[%s3] sm:$0xf]
      %v1562 = vld [vmem:[%s3 + $0x4] sm:$0xf]
      %v1563 = vld [vmem:[%s3 + $0x8] sm:$0xf]
      %v1564 = vld [vmem:[%s3 + $0xc] sm:$0xf]
      %v1565 = vld [vmem:[%s3 + $0x10] sm:$0xf]
      %v1566 = vld [vmem:[%s3 + $0x14] sm:$0xf]
      %v1567 = vld [vmem:[%s3 + $0x18] sm:$0xf]
      %v1575 = vunpack.c.l.b16 %v1561
      %v1576 = vunpack.c.l.b16 %v1562
      %v1577 = vunpack.c.l.b16 %v1563
      %v1578 = vunpack.c.l.b16 %v1564
      %v1579 = vunpack.c.l.b16 %v1565
      %v1580 = vunpack.c.l.b16 %v1566
      %v1581 = vunpack.c.l.b16 %v1567
      %v1582 = vpack.c.b16 %v1576, %v1575
      %v1583 = vpack.c.b16 %v1578, %v1577
      %v1584 = vpack.c.b16 %v1580, %v1579
      %v1585 = vpack.c.b16 %v1581, %v1581
      %vm1586 = vcmask 916480
      %v1588 = vsel %vm1586, %v1582, 0
      %v1591 = vsel %vm1586, %v1583, 0
      %v1594 = vsel %vm1586, %v1584, 0
      %v1597 = vsel %vm1586, %v1585, 0
      %1599 = vmatprep.subr.bf16.mxu0 0
      %1600 = vmatpush1.bf16.msra.mxu0 0
      %1601 = vmatprep.subr.bf16.mxu0 %v1560
      %1602 = vmatpush1.bf16.msra.mxu0 %v1559
      %1603 = vmatprep.subr.bf16.mxu0 %v1558
      %1604 = vmatpush1.bf16.msra.mxu0 %v1557
      %1605 = vmatprep.subr.bf16.mxu0 %v1556
      %1606 = vmatpush1.bf16.msra.mxu0 %v1555
      %1607 = vmatprep.subr.bf16.mxu0 %v1554
      %1608 = vmatpush1.bf16.msra.mxu0 %v1553
      %1609 = vmatprep.subr.bf16.mxu0 %v1552
      %1610 = vmatpush1.bf16.msra.mxu0 %v1551
      %1611 = vmatprep.subr.bf16.mxu0 %v1550
      %1612 = vmatpush1.bf16.msra.mxu0 %v1549
      %1613 = vmatprep.subr.bf16.mxu0 %v1548
      %1614 = vmatpush1.bf16.msra.mxu0 %v1547
      %1615 = vmatprep.subr.bf16.mxu0 0
      %1616 = vmatpush2.bf16.msra.mxu0 0
      %1617 = vmatprep.subr.bf16.mxu0 0
      %1618 = vmatpush2.bf16.msra.mxu0 0
      %1619 = vmatprep.subr.bf16.mxu0 0
      %1620 = vmatpush2.bf16.msra.mxu0 0
      %1621 = vmatprep.subr.bf16.mxu0 0
      %1622 = vmatpush2.bf16.msra.mxu0 0
      %1623 = vmatprep.subr.bf16.mxu0 0
      %1624 = vmatpush2.bf16.msra.mxu0 0
      %1625 = vmatprep.subr.bf16.mxu0 0
      %1626 = vmatpush2.bf16.msra.mxu0 0
      %1627 = vmatprep.subr.bf16.mxu0 0
      %1628 = vmatpush2.bf16.msra.mxu0 0
      %1629 = vmatprep.subr.bf16.mxu0 0
      %1630 = vmatpush2.bf16.msra.mxu0 0
      %1631 = vmatprep.mubr.bf16.mxu0 0
      %1632 = vmatmul.mubr.bf16.gmra.mxu0 %v1588
      %v1633 = vpop.f32.mrf.mxu0
      %v1634 = vadd.f32 0.0, %v1633
      %v1635 = vpop.f32.mrf.mxu0
      %v1636 = vadd.f32 0.0, %v1635
      %v1637 = vpop.f32.mrf.mxu0
      %v1638 = vadd.f32 0.0, %v1637
      %v1639 = vpop.f32.mrf.mxu0
      %v1640 = vadd.f32 0.0, %v1639
      %1641 = vmatprep.mubr.bf16.mxu0 0
      %1642 = vmatmul.mubr.bf16.gmra.mxu0 %v1591
      %v1643 = vpop.f32.mrf.mxu0
      %v1644 = vadd.f32 0.0, %v1643
      %v1645 = vpop.f32.mrf.mxu0
      %v1646 = vadd.f32 0.0, %v1645
      %v1647 = vpop.f32.mrf.mxu0
      %v1648 = vadd.f32 0.0, %v1647
      %v1649 = vpop.f32.mrf.mxu0
      %v1650 = vadd.f32 0.0, %v1649
      %1651 = vmatprep.mubr.bf16.mxu0 0
      %1652 = vmatmul.mubr.bf16.gmra.mxu0 %v1594
      %v1653 = vpop.f32.mrf.mxu0
      %v1654 = vadd.f32 0.0, %v1653
      %v1655 = vpop.f32.mrf.mxu0
      %v1656 = vadd.f32 0.0, %v1655
      %v1657 = vpop.f32.mrf.mxu0
      %v1658 = vadd.f32 0.0, %v1657
      %v1659 = vpop.f32.mrf.mxu0
      %v1660 = vadd.f32 0.0, %v1659
      %1661 = vmatprep.mubr.bf16.mxu0 0
      %1662 = vmatmul.mubr.bf16.gmra.mxu0 %v1597
      %v1663 = vpop.f32.mrf.mxu0
      %v1664 = vadd.f32 0.0, %v1663
      %v1665 = vpop.f32.mrf.mxu0
      %v1666 = vadd.f32 0.0, %v1665
      %v1667 = vpop.f32.mrf.mxu0
      %v1668 = vpop.f32.mrf.mxu0
      %1669 = vdwg.mxu0
      %v1670 = vld [vmem:[%s4] sm:$0xf]
      %v1671 = vld [vmem:[%s4 + $0x4] sm:$0xf]
      %v1672 = vld [vmem:[%s4 + $0x8] sm:$0xf]
      %v1673 = vld [vmem:[%s4 + $0xc] sm:$0xf]
      %v1674 = vld [vmem:[%s4 + $0x10] sm:$0xf]
      %v1675 = vld [vmem:[%s4 + $0x14] sm:$0xf]
      %v1676 = vld [vmem:[%s4 + $0x18] sm:$0xf]
      %v1684 = vunpack.c.l.b16 %v1670
      %v1685 = vunpack.c.l.b16 %v1671
      %v1686 = vunpack.c.l.b16 %v1672
      %v1687 = vunpack.c.l.b16 %v1673
      %v1688 = vunpack.c.l.b16 %v1674
      %v1689 = vunpack.c.l.b16 %v1675
      %v1690 = vunpack.c.l.b16 %v1676
      %v1691 = vpack.c.b16 %v1685, %v1684
      %v1692 = vpack.c.b16 %v1687, %v1686
      %v1693 = vpack.c.b16 %v1689, %v1688
      %v1694 = vpack.c.b16 %v1690, %v1690
      %v1696 = vsel %vm1586, %v1691, 0
      %v1699 = vsel %vm1586, %v1692, 0
      %v1702 = vsel %vm1586, %v1693, 0
      %v1705 = vsel %vm1586, %v1694, 0
      %1707 = vmatprep.subr.bf16.mxu0 0
      %1708 = vmatpush1.bf16.msra.mxu0 0
      %1709 = vmatprep.subr.bf16.mxu0 %v1560
      %1710 = vmatpush1.bf16.msra.mxu0 %v1559
      %1711 = vmatprep.subr.bf16.mxu0 %v1558
      %1712 = vmatpush1.bf16.msra.mxu0 %v1557
      %1713 = vmatprep.subr.bf16.mxu0 %v1556
      %1714 = vmatpush1.bf16.msra.mxu0 %v1555
      %1715 = vmatprep.subr.bf16.mxu0 %v1554
      %1716 = vmatpush1.bf16.msra.mxu0 %v1553
      %1717 = vmatprep.subr.bf16.mxu0 %v1552
      %1718 = vmatpush1.bf16.msra.mxu0 %v1551
      %1719 = vmatprep.subr.bf16.mxu0 %v1550
      %1720 = vmatpush1.bf16.msra.mxu0 %v1549
      %1721 = vmatprep.subr.bf16.mxu0 %v1548
      %1722 = vmatpush1.bf16.msra.mxu0 %v1547
      %1723 = vmatprep.subr.bf16.mxu0 0
      %1724 = vmatpush2.bf16.msra.mxu0 0
      %1725 = vmatprep.subr.bf16.mxu0 0
      %1726 = vmatpush2.bf16.msra.mxu0 0
      %1727 = vmatprep.subr.bf16.mxu0 0
      %1728 = vmatpush2.bf16.msra.mxu0 0
      %1729 = vmatprep.subr.bf16.mxu0 0
      %1730 = vmatpush2.bf16.msra.mxu0 0
      %1731 = vmatprep.subr.bf16.mxu0 0
      %1732 = vmatpush2.bf16.msra.mxu0 0
      %1733 = vmatprep.subr.bf16.mxu0 0
      %1734 = vmatpush2.bf16.msra.mxu0 0
      %1735 = vmatprep.subr.bf16.mxu0 0
      %1736 = vmatpush2.bf16.msra.mxu0 0
      %1737 = vmatprep.subr.bf16.mxu0 0
      %1738 = vmatpush2.bf16.msra.mxu0 0
      %1739 = vmatprep.mubr.bf16.mxu0 0
      %1740 = vmatmul.mubr.bf16.gmra.mxu0 %v1696
      %v1741 = vpop.f32.mrf.mxu0
      %v1742 = vadd.f32 0.0, %v1741
      %v1743 = vpop.f32.mrf.mxu0
      %v1744 = vadd.f32 0.0, %v1743
      %v1745 = vpop.f32.mrf.mxu0
      %v1746 = vadd.f32 0.0, %v1745
      %v1747 = vpop.f32.mrf.mxu0
      %v1748 = vadd.f32 0.0, %v1747
      %1749 = vmatprep.mubr.bf16.mxu0 0
      %1750 = vmatmul.mubr.bf16.gmra.mxu0 %v1699
      %v1751 = vpop.f32.mrf.mxu0
      %v1752 = vadd.f32 0.0, %v1751
      %v1753 = vpop.f32.mrf.mxu0
      %v1754 = vadd.f32 0.0, %v1753
      %v1755 = vpop.f32.mrf.mxu0
      %v1756 = vadd.f32 0.0, %v1755
      %v1757 = vpop.f32.mrf.mxu0
      %v1758 = vadd.f32 0.0, %v1757
      %1759 = vmatprep.mubr.bf16.mxu0 0
      %1760 = vmatmul.mubr.bf16.gmra.mxu0 %v1702
      %v1761 = vpop.f32.mrf.mxu0
      %v1762 = vadd.f32 0.0, %v1761
      %v1763 = vpop.f32.mrf.mxu0
      %v1764 = vadd.f32 0.0, %v1763
      %v1765 = vpop.f32.mrf.mxu0
      %v1766 = vadd.f32 0.0, %v1765
      %v1767 = vpop.f32.mrf.mxu0
      %v1768 = vadd.f32 0.0, %v1767
      %1769 = vmatprep.mubr.bf16.mxu0 0
      %1770 = vmatmul.mubr.bf16.gmra.mxu0 %v1705
      %v1771 = vpop.f32.mrf.mxu0
      %v1772 = vadd.f32 0.0, %v1771
      %v1773 = vpop.f32.mrf.mxu0
      %v1774 = vadd.f32 0.0, %v1773
      %v1775 = vpop.f32.mrf.mxu0
      %v1776 = vpop.f32.mrf.mxu0
      %1777 = vdwg.mxu0
      %v1778 = vmax.f32 %v1634, %v1742
      %v1779 = vmax.f32 %v1636, %v1744
      %v1780 = vmax.f32 %v1638, %v1746
      %v1781 = vmax.f32 %v1640, %v1748
      %v1782 = vmax.f32 %v1644, %v1752
      %v1783 = vmax.f32 %v1646, %v1754
      %v1784 = vmax.f32 %v1648, %v1756
      %v1785 = vmax.f32 %v1650, %v1758
      %v1786 = vmax.f32 %v1654, %v1762
      %v1787 = vmax.f32 %v1656, %v1764
      %v1788 = vmax.f32 %v1658, %v1766
      %v1789 = vmax.f32 %v1660, %v1768
      %v1790 = vmax.f32 %v1664, %v1772
      %v1791 = vmax.f32 %v1666, %v1774
      %v1792 = vmax.f32 %v1778, %v1779
      %v1793 = vmax.f32 %v1780, %v1781
      %v1794 = vmax.f32 %v1782, %v1783
      %v1795 = vmax.f32 %v1784, %v1785
      %v1796 = vmax.f32 %v1786, %v1787
      %v1797 = vmax.f32 %v1788, %v1789
      %v1798 = vmax.f32 %v1790, %v1791
      %v1799 = vpack.c.bf16 %v1793, %v1792
      %v1800 = vpack.c.bf16 %v1795, %v1794
      %v1801 = vpack.c.bf16 %v1797, %v1796
      %v1802 = vpack.c.bf16 %v1798, %v1798
      %v1803 = vld [vmem:[%s5] sm:$0xf]
      %v1804 = vld [vmem:[%s5 + $0x4] sm:$0xf]
      %v1805 = vld [vmem:[%s5 + $0x8] sm:$0xf]
      %v1806 = vld [vmem:[%s5 + $0xc] sm:$0xf]
      %v1807 = vld [vmem:[%s5 + $0x10] sm:$0xf]
      %v1813 = vunpack.c.l.b16 %v1803
      %v1814 = vunpack.c.l.b16 %v1804
      %v1815 = vunpack.c.l.b16 %v1805
      %v1816 = vunpack.c.l.b16 %v1806
      %v1817 = vunpack.c.l.b16 %v1807
      %v1818 = vpack.c.b16 %v1814, %v1813
      %v1819 = vpack.c.b16 %v1816, %v1815
      %v1820 = vpack.c.b16 %v1817, %v1817
      %vm1821 = vcmask 457728
      %v1823 = vsel %vm1821, %v1818, 0
      %v1826 = vsel %vm1821, %v1819, 0
      %v1829 = vsel %vm1821, %v1820, 0
      %vm1831 = vcmask 1043456
      %v1833 = vsel %vm1831, %v1802, 0
      %1835 = vmatprep.subr.bf16.mxu0 0
      %1836 = vmatpush1.bf16.msra.mxu0 0
      %1837 = vmatprep.subr.bf16.mxu0 0
      %1838 = vmatpush1.bf16.msra.mxu0 0
      %1839 = vmatprep.subr.bf16.mxu0 0
      %1840 = vmatpush1.bf16.msra.mxu0 0
      %1841 = vmatprep.subr.bf16.mxu0 0
      %1842 = vmatpush1.bf16.msra.mxu0 0
      %1843 = vmatprep.subr.bf16.mxu0 0
      %1844 = vmatpush1.bf16.msra.mxu0 %v1833
      %1845 = vmatprep.subr.bf16.mxu0 0
      %1846 = vmatpush1.bf16.msra.mxu0 %v1801
      %1847 = vmatprep.subr.bf16.mxu0 0
      %1848 = vmatpush1.bf16.msra.mxu0 %v1800
      %1849 = vmatprep.subr.bf16.mxu0 0
      %1850 = vmatpush1.bf16.msra.mxu0 %v1799
      %1851 = vmatprep.subr.bf16.mxu0 0
      %1852 = vmatpush2.bf16.msra.mxu0 0
      %1853 = vmatprep.subr.bf16.mxu0 0
      %1854 = vmatpush2.bf16.msra.mxu0 0
      %1855 = vmatprep.subr.bf16.mxu0 0
      %1856 = vmatpush2.bf16.msra.mxu0 0
      %1857 = vmatprep.subr.bf16.mxu0 0
      %1858 = vmatpush2.bf16.msra.mxu0 0
      %1859 = vmatprep.subr.bf16.mxu0 0
      %1860 = vmatpush2.bf16.msra.mxu0 0
      %1861 = vmatprep.subr.bf16.mxu0 0
      %1862 = vmatpush2.bf16.msra.mxu0 0
      %1863 = vmatprep.subr.bf16.mxu0 0
      %1864 = vmatpush2.bf16.msra.mxu0 0
      %1865 = vmatprep.subr.bf16.mxu0 0
      %1866 = vmatpush2.bf16.msra.mxu0 0
      %1867 = vmatprep.mubr.bf16.mxu0 0
      %1868 = vmatmul.mubr.bf16.gmra.mxu0 %v1823
      %v1869 = vpop.f32.mrf.mxu0
      %v1870 = vadd.f32 0.0, %v1869
      %v1871 = vpop.f32.mrf.mxu0
      %v1872 = vpop.f32.mrf.mxu0
      %v1873 = vadd.f32 0.0, %v1872
      %v1874 = vpop.f32.mrf.mxu0
      %1875 = vmatprep.mubr.bf16.mxu0 0
      %1876 = vmatmul.mubr.bf16.gmra.mxu0 %v1826
      %v1877 = vpop.f32.mrf.mxu0
      %v1878 = vadd.f32 0.0, %v1877
      %v1879 = vpop.f32.mrf.mxu0
      %v1880 = vpop.f32.mrf.mxu0
      %v1881 = vadd.f32 0.0, %v1880
      %v1882 = vpop.f32.mrf.mxu0
      %1883 = vmatprep.mubr.bf16.mxu0 0
      %1884 = vmatmul.mubr.bf16.gmra.mxu0 %v1829
      %v1885 = vpop.f32.mrf.mxu0
      %v1886 = vadd.f32 0.0, %v1885
      %v1887 = vpop.f32.mrf.mxu0
      %v1888 = vpop.f32.mrf.mxu0
      %v1889 = vpop.f32.mrf.mxu0
      %1890 = vdwg.mxu0
      %v1891 = vpack.c.bf16 %v1873, %v1870
      %v1892 = vpack.c.bf16 %v1881, %v1878
      %v1893 = vpack.c.bf16 %v1886, %v1886
      %v1894 = vld [vmem:[%s6] sm:$0xff]
      %v1895 = vld [vmem:[%s6 + $0x8] sm:$0xff]
      %v1896 = vld [vmem:[%s6 + $0x10] sm:$0xff]
      %v1897 = vld [vmem:[%s6 + $0x18] sm:$0xff]
      %v1898 = vld [vmem:[%s6 + $0x20] sm:$0xff]
      %v1899 = vld [vmem:[%s6 + $0x28] sm:$0xff]
      %v1900 = vld [vmem:[%s6 + $0x30] sm:$0xff]
      %v1901 = vld [vmem:[%s6 + $0x38] sm:$0xff]
      %v1902 = vld [vmem:[%s6 + $0x40] sm:$0xff]
      %v1903 = vld [vmem:[%s6 + $0x48] sm:$0xff]
      %v1904 = vld [vmem:[%s6 + $0x50] sm:$0xff]
      %v1905 = vld [vmem:[%s6 + $0x58] sm:$0xff]
      %v1906 = vld [vmem:[%s6 + $0x60] sm:$0xff]
      %v1907 = vld [vmem:[%s6 + $0x68] sm:$0xff]
      %v1908 = vld [vmem:[%s6 + $0x70] sm:$0xff]
      %v1909 = vld [vmem:[%s6 + $0x78] sm:$0xff]
      %s1910 = scalar_lea.vmem %s5, 20
      %v1911 = vld [vmem:[%s1910] sm:$0xf]
      %v1912 = vld [vmem:[%s1910 + $0x4] sm:$0xf]
      %v1913 = vld [vmem:[%s1910 + $0x8] sm:$0xf]
      %v1914 = vld [vmem:[%s1910 + $0xc] sm:$0xf]
      %v1915 = vld [vmem:[%s1910 + $0x10] sm:$0xf]
      %v1921 = vunpack.c.l.b16 %v1911
      %v1922 = vunpack.c.l.b16 %v1912
      %v1923 = vunpack.c.l.b16 %v1913
      %v1924 = vunpack.c.l.b16 %v1914
      %v1925 = vunpack.c.l.b16 %v1915
      %v1926 = vpack.c.b16 %v1922, %v1921
      %v1927 = vpack.c.b16 %v1924, %v1923
      %v1928 = vpack.c.b16 %v1925, %v1925
      %v1930 = vsel %vm1821, %v1926, 0
      %v1933 = vsel %vm1821, %v1927, 0
      %v1936 = vsel %vm1821, %v1928, 0
      %1938 = vmatprep.subr.bf16.mxu0 0
      %1939 = vmatpush1.bf16.msra.mxu0 0
      %1940 = vmatprep.subr.bf16.mxu0 0
      %1941 = vmatpush1.bf16.msra.mxu0 0
      %1942 = vmatprep.subr.bf16.mxu0 0
      %1943 = vmatpush1.bf16.msra.mxu0 0
      %1944 = vmatprep.subr.bf16.mxu0 0
      %1945 = vmatpush1.bf16.msra.mxu0 0
      %1946 = vmatprep.subr.bf16.mxu0 0
      %1947 = vmatpush1.bf16.msra.mxu0 %v1833
      %1948 = vmatprep.subr.bf16.mxu0 0
      %1949 = vmatpush1.bf16.msra.mxu0 %v1801
      %1950 = vmatprep.subr.bf16.mxu0 0
      %1951 = vmatpush1.bf16.msra.mxu0 %v1800
      %1952 = vmatprep.subr.bf16.mxu0 0
      %1953 = vmatpush1.bf16.msra.mxu0 %v1799
      %1954 = vmatprep.subr.bf16.mxu0 0
      %1955 = vmatpush2.bf16.msra.mxu0 0
      %1956 = vmatprep.subr.bf16.mxu0 0
      %1957 = vmatpush2.bf16.msra.mxu0 0
      %1958 = vmatprep.subr.bf16.mxu0 0
      %1959 = vmatpush2.bf16.msra.mxu0 0
      %1960 = vmatprep.subr.bf16.mxu0 0
      %1961 = vmatpush2.bf16.msra.mxu0 0
      %1962 = vmatprep.subr.bf16.mxu0 0
      %1963 = vmatpush2.bf16.msra.mxu0 0
      %1964 = vmatprep.subr.bf16.mxu0 0
      %1965 = vmatpush2.bf16.msra.mxu0 0
      %1966 = vmatprep.subr.bf16.mxu0 0
      %1967 = vmatpush2.bf16.msra.mxu0 0
      %1968 = vmatprep.subr.bf16.mxu0 0
      %1969 = vmatpush2.bf16.msra.mxu0 0
      %1970 = vmatprep.mubr.bf16.mxu0 0
      %1971 = vmatmul.mubr.bf16.gmra.mxu0 %v1930
      %v1972 = vpop.f32.mrf.mxu0
      %v1973 = vadd.f32 0.0, %v1972
      %v1974 = vpop.f32.mrf.mxu0
      %v1975 = vpop.f32.mrf.mxu0
      %v1976 = vadd.f32 0.0, %v1975
      %v1977 = vpop.f32.mrf.mxu0
      %1978 = vmatprep.mubr.bf16.mxu0 0
      %1979 = vmatmul.mubr.bf16.gmra.mxu0 %v1933
      %v1980 = vpop.f32.mrf.mxu0
      %v1981 = vadd.f32 0.0, %v1980
      %v1982 = vpop.f32.mrf.mxu0
      %v1983 = vpop.f32.mrf.mxu0
      %v1984 = vadd.f32 0.0, %v1983
      %v1985 = vpop.f32.mrf.mxu0
      %1986 = vmatprep.mubr.bf16.mxu0 0
      %1987 = vmatmul.mubr.bf16.gmra.mxu0 %v1936
      %v1988 = vpop.f32.mrf.mxu0
      %v1989 = vadd.f32 0.0, %v1988
      %v1990 = vpop.f32.mrf.mxu0
      %v1991 = vpop.f32.mrf.mxu0
      %v1992 = vpop.f32.mrf.mxu0
      %1993 = vdwg.mxu0
      %v1994 = vpack.c.bf16 %v1976, %v1973
      %v1995 = vpack.c.bf16 %v1984, %v1981
      %v1996 = vpack.c.bf16 %v1989, %v1989
      %s1997 = scalar_lea.vmem %s6, 128
      %v1998 = vld [vmem:[%s1997] sm:$0xff]
      %v1999 = vld [vmem:[%s1997 + $0x8] sm:$0xff]
      %v2000 = vld [vmem:[%s1997 + $0x10] sm:$0xff]
      %v2001 = vld [vmem:[%s1997 + $0x18] sm:$0xff]
      %v2002 = vld [vmem:[%s1997 + $0x20] sm:$0xff]
      %v2003 = vld [vmem:[%s1997 + $0x28] sm:$0xff]
      %v2004 = vld [vmem:[%s1997 + $0x30] sm:$0xff]
      %v2005 = vld [vmem:[%s1997 + $0x38] sm:$0xff]
      %v2006 = vld [vmem:[%s1997 + $0x40] sm:$0xff]
      %v2007 = vld [vmem:[%s1997 + $0x48] sm:$0xff]
      %v2008 = vld [vmem:[%s1997 + $0x50] sm:$0xff]
      %v2009 = vld [vmem:[%s1997 + $0x58] sm:$0xff]
      %v2010 = vld [vmem:[%s1997 + $0x60] sm:$0xff]
      %v2011 = vld [vmem:[%s1997 + $0x68] sm:$0xff]
      %v2012 = vld [vmem:[%s1997 + $0x70] sm:$0xff]
      %v2013 = vld [vmem:[%s1997 + $0x78] sm:$0xff]
      %v2030 = vunpack.c.l.b16 %v1998
      %v2031 = vunpack.c.h.b16 %v1998
      %v2032 = vunpack.c.l.b16 %v1999
      %v2033 = vunpack.c.h.b16 %v1999
      %v2034 = vunpack.c.l.b16 %v2000
      %v2035 = vunpack.c.h.b16 %v2000
      %v2036 = vunpack.c.l.b16 %v2001
      %v2037 = vunpack.c.h.b16 %v2001
      %v2038 = vunpack.c.l.b16 %v2002
      %v2039 = vunpack.c.h.b16 %v2002
      %v2040 = vunpack.c.l.b16 %v2003
      %v2041 = vunpack.c.h.b16 %v2003
      %v2042 = vunpack.c.l.b16 %v2004
      %v2043 = vunpack.c.h.b16 %v2004
      %v2044 = vunpack.c.l.b16 %v2005
      %v2045 = vunpack.c.h.b16 %v2005
      %v2046 = vunpack.c.l.b16 %v2006
      %v2047 = vunpack.c.h.b16 %v2006
      %v2048 = vunpack.c.l.b16 %v2007
      %v2049 = vunpack.c.h.b16 %v2007
      %v2050 = vunpack.c.l.b16 %v2008
      %v2051 = vunpack.c.h.b16 %v2008
      %v2052 = vunpack.c.l.b16 %v2009
      %v2053 = vunpack.c.h.b16 %v2009
      %v2054 = vunpack.c.l.b16 %v2010
      %v2055 = vunpack.c.h.b16 %v2010
      %v2056 = vunpack.c.l.b16 %v2011
      %v2057 = vunpack.c.h.b16 %v2011
      %v2058 = vunpack.c.l.b16 %v2012
      %v2059 = vunpack.c.h.b16 %v2012
      %v2060 = vunpack.c.l.b16 %v2013
      %v2061 = vunpack.c.h.b16 %v2013
      %v2062 = vpack.c.b16 %v2032, %v2030
      %v2063 = vpack.c.b16 %v2033, %v2031
      %v2064 = vpack.c.b16 %v2036, %v2034
      %v2065 = vpack.c.b16 %v2037, %v2035
      %v2066 = vpack.c.b16 %v2040, %v2038
      %v2067 = vpack.c.b16 %v2041, %v2039
      %v2068 = vpack.c.b16 %v2044, %v2042
      %v2069 = vpack.c.b16 %v2045, %v2043
      %v2070 = vpack.c.b16 %v2048, %v2046
      %v2071 = vpack.c.b16 %v2049, %v2047
      %v2072 = vpack.c.b16 %v2052, %v2050
      %v2073 = vpack.c.b16 %v2053, %v2051
      %v2074 = vpack.c.b16 %v2056, %v2054
      %v2075 = vpack.c.b16 %v2057, %v2055
      %v2076 = vpack.c.b16 %v2060, %v2058
      %v2077 = vpack.c.b16 %v2061, %v2059
      %2094 = vmatprep.subr.bf16.mxu0 %v2077
      %2095 = vmatpush1.bf16.msra.mxu0 %v2076
      %2096 = vmatprep.subr.bf16.mxu0 %v2075
      %2097 = vmatpush1.bf16.msra.mxu0 %v2074
      %2098 = vmatprep.subr.bf16.mxu0 %v2073
      %2099 = vmatpush1.bf16.msra.mxu0 %v2072
      %2100 = vmatprep.subr.bf16.mxu0 %v2071
      %2101 = vmatpush1.bf16.msra.mxu0 %v2070
      %2102 = vmatprep.subr.bf16.mxu0 %v2069
      %2103 = vmatpush1.bf16.msra.mxu0 %v2068
      %2104 = vmatprep.subr.bf16.mxu0 %v2067
      %2105 = vmatpush1.bf16.msra.mxu0 %v2066
      %2106 = vmatprep.subr.bf16.mxu0 %v2065
      %2107 = vmatpush1.bf16.msra.mxu0 %v2064
      %2108 = vmatprep.subr.bf16.mxu0 %v2063
      %2109 = vmatpush1.bf16.msra.mxu0 %v2062
      %2110 = vmatprep.subr.bf16.mxu0 0
      %2111 = vmatpush2.bf16.msra.mxu0 0
      %2112 = vmatprep.subr.bf16.mxu0 0
      %2113 = vmatpush2.bf16.msra.mxu0 0
      %2114 = vmatprep.subr.bf16.mxu0 0
      %2115 = vmatpush2.bf16.msra.mxu0 0
      %2116 = vmatprep.subr.bf16.mxu0 0
      %2117 = vmatpush2.bf16.msra.mxu0 0
      %2118 = vmatprep.subr.bf16.mxu0 0
      %2119 = vmatpush2.bf16.msra.mxu0 0
      %2120 = vmatprep.subr.bf16.mxu0 0
      %2121 = vmatpush2.bf16.msra.mxu0 0
      %2122 = vmatprep.subr.bf16.mxu0 0
      %2123 = vmatpush2.bf16.msra.mxu0 0
      %2124 = vmatprep.subr.bf16.mxu0 0
      %2125 = vmatpush2.bf16.msra.mxu0 0
      %2126 = vmatprep.mubr.bf16.mxu0 0
      %2127 = vmatmul.mubr.bf16.gmra.mxu0 %v1994
      %v2128 = vpop.f32.mrf.mxu0
      %v2129 = vadd.f32 0.0, %v2128
      %v2130 = vpop.f32.mrf.mxu0
      %v2131 = vadd.f32 0.0, %v2130
      %v2132 = vpop.f32.mrf.mxu0
      %v2133 = vadd.f32 0.0, %v2132
      %v2134 = vpop.f32.mrf.mxu0
      %v2135 = vadd.f32 0.0, %v2134
      %2136 = vmatprep.mubr.bf16.mxu0 0
      %2137 = vmatmul.mubr.bf16.gmra.mxu0 %v1995
      %v2138 = vpop.f32.mrf.mxu0
      %v2139 = vadd.f32 0.0, %v2138
      %v2140 = vpop.f32.mrf.mxu0
      %v2141 = vadd.f32 0.0, %v2140
      %v2142 = vpop.f32.mrf.mxu0
      %v2143 = vadd.f32 0.0, %v2142
      %v2144 = vpop.f32.mrf.mxu0
      %v2145 = vadd.f32 0.0, %v2144
      %2146 = vmatprep.mubr.bf16.mxu0 0
      %2147 = vmatmul.mubr.bf16.gmra.mxu0 %v1996
      %v2148 = vpop.f32.mrf.mxu0
      %v2149 = vadd.f32 0.0, %v2148
      %v2150 = vpop.f32.mrf.mxu0
      %v2151 = vadd.f32 0.0, %v2150
      %v2152 = vpop.f32.mrf.mxu0
      %v2153 = vpop.f32.mrf.mxu0
      %2154 = vdwg.mxu0
      %v2171 = vunpack.c.l.b16 %v1894
      %v2172 = vunpack.c.h.b16 %v1894
      %v2173 = vunpack.c.l.b16 %v1895
      %v2174 = vunpack.c.h.b16 %v1895
      %v2175 = vunpack.c.l.b16 %v1896
      %v2176 = vunpack.c.h.b16 %v1896
      %v2177 = vunpack.c.l.b16 %v1897
      %v2178 = vunpack.c.h.b16 %v1897
      %v2179 = vunpack.c.l.b16 %v1898
      %v2180 = vunpack.c.h.b16 %v1898
      %v2181 = vunpack.c.l.b16 %v1899
      %v2182 = vunpack.c.h.b16 %v1899
      %v2183 = vunpack.c.l.b16 %v1900
      %v2184 = vunpack.c.h.b16 %v1900
      %v2185 = vunpack.c.l.b16 %v1901
      %v2186 = vunpack.c.h.b16 %v1901
      %v2187 = vunpack.c.l.b16 %v1902
      %v2188 = vunpack.c.h.b16 %v1902
      %v2189 = vunpack.c.l.b16 %v1903
      %v2190 = vunpack.c.h.b16 %v1903
      %v2191 = vunpack.c.l.b16 %v1904
      %v2192 = vunpack.c.h.b16 %v1904
      %v2193 = vunpack.c.l.b16 %v1905
      %v2194 = vunpack.c.h.b16 %v1905
      %v2195 = vunpack.c.l.b16 %v1906
      %v2196 = vunpack.c.h.b16 %v1906
      %v2197 = vunpack.c.l.b16 %v1907
      %v2198 = vunpack.c.h.b16 %v1907
      %v2199 = vunpack.c.l.b16 %v1908
      %v2200 = vunpack.c.h.b16 %v1908
      %v2201 = vunpack.c.l.b16 %v1909
      %v2202 = vunpack.c.h.b16 %v1909
      %v2203 = vpack.c.b16 %v2173, %v2171
      %v2204 = vpack.c.b16 %v2174, %v2172
      %v2205 = vpack.c.b16 %v2177, %v2175
      %v2206 = vpack.c.b16 %v2178, %v2176
      %v2207 = vpack.c.b16 %v2181, %v2179
      %v2208 = vpack.c.b16 %v2182, %v2180
      %v2209 = vpack.c.b16 %v2185, %v2183
      %v2210 = vpack.c.b16 %v2186, %v2184
      %v2211 = vpack.c.b16 %v2189, %v2187
      %v2212 = vpack.c.b16 %v2190, %v2188
      %v2213 = vpack.c.b16 %v2193, %v2191
      %v2214 = vpack.c.b16 %v2194, %v2192
      %v2215 = vpack.c.b16 %v2197, %v2195
      %v2216 = vpack.c.b16 %v2198, %v2196
      %v2217 = vpack.c.b16 %v2201, %v2199
      %v2218 = vpack.c.b16 %v2202, %v2200
      %2235 = vmatprep.subr.bf16.mxu0 %v2218
      %2236 = vmatpush1.bf16.msra.mxu0 %v2217
      %2237 = vmatprep.subr.bf16.mxu0 %v2216
      %2238 = vmatpush1.bf16.msra.mxu0 %v2215
      %2239 = vmatprep.subr.bf16.mxu0 %v2214
      %2240 = vmatpush1.bf16.msra.mxu0 %v2213
      %2241 = vmatprep.subr.bf16.mxu0 %v2212
      %2242 = vmatpush1.bf16.msra.mxu0 %v2211
      %2243 = vmatprep.subr.bf16.mxu0 %v2210
      %2244 = vmatpush1.bf16.msra.mxu0 %v2209
      %2245 = vmatprep.subr.bf16.mxu0 %v2208
      %2246 = vmatpush1.bf16.msra.mxu0 %v2207
      %2247 = vmatprep.subr.bf16.mxu0 %v2206
      %2248 = vmatpush1.bf16.msra.mxu0 %v2205
      %2249 = vmatprep.subr.bf16.mxu0 %v2204
      %2250 = vmatpush1.bf16.msra.mxu0 %v2203
      %2251 = vmatprep.subr.bf16.mxu0 0
      %2252 = vmatpush2.bf16.msra.mxu0 0
      %2253 = vmatprep.subr.bf16.mxu0 0
      %2254 = vmatpush2.bf16.msra.mxu0 0
      %2255 = vmatprep.subr.bf16.mxu0 0
      %2256 = vmatpush2.bf16.msra.mxu0 0
      %2257 = vmatprep.subr.bf16.mxu0 0
      %2258 = vmatpush2.bf16.msra.mxu0 0
      %2259 = vmatprep.subr.bf16.mxu0 0
      %2260 = vmatpush2.bf16.msra.mxu0 0
      %2261 = vmatprep.subr.bf16.mxu0 0
      %2262 = vmatpush2.bf16.msra.mxu0 0
      %2263 = vmatprep.subr.bf16.mxu0 0
      %2264 = vmatpush2.bf16.msra.mxu0 0
      %2265 = vmatprep.subr.bf16.mxu0 0
      %2266 = vmatpush2.bf16.msra.mxu0 0
      %2267 = vmatprep.mubr.bf16.mxu0 0
      %2268 = vmatmul.mubr.bf16.gmra.mxu0 %v1891
      %v2269 = vpop.f32.mrf.mxu0
      %v2270 = vadd.f32 %v2129, %v2269
      %v2271 = vpop.f32.mrf.mxu0
      %v2272 = vadd.f32 %v2131, %v2271
      %v2273 = vpop.f32.mrf.mxu0
      %v2274 = vadd.f32 %v2133, %v2273
      %v2275 = vpop.f32.mrf.mxu0
      %v2276 = vadd.f32 %v2135, %v2275
      %2277 = vmatprep.mubr.bf16.mxu0 0
      %2278 = vmatmul.mubr.bf16.gmra.mxu0 %v1892
      %v2279 = vpop.f32.mrf.mxu0
      %v2280 = vadd.f32 %v2139, %v2279
      %v2281 = vpop.f32.mrf.mxu0
      %v2282 = vadd.f32 %v2141, %v2281
      %v2283 = vpop.f32.mrf.mxu0
      %v2284 = vadd.f32 %v2143, %v2283
      %v2285 = vpop.f32.mrf.mxu0
      %v2286 = vadd.f32 %v2145, %v2285
      %2287 = vmatprep.mubr.bf16.mxu0 0
      %2288 = vmatmul.mubr.bf16.gmra.mxu0 %v1893
      %v2289 = vpop.f32.mrf.mxu0
      %v2290 = vadd.f32 %v2149, %v2289
      %v2291 = vpop.f32.mrf.mxu0
      %v2292 = vadd.f32 %v2151, %v2291
      %v2293 = vpop.f32.mrf.mxu0
      %v2294 = vpop.f32.mrf.mxu0
      %2295 = vdwg.mxu0
      %s2296 = scalar_lea.vmem %s5, 40
      %v2297 = vld [vmem:[%s2296] sm:$0xf]
      %v2298 = vld [vmem:[%s2296 + $0x4] sm:$0xf]
      %v2299 = vld [vmem:[%s2296 + $0x8] sm:$0xf]
      %v2300 = vld [vmem:[%s2296 + $0xc] sm:$0xf]
      %v2301 = vld [vmem:[%s2296 + $0x10] sm:$0xf]
      %v2307 = vunpack.c.l.b16 %v2297
      %v2308 = vunpack.c.l.b16 %v2298
      %v2309 = vunpack.c.l.b16 %v2299
      %v2310 = vunpack.c.l.b16 %v2300
      %v2311 = vunpack.c.l.b16 %v2301
      %v2312 = vpack.c.b16 %v2308, %v2307
      %v2313 = vpack.c.b16 %v2310, %v2309
      %v2314 = vpack.c.b16 %v2311, %v2311
      %v2316 = vsel %vm1821, %v2312, 0
      %v2319 = vsel %vm1821, %v2313, 0
      %v2322 = vsel %vm1821, %v2314, 0
      %2324 = vmatprep.subr.bf16.mxu0 0
      %2325 = vmatpush1.bf16.msra.mxu0 0
      %2326 = vmatprep.subr.bf16.mxu0 0
      %2327 = vmatpush1.bf16.msra.mxu0 0
      %2328 = vmatprep.subr.bf16.mxu0 0
      %2329 = vmatpush1.bf16.msra.mxu0 0
      %2330 = vmatprep.subr.bf16.mxu0 0
      %2331 = vmatpush1.bf16.msra.mxu0 0
      %2332 = vmatprep.subr.bf16.mxu0 0
      %2333 = vmatpush1.bf16.msra.mxu0 %v1833
      %2334 = vmatprep.subr.bf16.mxu0 0
      %2335 = vmatpush1.bf16.msra.mxu0 %v1801
      %2336 = vmatprep.subr.bf16.mxu0 0
      %2337 = vmatpush1.bf16.msra.mxu0 %v1800
      %2338 = vmatprep.subr.bf16.mxu0 0
      %2339 = vmatpush1.bf16.msra.mxu0 %v1799
      %2340 = vmatprep.subr.bf16.mxu0 0
      %2341 = vmatpush2.bf16.msra.mxu0 0
      %2342 = vmatprep.subr.bf16.mxu0 0
      %2343 = vmatpush2.bf16.msra.mxu0 0
      %2344 = vmatprep.subr.bf16.mxu0 0
      %2345 = vmatpush2.bf16.msra.mxu0 0
      %2346 = vmatprep.subr.bf16.mxu0 0
      %2347 = vmatpush2.bf16.msra.mxu0 0
      %2348 = vmatprep.subr.bf16.mxu0 0
      %2349 = vmatpush2.bf16.msra.mxu0 0
      %2350 = vmatprep.subr.bf16.mxu0 0
      %2351 = vmatpush2.bf16.msra.mxu0 0
      %2352 = vmatprep.subr.bf16.mxu0 0
      %2353 = vmatpush2.bf16.msra.mxu0 0
      %2354 = vmatprep.subr.bf16.mxu0 0
      %2355 = vmatpush2.bf16.msra.mxu0 0
      %2356 = vmatprep.mubr.bf16.mxu0 0
      %2357 = vmatmul.mubr.bf16.gmra.mxu0 %v2316
      %v2358 = vpop.f32.mrf.mxu0
      %v2359 = vadd.f32 0.0, %v2358
      %v2360 = vpop.f32.mrf.mxu0
      %v2361 = vpop.f32.mrf.mxu0
      %v2362 = vadd.f32 0.0, %v2361
      %v2363 = vpop.f32.mrf.mxu0
      %2364 = vmatprep.mubr.bf16.mxu0 0
      %2365 = vmatmul.mubr.bf16.gmra.mxu0 %v2319
      %v2366 = vpop.f32.mrf.mxu0
      %v2367 = vadd.f32 0.0, %v2366
      %v2368 = vpop.f32.mrf.mxu0
      %v2369 = vpop.f32.mrf.mxu0
      %v2370 = vadd.f32 0.0, %v2369
      %v2371 = vpop.f32.mrf.mxu0
      %2372 = vmatprep.mubr.bf16.mxu0 0
      %2373 = vmatmul.mubr.bf16.gmra.mxu0 %v2322
      %v2374 = vpop.f32.mrf.mxu0
      %v2375 = vadd.f32 0.0, %v2374
      %v2376 = vpop.f32.mrf.mxu0
      %v2377 = vpop.f32.mrf.mxu0
      %v2378 = vpop.f32.mrf.mxu0
      %2379 = vdwg.mxu0
      %v2380 = vpack.c.bf16 %v2362, %v2359
      %v2381 = vpack.c.bf16 %v2370, %v2367
      %v2382 = vpack.c.bf16 %v2375, %v2375
      %s2383 = scalar_lea.vmem %s6, 256
      %v2384 = vld [vmem:[%s2383] sm:$0xff]
      %v2385 = vld [vmem:[%s2383 + $0x8] sm:$0xff]
      %v2386 = vld [vmem:[%s2383 + $0x10] sm:$0xff]
      %v2387 = vld [vmem:[%s2383 + $0x18] sm:$0xff]
      %v2388 = vld [vmem:[%s2383 + $0x20] sm:$0xff]
      %v2389 = vld [vmem:[%s2383 + $0x28] sm:$0xff]
      %v2390 = vld [vmem:[%s2383 + $0x30] sm:$0xff]
      %v2391 = vld [vmem:[%s2383 + $0x38] sm:$0xff]
      %v2392 = vld [vmem:[%s2383 + $0x40] sm:$0xff]
      %v2393 = vld [vmem:[%s2383 + $0x48] sm:$0xff]
      %v2394 = vld [vmem:[%s2383 + $0x50] sm:$0xff]
      %v2395 = vld [vmem:[%s2383 + $0x58] sm:$0xff]
      %v2396 = vld [vmem:[%s2383 + $0x60] sm:$0xff]
      %v2397 = vld [vmem:[%s2383 + $0x68] sm:$0xff]
      %v2398 = vld [vmem:[%s2383 + $0x70] sm:$0xff]
      %v2399 = vld [vmem:[%s2383 + $0x78] sm:$0xff]
      %v2416 = vunpack.c.l.b16 %v2384
      %v2417 = vunpack.c.h.b16 %v2384
      %v2418 = vunpack.c.l.b16 %v2385
      %v2419 = vunpack.c.h.b16 %v2385
      %v2420 = vunpack.c.l.b16 %v2386
      %v2421 = vunpack.c.h.b16 %v2386
      %v2422 = vunpack.c.l.b16 %v2387
      %v2423 = vunpack.c.h.b16 %v2387
      %v2424 = vunpack.c.l.b16 %v2388
      %v2425 = vunpack.c.h.b16 %v2388
      %v2426 = vunpack.c.l.b16 %v2389
      %v2427 = vunpack.c.h.b16 %v2389
      %v2428 = vunpack.c.l.b16 %v2390
      %v2429 = vunpack.c.h.b16 %v2390
      %v2430 = vunpack.c.l.b16 %v2391
      %v2431 = vunpack.c.h.b16 %v2391
      %v2432 = vunpack.c.l.b16 %v2392
      %v2433 = vunpack.c.h.b16 %v2392
      %v2434 = vunpack.c.l.b16 %v2393
      %v2435 = vunpack.c.h.b16 %v2393
      %v2436 = vunpack.c.l.b16 %v2394
      %v2437 = vunpack.c.h.b16 %v2394
      %v2438 = vunpack.c.l.b16 %v2395
      %v2439 = vunpack.c.h.b16 %v2395
      %v2440 = vunpack.c.l.b16 %v2396
      %v2441 = vunpack.c.h.b16 %v2396
      %v2442 = vunpack.c.l.b16 %v2397
      %v2443 = vunpack.c.h.b16 %v2397
      %v2444 = vunpack.c.l.b16 %v2398
      %v2445 = vunpack.c.h.b16 %v2398
      %v2446 = vunpack.c.l.b16 %v2399
      %v2447 = vunpack.c.h.b16 %v2399
      %v2448 = vpack.c.b16 %v2418, %v2416
      %v2449 = vpack.c.b16 %v2419, %v2417
      %v2450 = vpack.c.b16 %v2422, %v2420
      %v2451 = vpack.c.b16 %v2423, %v2421
      %v2452 = vpack.c.b16 %v2426, %v2424
      %v2453 = vpack.c.b16 %v2427, %v2425
      %v2454 = vpack.c.b16 %v2430, %v2428
      %v2455 = vpack.c.b16 %v2431, %v2429
      %v2456 = vpack.c.b16 %v2434, %v2432
      %v2457 = vpack.c.b16 %v2435, %v2433
      %v2458 = vpack.c.b16 %v2438, %v2436
      %v2459 = vpack.c.b16 %v2439, %v2437
      %v2460 = vpack.c.b16 %v2442, %v2440
      %v2461 = vpack.c.b16 %v2443, %v2441
      %v2462 = vpack.c.b16 %v2446, %v2444
      %v2463 = vpack.c.b16 %v2447, %v2445
      %2480 = vmatprep.subr.bf16.mxu0 %v2463
      %2481 = vmatpush1.bf16.msra.mxu0 %v2462
      %2482 = vmatprep.subr.bf16.mxu0 %v2461
      %2483 = vmatpush1.bf16.msra.mxu0 %v2460
      %2484 = vmatprep.subr.bf16.mxu0 %v2459
      %2485 = vmatpush1.bf16.msra.mxu0 %v2458
      %2486 = vmatprep.subr.bf16.mxu0 %v2457
      %2487 = vmatpush1.bf16.msra.mxu0 %v2456
      %2488 = vmatprep.subr.bf16.mxu0 %v2455
      %2489 = vmatpush1.bf16.msra.mxu0 %v2454
      %2490 = vmatprep.subr.bf16.mxu0 %v2453
      %2491 = vmatpush1.bf16.msra.mxu0 %v2452
      %2492 = vmatprep.subr.bf16.mxu0 %v2451
      %2493 = vmatpush1.bf16.msra.mxu0 %v2450
      %2494 = vmatprep.subr.bf16.mxu0 %v2449
      %2495 = vmatpush1.bf16.msra.mxu0 %v2448
      %2496 = vmatprep.subr.bf16.mxu0 0
      %2497 = vmatpush2.bf16.msra.mxu0 0
      %2498 = vmatprep.subr.bf16.mxu0 0
      %2499 = vmatpush2.bf16.msra.mxu0 0
      %2500 = vmatprep.subr.bf16.mxu0 0
      %2501 = vmatpush2.bf16.msra.mxu0 0
      %2502 = vmatprep.subr.bf16.mxu0 0
      %2503 = vmatpush2.bf16.msra.mxu0 0
      %2504 = vmatprep.subr.bf16.mxu0 0
      %2505 = vmatpush2.bf16.msra.mxu0 0
      %2506 = vmatprep.subr.bf16.mxu0 0
      %2507 = vmatpush2.bf16.msra.mxu0 0
      %2508 = vmatprep.subr.bf16.mxu0 0
      %2509 = vmatpush2.bf16.msra.mxu0 0
      %2510 = vmatprep.subr.bf16.mxu0 0
      %2511 = vmatpush2.bf16.msra.mxu0 0
      %2512 = vmatprep.mubr.bf16.mxu0 0
      %2513 = vmatmul.mubr.bf16.gmra.mxu0 %v2380
      %v2514 = vpop.f32.mrf.mxu0
      %v2515 = vadd.f32 0.0, %v2514
      %v2516 = vpop.f32.mrf.mxu0
      %v2517 = vadd.f32 0.0, %v2516
      %v2518 = vpop.f32.mrf.mxu0
      %v2519 = vadd.f32 0.0, %v2518
      %v2520 = vpop.f32.mrf.mxu0
      %v2521 = vadd.f32 0.0, %v2520
      %2522 = vmatprep.mubr.bf16.mxu0 0
      %2523 = vmatmul.mubr.bf16.gmra.mxu0 %v2381
      %v2524 = vpop.f32.mrf.mxu0
      %v2525 = vadd.f32 0.0, %v2524
      %v2526 = vpop.f32.mrf.mxu0
      %v2527 = vadd.f32 0.0, %v2526
      %v2528 = vpop.f32.mrf.mxu0
      %v2529 = vadd.f32 0.0, %v2528
      %v2530 = vpop.f32.mrf.mxu0
      %v2531 = vadd.f32 0.0, %v2530
      %2532 = vmatprep.mubr.bf16.mxu0 0
      %2533 = vmatmul.mubr.bf16.gmra.mxu0 %v2382
      %v2534 = vpop.f32.mrf.mxu0
      %v2535 = vadd.f32 0.0, %v2534
      %v2536 = vpop.f32.mrf.mxu0
      %v2537 = vadd.f32 0.0, %v2536
      %v2538 = vpop.f32.mrf.mxu0
      %v2539 = vpop.f32.mrf.mxu0
      %2540 = vdwg.mxu0
      %v2541 = vadd.f32 %v2270, %v2515
      %v2542 = vadd.f32 %v2272, %v2517
      %v2543 = vadd.f32 %v2274, %v2519
      %v2544 = vadd.f32 %v2276, %v2521
      %v2545 = vadd.f32 %v2280, %v2525
      %v2546 = vadd.f32 %v2282, %v2527
      %v2547 = vadd.f32 %v2284, %v2529
      %v2548 = vadd.f32 %v2286, %v2531
      %v2549 = vadd.f32 %v2290, %v2535
      %v2550 = vadd.f32 %v2292, %v2537
      %s2551 = scalar_lea.vmem %s5, 60
      %v2552 = vld [vmem:[%s2551] sm:$0xf]
      %v2553 = vld [vmem:[%s2551 + $0x4] sm:$0xf]
      %v2554 = vld [vmem:[%s2551 + $0x8] sm:$0xf]
      %v2555 = vld [vmem:[%s2551 + $0xc] sm:$0xf]
      %v2556 = vld [vmem:[%s2551 + $0x10] sm:$0xf]
      %v2562 = vunpack.c.l.b16 %v2552
      %v2563 = vunpack.c.l.b16 %v2553
      %v2564 = vunpack.c.l.b16 %v2554
      %v2565 = vunpack.c.l.b16 %v2555
      %v2566 = vunpack.c.l.b16 %v2556
      %v2567 = vpack.c.b16 %v2563, %v2562
      %v2568 = vpack.c.b16 %v2565, %v2564
      %v2569 = vpack.c.b16 %v2566, %v2566
      %v2571 = vsel %vm1821, %v2567, 0
      %v2574 = vsel %vm1821, %v2568, 0
      %v2577 = vsel %vm1821, %v2569, 0
      %2579 = vmatprep.subr.bf16.mxu0 0
      %2580 = vmatpush1.bf16.msra.mxu0 0
      %2581 = vmatprep.subr.bf16.mxu0 0
      %2582 = vmatpush1.bf16.msra.mxu0 0
      %2583 = vmatprep.subr.bf16.mxu0 0
      %2584 = vmatpush1.bf16.msra.mxu0 0
      %2585 = vmatprep.subr.bf16.mxu0 0
      %2586 = vmatpush1.bf16.msra.mxu0 0
      %2587 = vmatprep.subr.bf16.mxu0 0
      %2588 = vmatpush1.bf16.msra.mxu0 %v1833
      %2589 = vmatprep.subr.bf16.mxu0 0
      %2590 = vmatpush1.bf16.msra.mxu0 %v1801
      %2591 = vmatprep.subr.bf16.mxu0 0
      %2592 = vmatpush1.bf16.msra.mxu0 %v1800
      %2593 = vmatprep.subr.bf16.mxu0 0
      %2594 = vmatpush1.bf16.msra.mxu0 %v1799
      %2595 = vmatprep.subr.bf16.mxu0 0
      %2596 = vmatpush2.bf16.msra.mxu0 0
      %2597 = vmatprep.subr.bf16.mxu0 0
      %2598 = vmatpush2.bf16.msra.mxu0 0
      %2599 = vmatprep.subr.bf16.mxu0 0
      %2600 = vmatpush2.bf16.msra.mxu0 0
      %2601 = vmatprep.subr.bf16.mxu0 0
      %2602 = vmatpush2.bf16.msra.mxu0 0
      %2603 = vmatprep.subr.bf16.mxu0 0
      %2604 = vmatpush2.bf16.msra.mxu0 0
      %2605 = vmatprep.subr.bf16.mxu0 0
      %2606 = vmatpush2.bf16.msra.mxu0 0
      %2607 = vmatprep.subr.bf16.mxu0 0
      %2608 = vmatpush2.bf16.msra.mxu0 0
      %2609 = vmatprep.subr.bf16.mxu0 0
      %2610 = vmatpush2.bf16.msra.mxu0 0
      %2611 = vmatprep.mubr.bf16.mxu0 0
      %2612 = vmatmul.mubr.bf16.gmra.mxu0 %v2571
      %v2613 = vpop.f32.mrf.mxu0
      %v2614 = vadd.f32 0.0, %v2613
      %v2615 = vpop.f32.mrf.mxu0
      %v2616 = vpop.f32.mrf.mxu0
      %v2617 = vadd.f32 0.0, %v2616
      %v2618 = vpop.f32.mrf.mxu0
      %2619 = vmatprep.mubr.bf16.mxu0 0
      %2620 = vmatmul.mubr.bf16.gmra.mxu0 %v2574
      %v2621 = vpop.f32.mrf.mxu0
      %v2622 = vadd.f32 0.0, %v2621
      %v2623 = vpop.f32.mrf.mxu0
      %v2624 = vpop.f32.mrf.mxu0
      %v2625 = vadd.f32 0.0, %v2624
      %v2626 = vpop.f32.mrf.mxu0
      %2627 = vmatprep.mubr.bf16.mxu0 0
      %2628 = vmatmul.mubr.bf16.gmra.mxu0 %v2577
      %v2629 = vpop.f32.mrf.mxu0
      %v2630 = vadd.f32 0.0, %v2629
      %v2631 = vpop.f32.mrf.mxu0
      %v2632 = vpop.f32.mrf.mxu0
      %v2633 = vpop.f32.mrf.mxu0
      %2634 = vdwg.mxu0
      %v2635 = vpack.c.bf16 %v2617, %v2614
      %v2636 = vpack.c.bf16 %v2625, %v2622
      %v2637 = vpack.c.bf16 %v2630, %v2630
      %s2638 = scalar_lea.vmem %s6, 384
      %v2639 = vld [vmem:[%s2638] sm:$0xff]
      %v2640 = vld [vmem:[%s2638 + $0x8] sm:$0xff]
      %v2641 = vld [vmem:[%s2638 + $0x10] sm:$0xff]
      %v2642 = vld [vmem:[%s2638 + $0x18] sm:$0xff]
      %v2643 = vld [vmem:[%s2638 + $0x20] sm:$0xff]
      %v2644 = vld [vmem:[%s2638 + $0x28] sm:$0xff]
      %v2645 = vld [vmem:[%s2638 + $0x30] sm:$0xff]
      %v2646 = vld [vmem:[%s2638 + $0x38] sm:$0xff]
      %v2647 = vld [vmem:[%s2638 + $0x40] sm:$0xff]
      %v2648 = vld [vmem:[%s2638 + $0x48] sm:$0xff]
      %v2649 = vld [vmem:[%s2638 + $0x50] sm:$0xff]
      %v2650 = vld [vmem:[%s2638 + $0x58] sm:$0xff]
      %v2651 = vld [vmem:[%s2638 + $0x60] sm:$0xff]
      %v2652 = vld [vmem:[%s2638 + $0x68] sm:$0xff]
      %v2653 = vld [vmem:[%s2638 + $0x70] sm:$0xff]
      %v2654 = vld [vmem:[%s2638 + $0x78] sm:$0xff]
      %v2671 = vunpack.c.l.b16 %v2639
      %v2672 = vunpack.c.h.b16 %v2639
      %v2673 = vunpack.c.l.b16 %v2640
      %v2674 = vunpack.c.h.b16 %v2640
      %v2675 = vunpack.c.l.b16 %v2641
      %v2676 = vunpack.c.h.b16 %v2641
      %v2677 = vunpack.c.l.b16 %v2642
      %v2678 = vunpack.c.h.b16 %v2642
      %v2679 = vunpack.c.l.b16 %v2643
      %v2680 = vunpack.c.h.b16 %v2643
      %v2681 = vunpack.c.l.b16 %v2644
      %v2682 = vunpack.c.h.b16 %v2644
      %v2683 = vunpack.c.l.b16 %v2645
      %v2684 = vunpack.c.h.b16 %v2645
      %v2685 = vunpack.c.l.b16 %v2646
      %v2686 = vunpack.c.h.b16 %v2646
      %v2687 = vunpack.c.l.b16 %v2647
      %v2688 = vunpack.c.h.b16 %v2647
      %v2689 = vunpack.c.l.b16 %v2648
      %v2690 = vunpack.c.h.b16 %v2648
      %v2691 = vunpack.c.l.b16 %v2649
      %v2692 = vunpack.c.h.b16 %v2649
      %v2693 = vunpack.c.l.b16 %v2650
      %v2694 = vunpack.c.h.b16 %v2650
      %v2695 = vunpack.c.l.b16 %v2651
      %v2696 = vunpack.c.h.b16 %v2651
      %v2697 = vunpack.c.l.b16 %v2652
      %v2698 = vunpack.c.h.b16 %v2652
      %v2699 = vunpack.c.l.b16 %v2653
      %v2700 = vunpack.c.h.b16 %v2653
      %v2701 = vunpack.c.l.b16 %v2654
      %v2702 = vunpack.c.h.b16 %v2654
      %v2703 = vpack.c.b16 %v2673, %v2671
      %v2704 = vpack.c.b16 %v2674, %v2672
      %v2705 = vpack.c.b16 %v2677, %v2675
      %v2706 = vpack.c.b16 %v2678, %v2676
      %v2707 = vpack.c.b16 %v2681, %v2679
      %v2708 = vpack.c.b16 %v2682, %v2680
      %v2709 = vpack.c.b16 %v2685, %v2683
      %v2710 = vpack.c.b16 %v2686, %v2684
      %v2711 = vpack.c.b16 %v2689, %v2687
      %v2712 = vpack.c.b16 %v2690, %v2688
      %v2713 = vpack.c.b16 %v2693, %v2691
      %v2714 = vpack.c.b16 %v2694, %v2692
      %v2715 = vpack.c.b16 %v2697, %v2695
      %v2716 = vpack.c.b16 %v2698, %v2696
      %v2717 = vpack.c.b16 %v2701, %v2699
      %v2718 = vpack.c.b16 %v2702, %v2700
      %2735 = vmatprep.subr.bf16.mxu0 %v2718
      %2736 = vmatpush1.bf16.msra.mxu0 %v2717
      %2737 = vmatprep.subr.bf16.mxu0 %v2716
      %2738 = vmatpush1.bf16.msra.mxu0 %v2715
      %2739 = vmatprep.subr.bf16.mxu0 %v2714
      %2740 = vmatpush1.bf16.msra.mxu0 %v2713
      %2741 = vmatprep.subr.bf16.mxu0 %v2712
      %2742 = vmatpush1.bf16.msra.mxu0 %v2711
      %2743 = vmatprep.subr.bf16.mxu0 %v2710
      %2744 = vmatpush1.bf16.msra.mxu0 %v2709
      %2745 = vmatprep.subr.bf16.mxu0 %v2708
      %2746 = vmatpush1.bf16.msra.mxu0 %v2707
      %2747 = vmatprep.subr.bf16.mxu0 %v2706
      %2748 = vmatpush1.bf16.msra.mxu0 %v2705
      %2749 = vmatprep.subr.bf16.mxu0 %v2704
      %2750 = vmatpush1.bf16.msra.mxu0 %v2703
      %2751 = vmatprep.subr.bf16.mxu0 0
      %2752 = vmatpush2.bf16.msra.mxu0 0
      %2753 = vmatprep.subr.bf16.mxu0 0
      %2754 = vmatpush2.bf16.msra.mxu0 0
      %2755 = vmatprep.subr.bf16.mxu0 0
      %2756 = vmatpush2.bf16.msra.mxu0 0
      %2757 = vmatprep.subr.bf16.mxu0 0
      %2758 = vmatpush2.bf16.msra.mxu0 0
      %2759 = vmatprep.subr.bf16.mxu0 0
      %2760 = vmatpush2.bf16.msra.mxu0 0
      %2761 = vmatprep.subr.bf16.mxu0 0
      %2762 = vmatpush2.bf16.msra.mxu0 0
      %2763 = vmatprep.subr.bf16.mxu0 0
      %2764 = vmatpush2.bf16.msra.mxu0 0
      %2765 = vmatprep.subr.bf16.mxu0 0
      %2766 = vmatpush2.bf16.msra.mxu0 0
      %2767 = vmatprep.mubr.bf16.mxu0 0
      %2768 = vmatmul.mubr.bf16.gmra.mxu0 %v2635
      %v2769 = vpop.f32.mrf.mxu0
      %v2770 = vadd.f32 0.0, %v2769
      %v2771 = vpop.f32.mrf.mxu0
      %v2772 = vadd.f32 0.0, %v2771
      %v2773 = vpop.f32.mrf.mxu0
      %v2774 = vadd.f32 0.0, %v2773
      %v2775 = vpop.f32.mrf.mxu0
      %v2776 = vadd.f32 0.0, %v2775
      %2777 = vmatprep.mubr.bf16.mxu0 0
      %2778 = vmatmul.mubr.bf16.gmra.mxu0 %v2636
      %v2779 = vpop.f32.mrf.mxu0
      %v2780 = vadd.f32 0.0, %v2779
      %v2781 = vpop.f32.mrf.mxu0
      %v2782 = vadd.f32 0.0, %v2781
      %v2783 = vpop.f32.mrf.mxu0
      %v2784 = vadd.f32 0.0, %v2783
      %v2785 = vpop.f32.mrf.mxu0
      %v2786 = vadd.f32 0.0, %v2785
      %2787 = vmatprep.mubr.bf16.mxu0 0
      %2788 = vmatmul.mubr.bf16.gmra.mxu0 %v2637
      %v2789 = vpop.f32.mrf.mxu0
      %v2790 = vadd.f32 0.0, %v2789
      %v2791 = vpop.f32.mrf.mxu0
      %v2792 = vadd.f32 0.0, %v2791
      %v2793 = vpop.f32.mrf.mxu0
      %v2794 = vpop.f32.mrf.mxu0
      %2795 = vdwg.mxu0
      %v2796 = vadd.f32 %v2541, %v2770
      %v2797 = vadd.f32 %v2542, %v2772
      %v2798 = vadd.f32 %v2543, %v2774
      %v2799 = vadd.f32 %v2544, %v2776
      %v2800 = vadd.f32 %v2545, %v2780
      %v2801 = vadd.f32 %v2546, %v2782
      %v2802 = vadd.f32 %v2547, %v2784
      %v2803 = vadd.f32 %v2548, %v2786
      %v2804 = vadd.f32 %v2549, %v2790
      %v2805 = vadd.f32 %v2550, %v2792
      %s2806 = scalar_lea.vmem %s5, 80
      %v2807 = vld [vmem:[%s2806] sm:$0xf]
      %v2808 = vld [vmem:[%s2806 + $0x4] sm:$0xf]
      %v2809 = vld [vmem:[%s2806 + $0x8] sm:$0xf]
      %v2810 = vld [vmem:[%s2806 + $0xc] sm:$0xf]
      %v2811 = vld [vmem:[%s2806 + $0x10] sm:$0xf]
      %v2817 = vunpack.c.l.b16 %v2807
      %v2818 = vunpack.c.l.b16 %v2808
      %v2819 = vunpack.c.l.b16 %v2809
      %v2820 = vunpack.c.l.b16 %v2810
      %v2821 = vunpack.c.l.b16 %v2811
      %v2822 = vpack.c.b16 %v2818, %v2817
      %v2823 = vpack.c.b16 %v2820, %v2819
      %v2824 = vpack.c.b16 %v2821, %v2821
      %v2826 = vsel %vm1821, %v2822, 0
      %v2829 = vsel %vm1821, %v2823, 0
      %v2832 = vsel %vm1821, %v2824, 0
      %2834 = vmatprep.subr.bf16.mxu0 0
      %2835 = vmatpush1.bf16.msra.mxu0 0
      %2836 = vmatprep.subr.bf16.mxu0 0
      %2837 = vmatpush1.bf16.msra.mxu0 0
      %2838 = vmatprep.subr.bf16.mxu0 0
      %2839 = vmatpush1.bf16.msra.mxu0 0
      %2840 = vmatprep.subr.bf16.mxu0 0
      %2841 = vmatpush1.bf16.msra.mxu0 0
      %2842 = vmatprep.subr.bf16.mxu0 0
      %2843 = vmatpush1.bf16.msra.mxu0 %v1833
      %2844 = vmatprep.subr.bf16.mxu0 0
      %2845 = vmatpush1.bf16.msra.mxu0 %v1801
      %2846 = vmatprep.subr.bf16.mxu0 0
      %2847 = vmatpush1.bf16.msra.mxu0 %v1800
      %2848 = vmatprep.subr.bf16.mxu0 0
      %2849 = vmatpush1.bf16.msra.mxu0 %v1799
      %2850 = vmatprep.subr.bf16.mxu0 0
      %2851 = vmatpush2.bf16.msra.mxu0 0
      %2852 = vmatprep.subr.bf16.mxu0 0
      %2853 = vmatpush2.bf16.msra.mxu0 0
      %2854 = vmatprep.subr.bf16.mxu0 0
      %2855 = vmatpush2.bf16.msra.mxu0 0
      %2856 = vmatprep.subr.bf16.mxu0 0
      %2857 = vmatpush2.bf16.msra.mxu0 0
      %2858 = vmatprep.subr.bf16.mxu0 0
      %2859 = vmatpush2.bf16.msra.mxu0 0
      %2860 = vmatprep.subr.bf16.mxu0 0
      %2861 = vmatpush2.bf16.msra.mxu0 0
      %2862 = vmatprep.subr.bf16.mxu0 0
      %2863 = vmatpush2.bf16.msra.mxu0 0
      %2864 = vmatprep.subr.bf16.mxu0 0
      %2865 = vmatpush2.bf16.msra.mxu0 0
      %2866 = vmatprep.mubr.bf16.mxu0 0
      %2867 = vmatmul.mubr.bf16.gmra.mxu0 %v2826
      %v2868 = vpop.f32.mrf.mxu0
      %v2869 = vadd.f32 0.0, %v2868
      %v2870 = vpop.f32.mrf.mxu0
      %v2871 = vpop.f32.mrf.mxu0
      %v2872 = vadd.f32 0.0, %v2871
      %v2873 = vpop.f32.mrf.mxu0
      %2874 = vmatprep.mubr.bf16.mxu0 0
      %2875 = vmatmul.mubr.bf16.gmra.mxu0 %v2829
      %v2876 = vpop.f32.mrf.mxu0
      %v2877 = vadd.f32 0.0, %v2876
      %v2878 = vpop.f32.mrf.mxu0
      %v2879 = vpop.f32.mrf.mxu0
      %v2880 = vadd.f32 0.0, %v2879
      %v2881 = vpop.f32.mrf.mxu0
      %2882 = vmatprep.mubr.bf16.mxu0 0
      %2883 = vmatmul.mubr.bf16.gmra.mxu0 %v2832
      %v2884 = vpop.f32.mrf.mxu0
      %v2885 = vadd.f32 0.0, %v2884
      %v2886 = vpop.f32.mrf.mxu0
      %v2887 = vpop.f32.mrf.mxu0
      %v2888 = vpop.f32.mrf.mxu0
      %2889 = vdwg.mxu0
      %v2890 = vpack.c.bf16 %v2872, %v2869
      %v2891 = vpack.c.bf16 %v2880, %v2877
      %v2892 = vpack.c.bf16 %v2885, %v2885
      %s2893 = scalar_lea.vmem %s6, 512
      %v2894 = vld [vmem:[%s2893] sm:$0xff]
      %v2895 = vld [vmem:[%s2893 + $0x8] sm:$0xff]
      %v2896 = vld [vmem:[%s2893 + $0x10] sm:$0xff]
      %v2897 = vld [vmem:[%s2893 + $0x18] sm:$0xff]
      %v2898 = vld [vmem:[%s2893 + $0x20] sm:$0xff]
      %v2899 = vld [vmem:[%s2893 + $0x28] sm:$0xff]
      %v2900 = vld [vmem:[%s2893 + $0x30] sm:$0xff]
      %v2901 = vld [vmem:[%s2893 + $0x38] sm:$0xff]
      %v2902 = vld [vmem:[%s2893 + $0x40] sm:$0xff]
      %v2903 = vld [vmem:[%s2893 + $0x48] sm:$0xff]
      %v2904 = vld [vmem:[%s2893 + $0x50] sm:$0xff]
      %v2905 = vld [vmem:[%s2893 + $0x58] sm:$0xff]
      %v2906 = vld [vmem:[%s2893 + $0x60] sm:$0xff]
      %v2907 = vld [vmem:[%s2893 + $0x68] sm:$0xff]
      %v2908 = vld [vmem:[%s2893 + $0x70] sm:$0xff]
      %v2909 = vld [vmem:[%s2893 + $0x78] sm:$0xff]
      %v2926 = vunpack.c.l.b16 %v2894
      %v2927 = vunpack.c.h.b16 %v2894
      %v2928 = vunpack.c.l.b16 %v2895
      %v2929 = vunpack.c.h.b16 %v2895
      %v2930 = vunpack.c.l.b16 %v2896
      %v2931 = vunpack.c.h.b16 %v2896
      %v2932 = vunpack.c.l.b16 %v2897
      %v2933 = vunpack.c.h.b16 %v2897
      %v2934 = vunpack.c.l.b16 %v2898
      %v2935 = vunpack.c.h.b16 %v2898
      %v2936 = vunpack.c.l.b16 %v2899
      %v2937 = vunpack.c.h.b16 %v2899
      %v2938 = vunpack.c.l.b16 %v2900
      %v2939 = vunpack.c.h.b16 %v2900
      %v2940 = vunpack.c.l.b16 %v2901
      %v2941 = vunpack.c.h.b16 %v2901
      %v2942 = vunpack.c.l.b16 %v2902
      %v2943 = vunpack.c.h.b16 %v2902
      %v2944 = vunpack.c.l.b16 %v2903
      %v2945 = vunpack.c.h.b16 %v2903
      %v2946 = vunpack.c.l.b16 %v2904
      %v2947 = vunpack.c.h.b16 %v2904
      %v2948 = vunpack.c.l.b16 %v2905
      %v2949 = vunpack.c.h.b16 %v2905
      %v2950 = vunpack.c.l.b16 %v2906
      %v2951 = vunpack.c.h.b16 %v2906
      %v2952 = vunpack.c.l.b16 %v2907
      %v2953 = vunpack.c.h.b16 %v2907
      %v2954 = vunpack.c.l.b16 %v2908
      %v2955 = vunpack.c.h.b16 %v2908
      %v2956 = vunpack.c.l.b16 %v2909
      %v2957 = vunpack.c.h.b16 %v2909
      %v2958 = vpack.c.b16 %v2928, %v2926
      %v2959 = vpack.c.b16 %v2929, %v2927
      %v2960 = vpack.c.b16 %v2932, %v2930
      %v2961 = vpack.c.b16 %v2933, %v2931
      %v2962 = vpack.c.b16 %v2936, %v2934
      %v2963 = vpack.c.b16 %v2937, %v2935
      %v2964 = vpack.c.b16 %v2940, %v2938
      %v2965 = vpack.c.b16 %v2941, %v2939
      %v2966 = vpack.c.b16 %v2944, %v2942
      %v2967 = vpack.c.b16 %v2945, %v2943
      %v2968 = vpack.c.b16 %v2948, %v2946
      %v2969 = vpack.c.b16 %v2949, %v2947
      %v2970 = vpack.c.b16 %v2952, %v2950
      %v2971 = vpack.c.b16 %v2953, %v2951
      %v2972 = vpack.c.b16 %v2956, %v2954
      %v2973 = vpack.c.b16 %v2957, %v2955
      %2990 = vmatprep.subr.bf16.mxu0 %v2973
      %2991 = vmatpush1.bf16.msra.mxu0 %v2972
      %2992 = vmatprep.subr.bf16.mxu0 %v2971
      %2993 = vmatpush1.bf16.msra.mxu0 %v2970
      %2994 = vmatprep.subr.bf16.mxu0 %v2969
      %2995 = vmatpush1.bf16.msra.mxu0 %v2968
      %2996 = vmatprep.subr.bf16.mxu0 %v2967
      %2997 = vmatpush1.bf16.msra.mxu0 %v2966
      %2998 = vmatprep.subr.bf16.mxu0 %v2965
      %2999 = vmatpush1.bf16.msra.mxu0 %v2964
      %3000 = vmatprep.subr.bf16.mxu0 %v2963
      %3001 = vmatpush1.bf16.msra.mxu0 %v2962
      %3002 = vmatprep.subr.bf16.mxu0 %v2961
      %3003 = vmatpush1.bf16.msra.mxu0 %v2960
      %3004 = vmatprep.subr.bf16.mxu0 %v2959
      %3005 = vmatpush1.bf16.msra.mxu0 %v2958
      %3006 = vmatprep.subr.bf16.mxu0 0
      %3007 = vmatpush2.bf16.msra.mxu0 0
      %3008 = vmatprep.subr.bf16.mxu0 0
      %3009 = vmatpush2.bf16.msra.mxu0 0
      %3010 = vmatprep.subr.bf16.mxu0 0
      %3011 = vmatpush2.bf16.msra.mxu0 0
      %3012 = vmatprep.subr.bf16.mxu0 0
      %3013 = vmatpush2.bf16.msra.mxu0 0
      %3014 = vmatprep.subr.bf16.mxu0 0
      %3015 = vmatpush2.bf16.msra.mxu0 0
      %3016 = vmatprep.subr.bf16.mxu0 0
      %3017 = vmatpush2.bf16.msra.mxu0 0
      %3018 = vmatprep.subr.bf16.mxu0 0
      %3019 = vmatpush2.bf16.msra.mxu0 0
      %3020 = vmatprep.subr.bf16.mxu0 0
      %3021 = vmatpush2.bf16.msra.mxu0 0
      %3022 = vmatprep.mubr.bf16.mxu0 0
      %3023 = vmatmul.mubr.bf16.gmra.mxu0 %v2890
      %v3024 = vpop.f32.mrf.mxu0
      %v3025 = vadd.f32 0.0, %v3024
      %v3026 = vpop.f32.mrf.mxu0
      %v3027 = vadd.f32 0.0, %v3026
      %v3028 = vpop.f32.mrf.mxu0
      %v3029 = vadd.f32 0.0, %v3028
      %v3030 = vpop.f32.mrf.mxu0
      %v3031 = vadd.f32 0.0, %v3030
      %3032 = vmatprep.mubr.bf16.mxu0 0
      %3033 = vmatmul.mubr.bf16.gmra.mxu0 %v2891
      %v3034 = vpop.f32.mrf.mxu0
      %v3035 = vadd.f32 0.0, %v3034
      %v3036 = vpop.f32.mrf.mxu0
      %v3037 = vadd.f32 0.0, %v3036
      %v3038 = vpop.f32.mrf.mxu0
      %v3039 = vadd.f32 0.0, %v3038
      %v3040 = vpop.f32.mrf.mxu0
      %v3041 = vadd.f32 0.0, %v3040
      %3042 = vmatprep.mubr.bf16.mxu0 0
      %3043 = vmatmul.mubr.bf16.gmra.mxu0 %v2892
      %v3044 = vpop.f32.mrf.mxu0
      %v3045 = vadd.f32 0.0, %v3044
      %v3046 = vpop.f32.mrf.mxu0
      %v3047 = vadd.f32 0.0, %v3046
      %v3048 = vpop.f32.mrf.mxu0
      %v3049 = vpop.f32.mrf.mxu0
      %3050 = vdwg.mxu0
      %v3051 = vadd.f32 %v2796, %v3025
      %v3052 = vadd.f32 %v2797, %v3027
      %v3053 = vadd.f32 %v2798, %v3029
      %v3054 = vadd.f32 %v2799, %v3031
      %v3055 = vadd.f32 %v2800, %v3035
      %v3056 = vadd.f32 %v2801, %v3037
      %v3057 = vadd.f32 %v2802, %v3039
      %v3058 = vadd.f32 %v2803, %v3041
      %v3059 = vadd.f32 %v2804, %v3045
      %v3060 = vadd.f32 %v2805, %v3047
      %v3061 = vld [vmem:[%s7] sm:$0x3]
      %v3063 = vlaneseq
      %v3064 = vshrl.u32 %v3063, 7
      %v3065 = vsub.s32 0, %v3064
      %v3066 = vrot.slane %v3061, %v3065
      %v3067 = vlaneseq
      %v3068 = vshrl.u32 %v3067, 7
      %v3069 = vsub.s32 1, %v3068
      %v3070 = vrot.slane %v3061, %v3069
      %v3073 = vadd.f32 %v3051, %v3066
      %v3074 = vadd.f32 %v3052, %v3070
      %v3075 = vadd.f32 %v3053, %v3066
      %v3076 = vadd.f32 %v3054, %v3070
      %v3077 = vadd.f32 %v3055, %v3066
      %v3078 = vadd.f32 %v3056, %v3070
      %v3079 = vadd.f32 %v3057, %v3066
      %v3080 = vadd.f32 %v3058, %v3070
      %v3081 = vadd.f32 %v3059, %v3066
      %v3082 = vadd.f32 %v3060, %v3070
      %v3083 = vmax.f32 %v3073, 0.0
      %v3084 = vmax.f32 %v3074, 0.0
      %v3085 = vmax.f32 %v3075, 0.0
      %v3086 = vmax.f32 %v3076, 0.0
      %v3087 = vmax.f32 %v3077, 0.0
      %v3088 = vmax.f32 %v3078, 0.0
      %v3089 = vmax.f32 %v3079, 0.0
      %v3090 = vmax.f32 %v3080, 0.0
      %v3091 = vmax.f32 %v3081, 0.0
      %v3092 = vmax.f32 %v3082, 0.0
      %v3093 = vpack.c.bf16 %v3085, %v3083
      %v3094 = vpack.c.bf16 %v3086, %v3084
      %v3095 = vpack.c.bf16 %v3089, %v3087
      %v3096 = vpack.c.bf16 %v3090, %v3088
      %v3097 = vpack.c.bf16 %v3091, %v3091
      %v3098 = vpack.c.bf16 %v3092, %v3092
      %v3099 = vld [vmem:[%s8] sm:$0x3]
      %vm3100 = vcmask 326656
      %v3102 = vsel %vm3100, %v3099, 0
      %v3105 = vsel %vm1831, %v3097, 0
      %v3108 = vsel %vm1831, %v3098, 0
      %3110 = vmatprep.subr.bf16.mxu0 0
      %3111 = vmatpush1.bf16.msra.mxu0 0
      %3112 = vmatprep.subr.bf16.mxu0 0
      %3113 = vmatpush1.bf16.msra.mxu0 0
      %3114 = vmatprep.subr.bf16.mxu0 0
      %3115 = vmatpush1.bf16.msra.mxu0 0
      %3116 = vmatprep.subr.bf16.mxu0 0
      %3117 = vmatpush1.bf16.msra.mxu0 0
      %3118 = vmatprep.subr.bf16.mxu0 0
      %3119 = vmatpush1.bf16.msra.mxu0 0
      %3120 = vmatprep.subr.bf16.mxu0 %v3108
      %3121 = vmatpush1.bf16.msra.mxu0 %v3105
      %3122 = vmatprep.subr.bf16.mxu0 %v3096
      %3123 = vmatpush1.bf16.msra.mxu0 %v3095
      %3124 = vmatprep.subr.bf16.mxu0 %v3094
      %3125 = vmatpush1.bf16.msra.mxu0 %v3093
      %3126 = vmatprep.subr.bf16.mxu0 0
      %3127 = vmatpush2.bf16.msra.mxu0 0
      %3128 = vmatprep.subr.bf16.mxu0 0
      %3129 = vmatpush2.bf16.msra.mxu0 0
      %3130 = vmatprep.subr.bf16.mxu0 0
      %3131 = vmatpush2.bf16.msra.mxu0 0
      %3132 = vmatprep.subr.bf16.mxu0 0
      %3133 = vmatpush2.bf16.msra.mxu0 0
      %3134 = vmatprep.subr.bf16.mxu0 0
      %3135 = vmatpush2.bf16.msra.mxu0 0
      %3136 = vmatprep.subr.bf16.mxu0 0
      %3137 = vmatpush2.bf16.msra.mxu0 0
      %3138 = vmatprep.subr.bf16.mxu0 0
      %3139 = vmatpush2.bf16.msra.mxu0 0
      %3140 = vmatprep.subr.bf16.mxu0 0
      %3141 = vmatpush2.bf16.msra.mxu0 0
      %3142 = vmatprep.mubr.bf16.mxu0 0
      %3143 = vmatmul.mubr.bf16.gmra.mxu0 %v3102
      %v3144 = vpop.f32.mrf.mxu0
      %v3145 = vadd.f32 0.0, %v3144
      %v3146 = vpop.f32.mrf.mxu0
      %v3147 = vadd.f32 0.0, %v3146
      %v3148 = vpop.f32.mrf.mxu0
      %v3149 = vpop.f32.mrf.mxu0
      %3150 = vdwg.mxu0
      %s3151 = scalar_lea.vmem %s8, 2
      %v3152 = vld [vmem:[%s3151] sm:$0x3]
      %v3154 = vsel %vm3100, %v3152, 0
      %3156 = vmatprep.subr.bf16.mxu0 0
      %3157 = vmatpush1.bf16.msra.mxu0 0
      %3158 = vmatprep.subr.bf16.mxu0 0
      %3159 = vmatpush1.bf16.msra.mxu0 0
      %3160 = vmatprep.subr.bf16.mxu0 0
      %3161 = vmatpush1.bf16.msra.mxu0 0
      %3162 = vmatprep.subr.bf16.mxu0 0
      %3163 = vmatpush1.bf16.msra.mxu0 0
      %3164 = vmatprep.subr.bf16.mxu0 0
      %3165 = vmatpush1.bf16.msra.mxu0 0
      %3166 = vmatprep.subr.bf16.mxu0 %v3108
      %3167 = vmatpush1.bf16.msra.mxu0 %v3105
      %3168 = vmatprep.subr.bf16.mxu0 %v3096
      %3169 = vmatpush1.bf16.msra.mxu0 %v3095
      %3170 = vmatprep.subr.bf16.mxu0 %v3094
      %3171 = vmatpush1.bf16.msra.mxu0 %v3093
      %3172 = vmatprep.subr.bf16.mxu0 0
      %3173 = vmatpush2.bf16.msra.mxu0 0
      %3174 = vmatprep.subr.bf16.mxu0 0
      %3175 = vmatpush2.bf16.msra.mxu0 0
      %3176 = vmatprep.subr.bf16.mxu0 0
      %3177 = vmatpush2.bf16.msra.mxu0 0
      %3178 = vmatprep.subr.bf16.mxu0 0
      %3179 = vmatpush2.bf16.msra.mxu0 0
      %3180 = vmatprep.subr.bf16.mxu0 0
      %3181 = vmatpush2.bf16.msra.mxu0 0
      %3182 = vmatprep.subr.bf16.mxu0 0
      %3183 = vmatpush2.bf16.msra.mxu0 0
      %3184 = vmatprep.subr.bf16.mxu0 0
      %3185 = vmatpush2.bf16.msra.mxu0 0
      %3186 = vmatprep.subr.bf16.mxu0 0
      %3187 = vmatpush2.bf16.msra.mxu0 0
      %3188 = vmatprep.mubr.bf16.mxu0 0
      %3189 = vmatmul.mubr.bf16.gmra.mxu0 %v3154
      %v3190 = vpop.f32.mrf.mxu0
      %v3191 = vadd.f32 0.0, %v3190
      %v3192 = vpop.f32.mrf.mxu0
      %v3193 = vadd.f32 0.0, %v3192
      %v3194 = vpop.f32.mrf.mxu0
      %v3195 = vpop.f32.mrf.mxu0
      %3196 = vdwg.mxu0
      %v3197 = vmax.f32 %v3145, %v3191
      %v3198 = vmax.f32 %v3147, %v3193
      %v3199 = vmax.f32 %v3197, %v3198
      %s3200 = scalar_lea.vmem %s8, 4
      %v3201 = vld [vmem:[%s3200] sm:$0x3]
      %v3203 = vsel %vm3100, %v3201, 0
      %3205 = vmatprep.subr.bf16.mxu0 0
      %3206 = vmatpush1.bf16.msra.mxu0 0
      %3207 = vmatprep.subr.bf16.mxu0 0
      %3208 = vmatpush1.bf16.msra.mxu0 0
      %3209 = vmatprep.subr.bf16.mxu0 0
      %3210 = vmatpush1.bf16.msra.mxu0 0
      %3211 = vmatprep.subr.bf16.mxu0 0
      %3212 = vmatpush1.bf16.msra.mxu0 0
      %3213 = vmatprep.subr.bf16.mxu0 0
      %3214 = vmatpush1.bf16.msra.mxu0 0
      %3215 = vmatprep.subr.bf16.mxu0 %v3108
      %3216 = vmatpush1.bf16.msra.mxu0 %v3105
      %3217 = vmatprep.subr.bf16.mxu0 %v3096
      %3218 = vmatpush1.bf16.msra.mxu0 %v3095
      %3219 = vmatprep.subr.bf16.mxu0 %v3094
      %3220 = vmatpush1.bf16.msra.mxu0 %v3093
      %3221 = vmatprep.subr.bf16.mxu0 0
      %3222 = vmatpush2.bf16.msra.mxu0 0
      %3223 = vmatprep.subr.bf16.mxu0 0
      %3224 = vmatpush2.bf16.msra.mxu0 0
      %3225 = vmatprep.subr.bf16.mxu0 0
      %3226 = vmatpush2.bf16.msra.mxu0 0
      %3227 = vmatprep.subr.bf16.mxu0 0
      %3228 = vmatpush2.bf16.msra.mxu0 0
      %3229 = vmatprep.subr.bf16.mxu0 0
      %3230 = vmatpush2.bf16.msra.mxu0 0
      %3231 = vmatprep.subr.bf16.mxu0 0
      %3232 = vmatpush2.bf16.msra.mxu0 0
      %3233 = vmatprep.subr.bf16.mxu0 0
      %3234 = vmatpush2.bf16.msra.mxu0 0
      %3235 = vmatprep.subr.bf16.mxu0 0
      %3236 = vmatpush2.bf16.msra.mxu0 0
      %3237 = vmatprep.mubr.bf16.mxu0 0
      %3238 = vmatmul.mubr.bf16.gmra.mxu0 %v3203
      %v3239 = vpop.f32.mrf.mxu0
      %v3240 = vadd.f32 0.0, %v3239
      %v3241 = vpop.f32.mrf.mxu0
      %v3242 = vadd.f32 0.0, %v3241
      %v3243 = vpop.f32.mrf.mxu0
      %v3244 = vpop.f32.mrf.mxu0
      %3245 = vdwg.mxu0
      %s3246 = scalar_lea.vmem %s8, 6
      %v3247 = vld [vmem:[%s3246] sm:$0x3]
      %v3249 = vsel %vm3100, %v3247, 0
      %3251 = vmatprep.subr.bf16.mxu0 0
      %3252 = vmatpush1.bf16.msra.mxu0 0
      %3253 = vmatprep.subr.bf16.mxu0 0
      %3254 = vmatpush1.bf16.msra.mxu0 0
      %3255 = vmatprep.subr.bf16.mxu0 0
      %3256 = vmatpush1.bf16.msra.mxu0 0
      %3257 = vmatprep.subr.bf16.mxu0 0
      %3258 = vmatpush1.bf16.msra.mxu0 0
      %3259 = vmatprep.subr.bf16.mxu0 0
      %3260 = vmatpush1.bf16.msra.mxu0 0
      %3261 = vmatprep.subr.bf16.mxu0 %v3108
      %3262 = vmatpush1.bf16.msra.mxu0 %v3105
      %3263 = vmatprep.subr.bf16.mxu0 %v3096
      %3264 = vmatpush1.bf16.msra.mxu0 %v3095
      %3265 = vmatprep.subr.bf16.mxu0 %v3094
      %3266 = vmatpush1.bf16.msra.mxu0 %v3093
      %3267 = vmatprep.subr.bf16.mxu0 0
      %3268 = vmatpush2.bf16.msra.mxu0 0
      %3269 = vmatprep.subr.bf16.mxu0 0
      %3270 = vmatpush2.bf16.msra.mxu0 0
      %3271 = vmatprep.subr.bf16.mxu0 0
      %3272 = vmatpush2.bf16.msra.mxu0 0
      %3273 = vmatprep.subr.bf16.mxu0 0
      %3274 = vmatpush2.bf16.msra.mxu0 0
      %3275 = vmatprep.subr.bf16.mxu0 0
      %3276 = vmatpush2.bf16.msra.mxu0 0
      %3277 = vmatprep.subr.bf16.mxu0 0
      %3278 = vmatpush2.bf16.msra.mxu0 0
      %3279 = vmatprep.subr.bf16.mxu0 0
      %3280 = vmatpush2.bf16.msra.mxu0 0
      %3281 = vmatprep.subr.bf16.mxu0 0
      %3282 = vmatpush2.bf16.msra.mxu0 0
      %3283 = vmatprep.mubr.bf16.mxu0 0
      %3284 = vmatmul.mubr.bf16.gmra.mxu0 %v3249
      %v3285 = vpop.f32.mrf.mxu0
      %v3286 = vadd.f32 0.0, %v3285
      %v3287 = vpop.f32.mrf.mxu0
      %v3288 = vadd.f32 0.0, %v3287
      %v3289 = vpop.f32.mrf.mxu0
      %v3290 = vpop.f32.mrf.mxu0
      %3291 = vdwg.mxu0
      %v3292 = vmax.f32 %v3240, %v3286
      %v3293 = vmax.f32 %v3242, %v3288
      %v3294 = vmax.f32 %v3292, %v3293
      %s3295 = scalar_lea.vmem %s8, 8
      %v3296 = vld [vmem:[%s3295] sm:$0x3]
      %v3298 = vsel %vm3100, %v3296, 0
      %3300 = vmatprep.subr.bf16.mxu0 0
      %3301 = vmatpush1.bf16.msra.mxu0 0
      %3302 = vmatprep.subr.bf16.mxu0 0
      %3303 = vmatpush1.bf16.msra.mxu0 0
      %3304 = vmatprep.subr.bf16.mxu0 0
      %3305 = vmatpush1.bf16.msra.mxu0 0
      %3306 = vmatprep.subr.bf16.mxu0 0
      %3307 = vmatpush1.bf16.msra.mxu0 0
      %3308 = vmatprep.subr.bf16.mxu0 0
      %3309 = vmatpush1.bf16.msra.mxu0 0
      %3310 = vmatprep.subr.bf16.mxu0 %v3108
      %3311 = vmatpush1.bf16.msra.mxu0 %v3105
      %3312 = vmatprep.subr.bf16.mxu0 %v3096
      %3313 = vmatpush1.bf16.msra.mxu0 %v3095
      %3314 = vmatprep.subr.bf16.mxu0 %v3094
      %3315 = vmatpush1.bf16.msra.mxu0 %v3093
      %3316 = vmatprep.subr.bf16.mxu0 0
      %3317 = vmatpush2.bf16.msra.mxu0 0
      %3318 = vmatprep.subr.bf16.mxu0 0
      %3319 = vmatpush2.bf16.msra.mxu0 0
      %3320 = vmatprep.subr.bf16.mxu0 0
      %3321 = vmatpush2.bf16.msra.mxu0 0
      %3322 = vmatprep.subr.bf16.mxu0 0
      %3323 = vmatpush2.bf16.msra.mxu0 0
      %3324 = vmatprep.subr.bf16.mxu0 0
      %3325 = vmatpush2.bf16.msra.mxu0 0
      %3326 = vmatprep.subr.bf16.mxu0 0
      %3327 = vmatpush2.bf16.msra.mxu0 0
      %3328 = vmatprep.subr.bf16.mxu0 0
      %3329 = vmatpush2.bf16.msra.mxu0 0
      %3330 = vmatprep.subr.bf16.mxu0 0
      %3331 = vmatpush2.bf16.msra.mxu0 0
      %3332 = vmatprep.mubr.bf16.mxu0 0
      %3333 = vmatmul.mubr.bf16.gmra.mxu0 %v3298
      %v3334 = vpop.f32.mrf.mxu0
      %v3335 = vadd.f32 0.0, %v3334
      %v3336 = vpop.f32.mrf.mxu0
      %v3337 = vadd.f32 0.0, %v3336
      %v3338 = vpop.f32.mrf.mxu0
      %v3339 = vpop.f32.mrf.mxu0
      %3340 = vdwg.mxu0
      %s3341 = scalar_lea.vmem %s8, 10
      %v3342 = vld [vmem:[%s3341] sm:$0x3]
      %v3344 = vsel %vm3100, %v3342, 0
      %3346 = vmatprep.subr.bf16.mxu0 0
      %3347 = vmatpush1.bf16.msra.mxu0 0
      %3348 = vmatprep.subr.bf16.mxu0 0
      %3349 = vmatpush1.bf16.msra.mxu0 0
      %3350 = vmatprep.subr.bf16.mxu0 0
      %3351 = vmatpush1.bf16.msra.mxu0 0
      %3352 = vmatprep.subr.bf16.mxu0 0
      %3353 = vmatpush1.bf16.msra.mxu0 0
      %3354 = vmatprep.subr.bf16.mxu0 0
      %3355 = vmatpush1.bf16.msra.mxu0 0
      %3356 = vmatprep.subr.bf16.mxu0 %v3108
      %3357 = vmatpush1.bf16.msra.mxu0 %v3105
      %3358 = vmatprep.subr.bf16.mxu0 %v3096
      %3359 = vmatpush1.bf16.msra.mxu0 %v3095
      %3360 = vmatprep.subr.bf16.mxu0 %v3094
      %3361 = vmatpush1.bf16.msra.mxu0 %v3093
      %3362 = vmatprep.subr.bf16.mxu0 0
      %3363 = vmatpush2.bf16.msra.mxu0 0
      %3364 = vmatprep.subr.bf16.mxu0 0
      %3365 = vmatpush2.bf16.msra.mxu0 0
      %3366 = vmatprep.subr.bf16.mxu0 0
      %3367 = vmatpush2.bf16.msra.mxu0 0
      %3368 = vmatprep.subr.bf16.mxu0 0
      %3369 = vmatpush2.bf16.msra.mxu0 0
      %3370 = vmatprep.subr.bf16.mxu0 0
      %3371 = vmatpush2.bf16.msra.mxu0 0
      %3372 = vmatprep.subr.bf16.mxu0 0
      %3373 = vmatpush2.bf16.msra.mxu0 0
      %3374 = vmatprep.subr.bf16.mxu0 0
      %3375 = vmatpush2.bf16.msra.mxu0 0
      %3376 = vmatprep.subr.bf16.mxu0 0
      %3377 = vmatpush2.bf16.msra.mxu0 0
      %3378 = vmatprep.mubr.bf16.mxu0 0
      %3379 = vmatmul.mubr.bf16.gmra.mxu0 %v3344
      %v3380 = vpop.f32.mrf.mxu0
      %v3381 = vadd.f32 0.0, %v3380
      %v3382 = vpop.f32.mrf.mxu0
      %v3383 = vadd.f32 0.0, %v3382
      %v3384 = vpop.f32.mrf.mxu0
      %v3385 = vpop.f32.mrf.mxu0
      %3386 = vdwg.mxu0
      %v3387 = vmax.f32 %v3335, %v3381
      %v3388 = vmax.f32 %v3337, %v3383
      %v3389 = vmax.f32 %v3387, %v3388
      %s3390 = scalar_lea.vmem %s8, 12
      %v3391 = vld [vmem:[%s3390] sm:$0x3]
      %v3393 = vsel %vm3100, %v3391, 0
      %3395 = vmatprep.subr.bf16.mxu0 0
      %3396 = vmatpush1.bf16.msra.mxu0 0
      %3397 = vmatprep.subr.bf16.mxu0 0
      %3398 = vmatpush1.bf16.msra.mxu0 0
      %3399 = vmatprep.subr.bf16.mxu0 0
      %3400 = vmatpush1.bf16.msra.mxu0 0
      %3401 = vmatprep.subr.bf16.mxu0 0
      %3402 = vmatpush1.bf16.msra.mxu0 0
      %3403 = vmatprep.subr.bf16.mxu0 0
      %3404 = vmatpush1.bf16.msra.mxu0 0
      %3405 = vmatprep.subr.bf16.mxu0 %v3108
      %3406 = vmatpush1.bf16.msra.mxu0 %v3105
      %3407 = vmatprep.subr.bf16.mxu0 %v3096
      %3408 = vmatpush1.bf16.msra.mxu0 %v3095
      %3409 = vmatprep.subr.bf16.mxu0 %v3094
      %3410 = vmatpush1.bf16.msra.mxu0 %v3093
      %3411 = vmatprep.subr.bf16.mxu0 0
      %3412 = vmatpush2.bf16.msra.mxu0 0
      %3413 = vmatprep.subr.bf16.mxu0 0
      %3414 = vmatpush2.bf16.msra.mxu0 0
      %3415 = vmatprep.subr.bf16.mxu0 0
      %3416 = vmatpush2.bf16.msra.mxu0 0
      %3417 = vmatprep.subr.bf16.mxu0 0
      %3418 = vmatpush2.bf16.msra.mxu0 0
      %3419 = vmatprep.subr.bf16.mxu0 0
      %3420 = vmatpush2.bf16.msra.mxu0 0
      %3421 = vmatprep.subr.bf16.mxu0 0
      %3422 = vmatpush2.bf16.msra.mxu0 0
      %3423 = vmatprep.subr.bf16.mxu0 0
      %3424 = vmatpush2.bf16.msra.mxu0 0
      %3425 = vmatprep.subr.bf16.mxu0 0
      %3426 = vmatpush2.bf16.msra.mxu0 0
      %3427 = vmatprep.mubr.bf16.mxu0 0
      %3428 = vmatmul.mubr.bf16.gmra.mxu0 %v3393
      %v3429 = vpop.f32.mrf.mxu0
      %v3430 = vadd.f32 0.0, %v3429
      %v3431 = vpop.f32.mrf.mxu0
      %v3432 = vadd.f32 0.0, %v3431
      %v3433 = vpop.f32.mrf.mxu0
      %v3434 = vpop.f32.mrf.mxu0
      %3435 = vdwg.mxu0
      %s3436 = scalar_lea.vmem %s8, 14
      %v3437 = vld [vmem:[%s3436] sm:$0x3]
      %v3439 = vsel %vm3100, %v3437, 0
      %3441 = vmatprep.subr.bf16.mxu0 0
      %3442 = vmatpush1.bf16.msra.mxu0 0
      %3443 = vmatprep.subr.bf16.mxu0 0
      %3444 = vmatpush1.bf16.msra.mxu0 0
      %3445 = vmatprep.subr.bf16.mxu0 0
      %3446 = vmatpush1.bf16.msra.mxu0 0
      %3447 = vmatprep.subr.bf16.mxu0 0
      %3448 = vmatpush1.bf16.msra.mxu0 0
      %3449 = vmatprep.subr.bf16.mxu0 0
      %3450 = vmatpush1.bf16.msra.mxu0 0
      %3451 = vmatprep.subr.bf16.mxu0 %v3108
      %3452 = vmatpush1.bf16.msra.mxu0 %v3105
      %3453 = vmatprep.subr.bf16.mxu0 %v3096
      %3454 = vmatpush1.bf16.msra.mxu0 %v3095
      %3455 = vmatprep.subr.bf16.mxu0 %v3094
      %3456 = vmatpush1.bf16.msra.mxu0 %v3093
      %3457 = vmatprep.subr.bf16.mxu0 0
      %3458 = vmatpush2.bf16.msra.mxu0 0
      %3459 = vmatprep.subr.bf16.mxu0 0
      %3460 = vmatpush2.bf16.msra.mxu0 0
      %3461 = vmatprep.subr.bf16.mxu0 0
      %3462 = vmatpush2.bf16.msra.mxu0 0
      %3463 = vmatprep.subr.bf16.mxu0 0
      %3464 = vmatpush2.bf16.msra.mxu0 0
      %3465 = vmatprep.subr.bf16.mxu0 0
      %3466 = vmatpush2.bf16.msra.mxu0 0
      %3467 = vmatprep.subr.bf16.mxu0 0
      %3468 = vmatpush2.bf16.msra.mxu0 0
      %3469 = vmatprep.subr.bf16.mxu0 0
      %3470 = vmatpush2.bf16.msra.mxu0 0
      %3471 = vmatprep.subr.bf16.mxu0 0
      %3472 = vmatpush2.bf16.msra.mxu0 0
      %3473 = vmatprep.mubr.bf16.mxu0 0
      %3474 = vmatmul.mubr.bf16.gmra.mxu0 %v3439
      %v3475 = vpop.f32.mrf.mxu0
      %v3476 = vadd.f32 0.0, %v3475
      %v3477 = vpop.f32.mrf.mxu0
      %v3478 = vadd.f32 0.0, %v3477
      %v3479 = vpop.f32.mrf.mxu0
      %v3480 = vpop.f32.mrf.mxu0
      %3481 = vdwg.mxu0
      %v3482 = vmax.f32 %v3430, %v3476
      %v3483 = vmax.f32 %v3432, %v3478
      %v3484 = vmax.f32 %v3482, %v3483
      %s3485 = scalar_lea.vmem %s8, 16
      %v3486 = vld [vmem:[%s3485] sm:$0x3]
      %v3488 = vsel %vm3100, %v3486, 0
      %3490 = vmatprep.subr.bf16.mxu0 0
      %3491 = vmatpush1.bf16.msra.mxu0 0
      %3492 = vmatprep.subr.bf16.mxu0 0
      %3493 = vmatpush1.bf16.msra.mxu0 0
      %3494 = vmatprep.subr.bf16.mxu0 0
      %3495 = vmatpush1.bf16.msra.mxu0 0
      %3496 = vmatprep.subr.bf16.mxu0 0
      %3497 = vmatpush1.bf16.msra.mxu0 0
      %3498 = vmatprep.subr.bf16.mxu0 0
      %3499 = vmatpush1.bf16.msra.mxu0 0
      %3500 = vmatprep.subr.bf16.mxu0 %v3108
      %3501 = vmatpush1.bf16.msra.mxu0 %v3105
      %3502 = vmatprep.subr.bf16.mxu0 %v3096
      %3503 = vmatpush1.bf16.msra.mxu0 %v3095
      %3504 = vmatprep.subr.bf16.mxu0 %v3094
      %3505 = vmatpush1.bf16.msra.mxu0 %v3093
      %3506 = vmatprep.subr.bf16.mxu0 0
      %3507 = vmatpush2.bf16.msra.mxu0 0
      %3508 = vmatprep.subr.bf16.mxu0 0
      %3509 = vmatpush2.bf16.msra.mxu0 0
      %3510 = vmatprep.subr.bf16.mxu0 0
      %3511 = vmatpush2.bf16.msra.mxu0 0
      %3512 = vmatprep.subr.bf16.mxu0 0
      %3513 = vmatpush2.bf16.msra.mxu0 0
      %3514 = vmatprep.subr.bf16.mxu0 0
      %3515 = vmatpush2.bf16.msra.mxu0 0
      %3516 = vmatprep.subr.bf16.mxu0 0
      %3517 = vmatpush2.bf16.msra.mxu0 0
      %3518 = vmatprep.subr.bf16.mxu0 0
      %3519 = vmatpush2.bf16.msra.mxu0 0
      %3520 = vmatprep.subr.bf16.mxu0 0
      %3521 = vmatpush2.bf16.msra.mxu0 0
      %3522 = vmatprep.mubr.bf16.mxu0 0
      %3523 = vmatmul.mubr.bf16.gmra.mxu0 %v3488
      %v3524 = vpop.f32.mrf.mxu0
      %v3525 = vadd.f32 0.0, %v3524
      %v3526 = vpop.f32.mrf.mxu0
      %v3527 = vadd.f32 0.0, %v3526
      %v3528 = vpop.f32.mrf.mxu0
      %v3529 = vpop.f32.mrf.mxu0
      %3530 = vdwg.mxu0
      %s3531 = scalar_lea.vmem %s8, 18
      %v3532 = vld [vmem:[%s3531] sm:$0x3]
      %v3534 = vsel %vm3100, %v3532, 0
      %3536 = vmatprep.subr.bf16.mxu0 0
      %3537 = vmatpush1.bf16.msra.mxu0 0
      %3538 = vmatprep.subr.bf16.mxu0 0
      %3539 = vmatpush1.bf16.msra.mxu0 0
      %3540 = vmatprep.subr.bf16.mxu0 0
      %3541 = vmatpush1.bf16.msra.mxu0 0
      %3542 = vmatprep.subr.bf16.mxu0 0
      %3543 = vmatpush1.bf16.msra.mxu0 0
      %3544 = vmatprep.subr.bf16.mxu0 0
      %3545 = vmatpush1.bf16.msra.mxu0 0
      %3546 = vmatprep.subr.bf16.mxu0 %v3108
      %3547 = vmatpush1.bf16.msra.mxu0 %v3105
      %3548 = vmatprep.subr.bf16.mxu0 %v3096
      %3549 = vmatpush1.bf16.msra.mxu0 %v3095
      %3550 = vmatprep.subr.bf16.mxu0 %v3094
      %3551 = vmatpush1.bf16.msra.mxu0 %v3093
      %3552 = vmatprep.subr.bf16.mxu0 0
      %3553 = vmatpush2.bf16.msra.mxu0 0
      %3554 = vmatprep.subr.bf16.mxu0 0
      %3555 = vmatpush2.bf16.msra.mxu0 0
      %3556 = vmatprep.subr.bf16.mxu0 0
      %3557 = vmatpush2.bf16.msra.mxu0 0
      %3558 = vmatprep.subr.bf16.mxu0 0
      %3559 = vmatpush2.bf16.msra.mxu0 0
      %3560 = vmatprep.subr.bf16.mxu0 0
      %3561 = vmatpush2.bf16.msra.mxu0 0
      %3562 = vmatprep.subr.bf16.mxu0 0
      %3563 = vmatpush2.bf16.msra.mxu0 0
      %3564 = vmatprep.subr.bf16.mxu0 0
      %3565 = vmatpush2.bf16.msra.mxu0 0
      %3566 = vmatprep.subr.bf16.mxu0 0
      %3567 = vmatpush2.bf16.msra.mxu0 0
      %3568 = vmatprep.mubr.bf16.mxu0 0
      %3569 = vmatmul.mubr.bf16.gmra.mxu0 %v3534
      %v3570 = vpop.f32.mrf.mxu0
      %v3571 = vadd.f32 0.0, %v3570
      %v3572 = vpop.f32.mrf.mxu0
      %v3573 = vadd.f32 0.0, %v3572
      %v3574 = vpop.f32.mrf.mxu0
      %v3575 = vpop.f32.mrf.mxu0
      %3576 = vdwg.mxu0
      %v3577 = vmax.f32 %v3525, %v3571
      %v3578 = vmax.f32 %v3527, %v3573
      %v3579 = vmax.f32 %v3577, %v3578
      %v3580 = vpack.c.bf16 %v3199, %v3199
      %v3581 = vpack.c.bf16 %v3294, %v3294
      %v3582 = vpack.c.bf16 %v3389, %v3389
      %v3583 = vpack.c.bf16 %v3484, %v3484
      %v3584 = vpack.c.bf16 %v3579, %v3579
      %v3585 = vld [vmem:[%s9] sm:$0xf]
      %v3586 = vld [vmem:[%s9 + $0x4] sm:$0xf]
      %v3587 = vld [vmem:[%s9 + $0x8] sm:$0xf]
      %v3588 = vld [vmem:[%s9 + $0xc] sm:$0xf]
      %v3589 = vld [vmem:[%s9 + $0x10] sm:$0xf]
      %v3590 = vld [vmem:[%s9 + $0x14] sm:$0xf]
      %v3591 = vld [vmem:[%s9 + $0x18] sm:$0xf]
      %v3592 = vld [vmem:[%s9 + $0x1c] sm:$0xf]
      %v3593 = vld [vmem:[%s9 + $0x20] sm:$0xf]
      %v3594 = vld [vmem:[%s9 + $0x24] sm:$0xf]
      %v3595 = vld [vmem:[%s9 + $0x28] sm:$0xf]
      %v3596 = vld [vmem:[%s9 + $0x2c] sm:$0xf]
      %v3597 = vld [vmem:[%s9 + $0x30] sm:$0xf]
      %v3598 = vld [vmem:[%s9 + $0x34] sm:$0xf]
      %v3599 = vld [vmem:[%s9 + $0x38] sm:$0xf]
      %v3600 = vld [vmem:[%s9 + $0x3c] sm:$0xf]
      %v3601 = vld [vmem:[%s9 + $0x40] sm:$0xf]
      %v3602 = vld [vmem:[%s9 + $0x44] sm:$0xf]
      %v3603 = vld [vmem:[%s9 + $0x48] sm:$0xf]
      %v3604 = vld [vmem:[%s9 + $0x4c] sm:$0xf]
      %v3605 = vld [vmem:[%s9 + $0x50] sm:$0xf]
      %v3606 = vld [vmem:[%s9 + $0x54] sm:$0xf]
      %v3607 = vld [vmem:[%s9 + $0x58] sm:$0xf]
      %v3608 = vld [vmem:[%s9 + $0x5c] sm:$0xf]
      %v3609 = vld [vmem:[%s9 + $0x60] sm:$0xf]
      %v3610 = vld [vmem:[%s9 + $0x64] sm:$0xf]
      %v3611 = vld [vmem:[%s9 + $0x68] sm:$0xf]
      %v3612 = vld [vmem:[%s9 + $0x6c] sm:$0xf]
      %v3613 = vld [vmem:[%s9 + $0x70] sm:$0xf]
      %v3614 = vld [vmem:[%s9 + $0x74] sm:$0xf]
      %v3615 = vld [vmem:[%s9 + $0x78] sm:$0xf]
      %v3616 = vld [vmem:[%s9 + $0x7c] sm:$0xf]
      %v3617 = vld [vmem:[%s9 + $0x80] sm:$0xf]
      %v3618 = vld [vmem:[%s9 + $0x84] sm:$0xf]
      %v3619 = vld [vmem:[%s9 + $0x88] sm:$0xf]
      %v3620 = vld [vmem:[%s9 + $0x8c] sm:$0xf]
      %v3621 = vld [vmem:[%s9 + $0x90] sm:$0xf]
      %v3622 = vld [vmem:[%s9 + $0x94] sm:$0xf]
      %v3623 = vld [vmem:[%s9 + $0x98] sm:$0xf]
      %v3624 = vld [vmem:[%s9 + $0x9c] sm:$0xf]
      %v3625 = vld [vmem:[%s9 + $0xa0] sm:$0xf]
      %v3626 = vld [vmem:[%s9 + $0xa4] sm:$0xf]
      %v3627 = vld [vmem:[%s9 + $0xa8] sm:$0xf]
      %v3628 = vld [vmem:[%s9 + $0xac] sm:$0xf]
      %v3629 = vld [vmem:[%s9 + $0xb0] sm:$0xf]
      %v3630 = vld [vmem:[%s9 + $0xb4] sm:$0xf]
      %v3631 = vld [vmem:[%s9 + $0xb8] sm:$0xf]
      %v3632 = vld [vmem:[%s9 + $0xbc] sm:$0xf]
      %v3633 = vld [vmem:[%s9 + $0xc0] sm:$0xf]
      %v3634 = vld [vmem:[%s9 + $0xc4] sm:$0xf]
      %v3635 = vld [vmem:[%s9 + $0xc8] sm:$0xf]
      %v3636 = vld [vmem:[%s9 + $0xcc] sm:$0xf]
      %v3637 = vld [vmem:[%s9 + $0xd0] sm:$0xf]
      %v3638 = vld [vmem:[%s9 + $0xd4] sm:$0xf]
      %v3639 = vld [vmem:[%s9 + $0xd8] sm:$0xf]
      %v3640 = vld [vmem:[%s9 + $0xdc] sm:$0xf]
      %v3641 = vld [vmem:[%s9 + $0xe0] sm:$0xf]
      %v3642 = vld [vmem:[%s9 + $0xe4] sm:$0xf]
      %v3643 = vld [vmem:[%s9 + $0xe8] sm:$0xf]
      %v3644 = vld [vmem:[%s9 + $0xec] sm:$0xf]
      %v3645 = vld [vmem:[%s9 + $0xf0] sm:$0xf]
      %v3646 = vld [vmem:[%s9 + $0xf4] sm:$0xf]
      %v3647 = vld [vmem:[%s9 + $0xf8] sm:$0xf]
      %v3648 = vld [vmem:[%s9 + $0xfc] sm:$0xf]
      %v3649 = vld [vmem:[%s9 + $0x100] sm:$0xf]
      %v3650 = vld [vmem:[%s9 + $0x104] sm:$0xf]
      %v3651 = vld [vmem:[%s9 + $0x108] sm:$0xf]
      %v3652 = vld [vmem:[%s9 + $0x10c] sm:$0xf]
      %v3653 = vld [vmem:[%s9 + $0x110] sm:$0xf]
      %v3654 = vld [vmem:[%s9 + $0x114] sm:$0xf]
      %v3655 = vld [vmem:[%s9 + $0x118] sm:$0xf]
      %v3656 = vld [vmem:[%s9 + $0x11c] sm:$0xf]
      %v3657 = vld [vmem:[%s9 + $0x120] sm:$0xf]
      %v3658 = vld [vmem:[%s9 + $0x124] sm:$0xf]
      %v3659 = vld [vmem:[%s9 + $0x128] sm:$0xf]
      %v3660 = vld [vmem:[%s9 + $0x12c] sm:$0xf]
      %v3661 = vld [vmem:[%s9 + $0x130] sm:$0xf]
      %v3662 = vld [vmem:[%s9 + $0x134] sm:$0xf]
      %v3663 = vld [vmem:[%s9 + $0x138] sm:$0xf]
      %v3664 = vld [vmem:[%s9 + $0x13c] sm:$0xf]
      %v3665 = vld [vmem:[%s10] sm:$0x1]
      %v3667 = vlaneseq
      %v3668 = vshrl.u32 %v3667, 7
      %v3669 = vsub.s32 0, %v3668
      %v3670 = vrot.slane %v3665, %v3669
      %v3752 = vunpack.c.l.b16 %v3585
      %v3753 = vunpack.c.l.b16 %v3586
      %v3754 = vunpack.c.l.b16 %v3587
      %v3755 = vunpack.c.l.b16 %v3588
      %v3756 = vunpack.c.l.b16 %v3589
      %v3757 = vunpack.c.l.b16 %v3590
      %v3758 = vunpack.c.l.b16 %v3591
      %v3759 = vunpack.c.l.b16 %v3592
      %v3760 = vunpack.c.l.b16 %v3593
      %v3761 = vunpack.c.l.b16 %v3594
      %v3762 = vunpack.c.l.b16 %v3595
      %v3763 = vunpack.c.l.b16 %v3596
      %v3764 = vunpack.c.l.b16 %v3597
      %v3765 = vunpack.c.l.b16 %v3598
      %v3766 = vunpack.c.l.b16 %v3599
      %v3767 = vunpack.c.l.b16 %v3600
      %v3768 = vunpack.c.l.b16 %v3601
      %v3769 = vunpack.c.l.b16 %v3602
      %v3770 = vunpack.c.l.b16 %v3603
      %v3771 = vunpack.c.l.b16 %v3604
      %v3772 = vunpack.c.l.b16 %v3605
      %v3773 = vunpack.c.l.b16 %v3606
      %v3774 = vunpack.c.l.b16 %v3607
      %v3775 = vunpack.c.l.b16 %v3608
      %v3776 = vunpack.c.l.b16 %v3609
      %v3777 = vunpack.c.l.b16 %v3610
      %v3778 = vunpack.c.l.b16 %v3611
      %v3779 = vunpack.c.l.b16 %v3612
      %v3780 = vunpack.c.l.b16 %v3613
      %v3781 = vunpack.c.l.b16 %v3614
      %v3782 = vunpack.c.l.b16 %v3615
      %v3783 = vunpack.c.l.b16 %v3616
      %v3784 = vunpack.c.l.b16 %v3617
      %v3785 = vunpack.c.l.b16 %v3618
      %v3786 = vunpack.c.l.b16 %v3619
      %v3787 = vunpack.c.l.b16 %v3620
      %v3788 = vunpack.c.l.b16 %v3621
      %v3789 = vunpack.c.l.b16 %v3622
      %v3790 = vunpack.c.l.b16 %v3623
      %v3791 = vunpack.c.l.b16 %v3624
      %v3792 = vunpack.c.l.b16 %v3625
      %v3793 = vunpack.c.l.b16 %v3626
      %v3794 = vunpack.c.l.b16 %v3627
      %v3795 = vunpack.c.l.b16 %v3628
      %v3796 = vunpack.c.l.b16 %v3629
      %v3797 = vunpack.c.l.b16 %v3630
      %v3798 = vunpack.c.l.b16 %v3631
      %v3799 = vunpack.c.l.b16 %v3632
      %v3800 = vunpack.c.l.b16 %v3633
      %v3801 = vunpack.c.l.b16 %v3634
      %v3802 = vunpack.c.l.b16 %v3635
      %v3803 = vunpack.c.l.b16 %v3636
      %v3804 = vunpack.c.l.b16 %v3637
      %v3805 = vunpack.c.l.b16 %v3638
      %v3806 = vunpack.c.l.b16 %v3639
      %v3807 = vunpack.c.l.b16 %v3640
      %v3808 = vunpack.c.l.b16 %v3641
      %v3809 = vunpack.c.l.b16 %v3642
      %v3810 = vunpack.c.l.b16 %v3643
      %v3811 = vunpack.c.l.b16 %v3644
      %v3812 = vunpack.c.l.b16 %v3645
      %v3813 = vunpack.c.l.b16 %v3646
      %v3814 = vunpack.c.l.b16 %v3647
      %v3815 = vunpack.c.l.b16 %v3648
      %v3816 = vunpack.c.l.b16 %v3649
      %v3817 = vunpack.c.l.b16 %v3650
      %v3818 = vunpack.c.l.b16 %v3651
      %v3819 = vunpack.c.l.b16 %v3652
      %v3820 = vunpack.c.l.b16 %v3653
      %v3821 = vunpack.c.l.b16 %v3654
      %v3822 = vunpack.c.l.b16 %v3655
      %v3823 = vunpack.c.l.b16 %v3656
      %v3824 = vunpack.c.l.b16 %v3657
      %v3825 = vunpack.c.l.b16 %v3658
      %v3826 = vunpack.c.l.b16 %v3659
      %v3827 = vunpack.c.l.b16 %v3660
      %v3828 = vunpack.c.l.b16 %v3661
      %v3829 = vunpack.c.l.b16 %v3662
      %v3830 = vunpack.c.l.b16 %v3663
      %v3831 = vunpack.c.l.b16 %v3664
      %v3832 = vpack.c.b16 %v3753, %v3752
      %v3833 = vpack.c.b16 %v3755, %v3754
      %v3834 = vpack.c.b16 %v3757, %v3756
      %v3835 = vpack.c.b16 %v3759, %v3758
      %v3836 = vpack.c.b16 %v3761, %v3760
      %v3837 = vpack.c.b16 %v3763, %v3762
      %v3838 = vpack.c.b16 %v3765, %v3764
      %v3839 = vpack.c.b16 %v3767, %v3766
      %v3840 = vpack.c.b16 %v3769, %v3768
      %v3841 = vpack.c.b16 %v3771, %v3770
      %v3842 = vpack.c.b16 %v3773, %v3772
      %v3843 = vpack.c.b16 %v3775, %v3774
      %v3844 = vpack.c.b16 %v3777, %v3776
      %v3845 = vpack.c.b16 %v3779, %v3778
      %v3846 = vpack.c.b16 %v3781, %v3780
      %v3847 = vpack.c.b16 %v3783, %v3782
      %v3848 = vpack.c.b16 %v3785, %v3784
      %v3849 = vpack.c.b16 %v3787, %v3786
      %v3850 = vpack.c.b16 %v3789, %v3788
      %v3851 = vpack.c.b16 %v3791, %v3790
      %v3852 = vpack.c.b16 %v3793, %v3792
      %v3853 = vpack.c.b16 %v3795, %v3794
      %v3854 = vpack.c.b16 %v3797, %v3796
      %v3855 = vpack.c.b16 %v3799, %v3798
      %v3856 = vpack.c.b16 %v3801, %v3800
      %v3857 = vpack.c.b16 %v3803, %v3802
      %v3858 = vpack.c.b16 %v3805, %v3804
      %v3859 = vpack.c.b16 %v3807, %v3806
      %v3860 = vpack.c.b16 %v3809, %v3808
      %v3861 = vpack.c.b16 %v3811, %v3810
      %v3862 = vpack.c.b16 %v3813, %v3812
      %v3863 = vpack.c.b16 %v3815, %v3814
      %v3864 = vpack.c.b16 %v3817, %v3816
      %v3865 = vpack.c.b16 %v3819, %v3818
      %v3866 = vpack.c.b16 %v3821, %v3820
      %v3867 = vpack.c.b16 %v3823, %v3822
      %v3868 = vpack.c.b16 %v3825, %v3824
      %v3869 = vpack.c.b16 %v3827, %v3826
      %v3870 = vpack.c.b16 %v3829, %v3828
      %v3871 = vpack.c.b16 %v3831, %v3830
      %3912 = vmatprep.subr.bf16.mxu0 0
      %3913 = vmatpush1.bf16.msra.mxu0 %v3839
      %3914 = vmatprep.subr.bf16.mxu0 0
      %3915 = vmatpush1.bf16.msra.mxu0 %v3838
      %3916 = vmatprep.subr.bf16.mxu0 0
      %3917 = vmatpush1.bf16.msra.mxu0 %v3837
      %3918 = vmatprep.subr.bf16.mxu0 0
      %3919 = vmatpush1.bf16.msra.mxu0 %v3836
      %3920 = vmatprep.subr.bf16.mxu0 0
      %3921 = vmatpush1.bf16.msra.mxu0 %v3835
      %3922 = vmatprep.subr.bf16.mxu0 0
      %3923 = vmatpush1.bf16.msra.mxu0 %v3834
      %3924 = vmatprep.subr.bf16.mxu0 0
      %3925 = vmatpush1.bf16.msra.mxu0 %v3833
      %3926 = vmatprep.subr.bf16.mxu0 0
      %3927 = vmatpush1.bf16.msra.mxu0 %v3832
      %3928 = vmatprep.subr.bf16.mxu0 0
      %3929 = vmatpush2.bf16.msra.mxu0 %v3847
      %3930 = vmatprep.subr.bf16.mxu0 0
      %3931 = vmatpush2.bf16.msra.mxu0 %v3846
      %3932 = vmatprep.subr.bf16.mxu0 0
      %3933 = vmatpush2.bf16.msra.mxu0 %v3845
      %3934 = vmatprep.subr.bf16.mxu0 0
      %3935 = vmatpush2.bf16.msra.mxu0 %v3844
      %3936 = vmatprep.subr.bf16.mxu0 0
      %3937 = vmatpush2.bf16.msra.mxu0 %v3843
      %3938 = vmatprep.subr.bf16.mxu0 0
      %3939 = vmatpush2.bf16.msra.mxu0 %v3842
      %3940 = vmatprep.subr.bf16.mxu0 0
      %3941 = vmatpush2.bf16.msra.mxu0 %v3841
      %3942 = vmatprep.subr.bf16.mxu0 0
      %3943 = vmatpush2.bf16.msra.mxu0 %v3840
      %3944 = vmatprep.mubr.bf16.mxu0 %v3581
      %3945 = vmatmul.mubr.bf16.gmra.mxu0 %v3580
      %v3946 = vpop.f32.mrf.mxu0
      %v3947 = vadd.f32 %v3670, %v3946
      %v3948 = vpop.f32.mrf.mxu0
      %v3949 = vpop.f32.mrf.mxu0
      %v3950 = vpop.f32.mrf.mxu0
      %3951 = vdwg.mxu0
      %3952 = vmatprep.subr.bf16.mxu0 0
      %3953 = vmatpush1.bf16.msra.mxu0 %v3855
      %3954 = vmatprep.subr.bf16.mxu0 0
      %3955 = vmatpush1.bf16.msra.mxu0 %v3854
      %3956 = vmatprep.subr.bf16.mxu0 0
      %3957 = vmatpush1.bf16.msra.mxu0 %v3853
      %3958 = vmatprep.subr.bf16.mxu0 0
      %3959 = vmatpush1.bf16.msra.mxu0 %v3852
      %3960 = vmatprep.subr.bf16.mxu0 0
      %3961 = vmatpush1.bf16.msra.mxu0 %v3851
      %3962 = vmatprep.subr.bf16.mxu0 0
      %3963 = vmatpush1.bf16.msra.mxu0 %v3850
      %3964 = vmatprep.subr.bf16.mxu0 0
      %3965 = vmatpush1.bf16.msra.mxu0 %v3849
      %3966 = vmatprep.subr.bf16.mxu0 0
      %3967 = vmatpush1.bf16.msra.mxu0 %v3848
      %3968 = vmatprep.subr.bf16.mxu0 0
      %3969 = vmatpush2.bf16.msra.mxu0 %v3863
      %3970 = vmatprep.subr.bf16.mxu0 0
      %3971 = vmatpush2.bf16.msra.mxu0 %v3862
      %3972 = vmatprep.subr.bf16.mxu0 0
      %3973 = vmatpush2.bf16.msra.mxu0 %v3861
      %3974 = vmatprep.subr.bf16.mxu0 0
      %3975 = vmatpush2.bf16.msra.mxu0 %v3860
      %3976 = vmatprep.subr.bf16.mxu0 0
      %3977 = vmatpush2.bf16.msra.mxu0 %v3859
      %3978 = vmatprep.subr.bf16.mxu0 0
      %3979 = vmatpush2.bf16.msra.mxu0 %v3858
      %3980 = vmatprep.subr.bf16.mxu0 0
      %3981 = vmatpush2.bf16.msra.mxu0 %v3857
      %3982 = vmatprep.subr.bf16.mxu0 0
      %3983 = vmatpush2.bf16.msra.mxu0 %v3856
      %3984 = vmatprep.mubr.bf16.mxu0 %v3583
      %3985 = vmatmul.mubr.bf16.gmra.mxu0 %v3582
      %v3986 = vpop.f32.mrf.mxu0
      %v3987 = vadd.f32 %v3947, %v3986
      %v3988 = vpop.f32.mrf.mxu0
      %v3989 = vpop.f32.mrf.mxu0
      %v3990 = vpop.f32.mrf.mxu0
      %3991 = vdwg.mxu0
      %3992 = vmatprep.subr.bf16.mxu0 0
      %3993 = vmatpush1.bf16.msra.mxu0 %v3871
      %3994 = vmatprep.subr.bf16.mxu0 0
      %3995 = vmatpush1.bf16.msra.mxu0 %v3870
      %3996 = vmatprep.subr.bf16.mxu0 0
      %3997 = vmatpush1.bf16.msra.mxu0 %v3869
      %3998 = vmatprep.subr.bf16.mxu0 0
      %3999 = vmatpush1.bf16.msra.mxu0 %v3868
      %4000 = vmatprep.subr.bf16.mxu0 0
      %4001 = vmatpush1.bf16.msra.mxu0 %v3867
      %4002 = vmatprep.subr.bf16.mxu0 0
      %4003 = vmatpush1.bf16.msra.mxu0 %v3866
      %4004 = vmatprep.subr.bf16.mxu0 0
      %4005 = vmatpush1.bf16.msra.mxu0 %v3865
      %4006 = vmatprep.subr.bf16.mxu0 0
      %4007 = vmatpush1.bf16.msra.mxu0 %v3864
      %4008 = vmatprep.subr.bf16.mxu0 0
      %4009 = vmatpush2.bf16.msra.mxu0 0
      %4010 = vmatprep.subr.bf16.mxu0 0
      %4011 = vmatpush2.bf16.msra.mxu0 0
      %4012 = vmatprep.subr.bf16.mxu0 0
      %4013 = vmatpush2.bf16.msra.mxu0 0
      %4014 = vmatprep.subr.bf16.mxu0 0
      %4015 = vmatpush2.bf16.msra.mxu0 0
      %4016 = vmatprep.subr.bf16.mxu0 0
      %4017 = vmatpush2.bf16.msra.mxu0 0
      %4018 = vmatprep.subr.bf16.mxu0 0
      %4019 = vmatpush2.bf16.msra.mxu0 0
      %4020 = vmatprep.subr.bf16.mxu0 0
      %4021 = vmatpush2.bf16.msra.mxu0 0
      %4022 = vmatprep.subr.bf16.mxu0 0
      %4023 = vmatpush2.bf16.msra.mxu0 0
      %4024 = vmatprep.mubr.bf16.mxu0 0
      %4025 = vmatmul.mubr.bf16.gmra.mxu0 %v3584
      %v4026 = vpop.f32.mrf.mxu0
      %v4027 = vadd.f32 %v3987, %v4026
      %v4028 = vpop.f32.mrf.mxu0
      %v4029 = vpop.f32.mrf.mxu0
      %v4030 = vpop.f32.mrf.mxu0
      %4031 = vdwg.mxu0
      %v4032 = vmax.f32 %v4027, 0.0
      %v4033 = vpack.c.bf16 %v4032, %v4032
      %v4034 = vld [vmem:[%s11] sm:$0xf]
      %v4035 = vld [vmem:[%s11 + $0x4] sm:$0xf]
      %v4036 = vld [vmem:[%s11 + $0x8] sm:$0xf]
      %v4037 = vld [vmem:[%s11 + $0xc] sm:$0xf]
      %v4038 = vld [vmem:[%s11 + $0x10] sm:$0xf]
      %v4039 = vld [vmem:[%s11 + $0x14] sm:$0xf]
      %v4040 = vld [vmem:[%s11 + $0x18] sm:$0xf]
      %v4041 = vld [vmem:[%s11 + $0x1c] sm:$0xf]
      %v4042 = vld [vmem:[%s11 + $0x20] sm:$0xf]
      %v4043 = vld [vmem:[%s11 + $0x24] sm:$0xf]
      %v4044 = vld [vmem:[%s11 + $0x28] sm:$0xf]
      %v4045 = vld [vmem:[%s11 + $0x2c] sm:$0xf]
      %v4046 = vld [vmem:[%s11 + $0x30] sm:$0xf]
      %v4047 = vld [vmem:[%s11 + $0x34] sm:$0xf]
      %v4048 = vld [vmem:[%s11 + $0x38] sm:$0xf]
      %v4049 = vld [vmem:[%s11 + $0x3c] sm:$0xf]
      %v4050 = vld [vmem:[%s12] sm:$0x1]
      %v4052 = vlaneseq
      %v4053 = vshrl.u32 %v4052, 7
      %v4054 = vsub.s32 0, %v4053
      %v4055 = vrot.slane %v4050, %v4054
      %v4073 = vunpack.c.l.b16 %v4034
      %v4074 = vunpack.c.l.b16 %v4035
      %v4075 = vunpack.c.l.b16 %v4036
      %v4076 = vunpack.c.l.b16 %v4037
      %v4077 = vunpack.c.l.b16 %v4038
      %v4078 = vunpack.c.l.b16 %v4039
      %v4079 = vunpack.c.l.b16 %v4040
      %v4080 = vunpack.c.l.b16 %v4041
      %v4081 = vunpack.c.l.b16 %v4042
      %v4082 = vunpack.c.l.b16 %v4043
      %v4083 = vunpack.c.l.b16 %v4044
      %v4084 = vunpack.c.l.b16 %v4045
      %v4085 = vunpack.c.l.b16 %v4046
      %v4086 = vunpack.c.l.b16 %v4047
      %v4087 = vunpack.c.l.b16 %v4048
      %v4088 = vunpack.c.l.b16 %v4049
      %v4089 = vpack.c.b16 %v4074, %v4073
      %v4090 = vpack.c.b16 %v4076, %v4075
      %v4091 = vpack.c.b16 %v4078, %v4077
      %v4092 = vpack.c.b16 %v4080, %v4079
      %v4093 = vpack.c.b16 %v4082, %v4081
      %v4094 = vpack.c.b16 %v4084, %v4083
      %v4095 = vpack.c.b16 %v4086, %v4085
      %v4096 = vpack.c.b16 %v4088, %v4087
      %4105 = vmatprep.subr.bf16.mxu0 0
      %4106 = vmatpush1.bf16.msra.mxu0 %v4096
      %4107 = vmatprep.subr.bf16.mxu0 0
      %4108 = vmatpush1.bf16.msra.mxu0 %v4095
      %4109 = vmatprep.subr.bf16.mxu0 0
      %4110 = vmatpush1.bf16.msra.mxu0 %v4094
      %4111 = vmatprep.subr.bf16.mxu0 0
      %4112 = vmatpush1.bf16.msra.mxu0 %v4093
      %4113 = vmatprep.subr.bf16.mxu0 0
      %4114 = vmatpush1.bf16.msra.mxu0 %v4092
      %4115 = vmatprep.subr.bf16.mxu0 0
      %4116 = vmatpush1.bf16.msra.mxu0 %v4091
      %4117 = vmatprep.subr.bf16.mxu0 0
      %4118 = vmatpush1.bf16.msra.mxu0 %v4090
      %4119 = vmatprep.subr.bf16.mxu0 0
      %4120 = vmatpush1.bf16.msra.mxu0 %v4089
      %4121 = vmatprep.subr.bf16.mxu0 0
      %4122 = vmatpush2.bf16.msra.mxu0 0
      %4123 = vmatprep.subr.bf16.mxu0 0
      %4124 = vmatpush2.bf16.msra.mxu0 0
      %4125 = vmatprep.subr.bf16.mxu0 0
      %4126 = vmatpush2.bf16.msra.mxu0 0
      %4127 = vmatprep.subr.bf16.mxu0 0
      %4128 = vmatpush2.bf16.msra.mxu0 0
      %4129 = vmatprep.subr.bf16.mxu0 0
      %4130 = vmatpush2.bf16.msra.mxu0 0
      %4131 = vmatprep.subr.bf16.mxu0 0
      %4132 = vmatpush2.bf16.msra.mxu0 0
      %4133 = vmatprep.subr.bf16.mxu0 0
      %4134 = vmatpush2.bf16.msra.mxu0 0
      %4135 = vmatprep.subr.bf16.mxu0 0
      %4136 = vmatpush2.bf16.msra.mxu0 0
      %4137 = vmatprep.mubr.bf16.mxu0 0
      %4138 = vmatmul.mubr.bf16.gmra.mxu0 %v4033
      %v4139 = vpop.f32.mrf.mxu0
      %v4140 = vadd.f32 %v4055, %v4139
      %v4141 = vpop.f32.mrf.mxu0
      %v4142 = vpop.f32.mrf.mxu0
      %v4143 = vpop.f32.mrf.mxu0
      %4144 = vdwg.mxu0
      %v4145 = vmax.f32 %v4140, 0.0
      %v4146 = vpack.c.bf16 %v4145, %v4145
      %v4147 = vld [vmem:[%s13] sm:$0xf]
      %v4148 = vld [vmem:[%s13 + $0x4] sm:$0xf]
      %v4149 = vld [vmem:[%s13 + $0x8] sm:$0xf]
      %v4150 = vld [vmem:[%s13 + $0xc] sm:$0xf]
      %v4151 = vld [vmem:[%s13 + $0x10] sm:$0xf]
      %v4152 = vld [vmem:[%s13 + $0x14] sm:$0xf]
      %v4153 = vld [vmem:[%s13 + $0x18] sm:$0xf]
      %v4154 = vld [vmem:[%s13 + $0x1c] sm:$0xf]
      %v4155 = vld [vmem:[%s13 + $0x20] sm:$0xf]
      %v4156 = vld [vmem:[%s13 + $0x24] sm:$0xf]
      %v4157 = vld [vmem:[%s13 + $0x28] sm:$0xf]
      %v4158 = vld [vmem:[%s13 + $0x2c] sm:$0xf]
      %v4159 = vld [vmem:[%s13 + $0x30] sm:$0xf]
      %v4160 = vld [vmem:[%s13 + $0x34] sm:$0xf]
      %v4161 = vld [vmem:[%s13 + $0x38] sm:$0xf]
      %v4162 = vld [vmem:[%s13 + $0x3c] sm:$0xf]
      %v4163 = vld [vmem:[%s14] sm:$0x1]
      %v4165 = vlaneseq
      %v4166 = vshrl.u32 %v4165, 7
      %v4167 = vsub.s32 0, %v4166
      %v4168 = vrot.slane %v4163, %v4167
      %v4186 = vunpack.c.l.b16 %v4147
      %v4187 = vunpack.c.l.b16 %v4148
      %v4188 = vunpack.c.l.b16 %v4149
      %v4189 = vunpack.c.l.b16 %v4150
      %v4190 = vunpack.c.l.b16 %v4151
      %v4191 = vunpack.c.l.b16 %v4152
      %v4192 = vunpack.c.l.b16 %v4153
      %v4193 = vunpack.c.l.b16 %v4154
      %v4194 = vunpack.c.l.b16 %v4155
      %v4195 = vunpack.c.l.b16 %v4156
      %v4196 = vunpack.c.l.b16 %v4157
      %v4197 = vunpack.c.l.b16 %v4158
      %v4198 = vunpack.c.l.b16 %v4159
      %v4199 = vunpack.c.l.b16 %v4160
      %v4200 = vunpack.c.l.b16 %v4161
      %v4201 = vunpack.c.l.b16 %v4162
      %v4202 = vpack.c.b16 %v4187, %v4186
      %v4203 = vpack.c.b16 %v4189, %v4188
      %v4204 = vpack.c.b16 %v4191, %v4190
      %v4205 = vpack.c.b16 %v4193, %v4192
      %v4206 = vpack.c.b16 %v4195, %v4194
      %v4207 = vpack.c.b16 %v4197, %v4196
      %v4208 = vpack.c.b16 %v4199, %v4198
      %v4209 = vpack.c.b16 %v4201, %v4200
      %4218 = vmatprep.subr.bf16.mxu0 0
      %4219 = vmatpush1.bf16.msra.mxu0 %v4209
      %4220 = vmatprep.subr.bf16.mxu0 0
      %4221 = vmatpush1.bf16.msra.mxu0 %v4208
      %4222 = vmatprep.subr.bf16.mxu0 0
      %4223 = vmatpush1.bf16.msra.mxu0 %v4207
      %4224 = vmatprep.subr.bf16.mxu0 0
      %4225 = vmatpush1.bf16.msra.mxu0 %v4206
      %4226 = vmatprep.subr.bf16.mxu0 0
      %4227 = vmatpush1.bf16.msra.mxu0 %v4205
      %4228 = vmatprep.subr.bf16.mxu0 0
      %4229 = vmatpush1.bf16.msra.mxu0 %v4204
      %4230 = vmatprep.subr.bf16.mxu0 0
      %4231 = vmatpush1.bf16.msra.mxu0 %v4203
      %4232 = vmatprep.subr.bf16.mxu0 0
      %4233 = vmatpush1.bf16.msra.mxu0 %v4202
      %4234 = vmatprep.subr.bf16.mxu0 0
      %4235 = vmatpush2.bf16.msra.mxu0 0
      %4236 = vmatprep.subr.bf16.mxu0 0
      %4237 = vmatpush2.bf16.msra.mxu0 0
      %4238 = vmatprep.subr.bf16.mxu0 0
      %4239 = vmatpush2.bf16.msra.mxu0 0
      %4240 = vmatprep.subr.bf16.mxu0 0
      %4241 = vmatpush2.bf16.msra.mxu0 0
      %4242 = vmatprep.subr.bf16.mxu0 0
      %4243 = vmatpush2.bf16.msra.mxu0 0
      %4244 = vmatprep.subr.bf16.mxu0 0
      %4245 = vmatpush2.bf16.msra.mxu0 0
      %4246 = vmatprep.subr.bf16.mxu0 0
      %4247 = vmatpush2.bf16.msra.mxu0 0
      %4248 = vmatprep.subr.bf16.mxu0 0
      %4249 = vmatpush2.bf16.msra.mxu0 0
      %4250 = vmatprep.mubr.bf16.mxu0 0
      %4251 = vmatmul.mubr.bf16.gmra.mxu0 %v4146
      %v4252 = vpop.f32.mrf.mxu0
      %v4253 = vadd.f32 %v4168, %v4252
      %v4254 = vpop.f32.mrf.mxu0
      %v4255 = vpop.f32.mrf.mxu0
      %v4256 = vpop.f32.mrf.mxu0
      %4257 = vdwg.mxu0
      %4258 = vst [vmem:[%s492] sm:$0xf] %v4253
      %p4259 = scmp.lt.s32.totalorder %s26, 1
      %s4260 = scalar_select %p4259, %s26, 1
      %s4261 = smul.addr %s4260, 4
      %s4262 = scalar_lea.vmem %s15, %s4261
      // Predicated region
      $region81: #{net_forward.1} parent=79 // pred_check
        %p4263 = pneg %p364
      $region82: #{net_forward.1} parent=79 // pred_check_branch
        %4265 = sbr.rel (%p4263) target = $region84
      $region83: #{net_forward.1} parent=79 // pred_region
        _
      $region84: #{net_forward.1} parent=79 // pred_fallthru
        _
    $region80: #{net_forward.1} parent=5 // pred_fallthru
      _
    %p4266 = scmp.le.s32.totalorder 2, %s21
    // Predicated region
    $region85: #{net_forward.1} parent=5 // pred_check
      %p4267 = pneg %p4266
    $region86: #{net_forward.1} parent=5 // pred_check_branch
      %4269 = sbr.rel (%p4267) target = $region88
    $region87: #{net_forward.1} parent=5 // pred_region
      %s4270 = ssub.s32 %s21, 2
      // Predicated region
      $region89: #{net_forward.1} parent=87 // pred_check
        %p4271 = pneg %p370
      $region90: #{net_forward.1} parent=87 // pred_check_branch
        %4273 = sbr.rel (%p4271) target = $region92
      $region91: #{net_forward.1} parent=87 // pred_region
        %p4274 = scmp.lt.s32.totalorder %s27, 1
        %s4275 = scalar_select %p4274, %s27, 1
        %s4276 = smul.addr %s4275, 4
        %s4277 = scalar_lea.vmem %s15, %s4276
      $region92: #{net_forward.1} parent=87 // pred_fallthru
        _
    $region88: #{net_forward.1} parent=5 // pred_fallthru
      _
  $region6: #{net_forward.1} parent=0 // loop_footer
    %s25 = sadd.s32 1, %s21
  $region7: #{net_forward.1} parent=0 // loop_footer_branch
    %20 = sbr.rel target = $region3
  $region8: #{net_forward.1} parent=0 // loop_exit
    _

</llo_original>
